<compile_context>
chip_gen: v5e
topology: v5e:2x2
jax: 0.10.0
libtpu: 0.0.40
codegen_flags: <defaults>
</compile_context>

<pallas_src>
import math

import jax
import jax.numpy as jnp
from jax import lax
from jax.experimental import pallas as pl
from jax.experimental.pallas import tpu as pltpu


def _conv_out(size, k, s):
    return (size - k) // s + 1


def _full_spec(shape):
    # Full-array block (block_shape == array shape satisfies the (8,128) rule).
    return pl.BlockSpec(shape, lambda i, _n=len(shape): (0,) * _n)


# ----------------------------------------------------------------------------
# Single fused Pallas kernel for the whole forward pass.
# ----------------------------------------------------------------------------
def make_fused_forward(N, C, H, W, npad):
    K1, S1, OC1 = 8, 4, 32
    K2, S2, OC2 = 4, 2, 64
    K3, S3, OC3 = 3, 1, 64
    FC_H = 512
    OH1, OW1 = _conv_out(H, K1, S1), _conv_out(W, K1, S1)
    OH2, OW2 = _conv_out(OH1, K2, S2), _conv_out(OW1, K2, S2)
    OH3, OW3 = _conv_out(OH2, K3, S3), _conv_out(OW2, K3, S3)
    if OH3 != 1 or OW3 != 1:
        # TODO(synk): add a conv3 im2col stage for inputs whose conv3 output is
        # larger than 1x1 (the reference DQN input 36x36 gives a 1x1 output).
        raise NotImplementedError("fused kernel assumes a 1x1 conv3 output")
    P2 = OH2 * OW2           # conv2 output positions (= conv3 taps)
    PK1 = C * K1 * K1        # conv1 im2col patch width
    PK2 = K2 * K2 * OC1      # conv2 im2col patch width

    def kernel(p1_ref, w1_ref, b1_ref, w2_ref, b2_ref, w3_ref, b3_ref,
               fc1w_ref, fc1b_ref, fc2w_ref, fc2b_ref, out_ref,
               a1_ref, p2_ref, a2_ref):
        f32, bf16 = jnp.float32, jnp.bfloat16

        # ---- conv1: ONE MXU matmul; rows are ordered (ow1, n, oh1). -------
        y1 = jnp.dot(p1_ref[...], w1_ref[...], preferred_element_type=f32)
        y1 = jnp.maximum(y1 + b1_ref[...], 0.0)
        # Scatter into the lane-dense (N, OH1, OW1*OC1) layout with OW1
        # vreg-aligned value slices + lane-slice stores.
        rows = N * OH1
        for ow in range(OW1):
            a1_ref[:, :, pl.ds(ow * OC1, OC1)] = (
                y1[ow * rows:(ow + 1) * rows, :].reshape(N, OH1, OC1))

        # ---- conv2: lane-dense im2col (one 128-lane copy per (oh, ow, kh)),
        #      then a single MXU matmul with M = P2*N rows. ------------------
        for oh in range(OH2):
            for ow in range(OW2):
                pos = oh * OW2 + ow
                for kh in range(K2):
                    p2_ref[pos, :, pl.ds(kh * K2 * OC1, K2 * OC1)] = (
                        a1_ref[:, oh * S2 + kh, pl.ds(ow * S2 * OC1, K2 * OC1)])
        y2 = jnp.dot(p2_ref[...].reshape(P2 * N, PK2).astype(bf16),
                     w2_ref[...], preferred_element_type=f32)
        a2_ref[...] = jnp.maximum(y2 + b2_ref[...], 0.0)   # rows (pos2, n)

        # ---- conv3 (1x1 output): its patch is conv2's whole feature map, so
        #      accumulate P2 small dots -- no patch scratch, no flatten. -----
        acc3 = None
        for pos in range(P2):
            lhs = a2_ref[pos * N:(pos + 1) * N, :].astype(bf16)
            part = jnp.dot(lhs, w3_ref[pos], preferred_element_type=f32)
            acc3 = part if acc3 is None else acc3 + part
        a3 = jnp.maximum(acc3 + b3_ref[...], 0.0)           # (N, OC3)

        # ---- fc1 + ReLU, then fc2 (lane-padded -> unmasked final store). ---
        h = jnp.dot(a3.astype(bf16), fc1w_ref[...], preferred_element_type=f32)
        h = jnp.maximum(h + fc1b_ref[...], 0.0)
        out = jnp.dot(h.astype(bf16), fc2w_ref[...], preferred_element_type=f32)
        out_ref[...] = out + fc2b_ref[...]

    in_shapes = [
        ((OW1 * N * OH1, PK1), jnp.bfloat16),                      # conv1 patches
        ((PK1, OC1), jnp.bfloat16), ((1, OC1), jnp.float32),       # conv1 w/b
        ((PK2, OC2), jnp.bfloat16), ((1, OC2), jnp.float32),       # conv2 w/b
        ((P2, OC2, OC3), jnp.bfloat16), ((1, OC3), jnp.float32),   # conv3 w/b
        ((OC3, FC_H), jnp.bfloat16), ((1, FC_H), jnp.float32),     # fc1 w/b
        ((FC_H, npad), jnp.bfloat16), ((1, npad), jnp.float32),    # fc2 w/b
    ]
    flops = 2 * N * (OH1 * OW1 * PK1 * OC1
                     + OH2 * OW2 * PK2 * OC2
                     + P2 * OC2 * OC3
                     + OC3 * FC_H + FC_H * npad)
    bytes_accessed = (sum(math.prod(s) * jnp.dtype(dt).itemsize
                          for s, dt in in_shapes) + 4 * N * npad)

    return pl.pallas_call(
        kernel,
        out_shape=jax.ShapeDtypeStruct((N, npad), jnp.float32),
        grid=(1,),
        in_specs=[_full_spec(s) for s, _ in in_shapes],
        out_specs=_full_spec((N, npad)),
        scratch_shapes=[
            pltpu.VMEM((N, OH1, OW1 * OC1), jnp.float32),   # lane-dense conv1 act
            pltpu.VMEM((P2, N, PK2), jnp.float32),          # conv2 im2col patches
            pltpu.VMEM((P2 * N, OC2), jnp.float32),         # conv2 activations
        ],
        compiler_params=pltpu.CompilerParams(
            dimension_semantics=("arbitrary",)),
        cost_estimate=pl.CostEstimate(
            flops=flops, transcendentals=0, bytes_accessed=bytes_accessed),
    )


# ----------------------------------------------------------------------------
# One-time parameter preparation (pre-transposed / pre-scaled / bf16 / padded).
# ----------------------------------------------------------------------------
def prepare_params(params, input_hw, output_dim):
    H, W = input_hw
    OH1, OW1 = _conv_out(H, 8, 4), _conv_out(W, 8, 4)
    OH2, OW2 = _conv_out(OH1, 4, 2), _conv_out(OW1, 4, 2)
    OH3, OW3 = _conv_out(OH2, 3, 1), _conv_out(OW2, 3, 1)
    assert OH3 == 1 and OW3 == 1, "prep assumes a 1x1 conv3 output"

    def khkwc(w):  # torch (OC, IC, KH, KW) -> (KH*KW*IC, OC)
        oc, ic, k, _ = w.shape
        return jnp.transpose(w, (2, 3, 1, 0)).reshape(k * k * ic, oc)

    oc1 = params["conv1_w"].shape[0]
    oc2 = params["conv2_w"].shape[0]
    oc3, _, k3, _ = params["conv3_w"].shape

    prep = {}
    # conv1 consumes conv_general_dilated_patches features in (c, kh, kw)
    # order == torch weight.reshape(OC, -1) column order; 1/255 folded in.
    prep["w1"] = (params["conv1_w"].reshape(oc1, -1).T / 255.0).astype(jnp.bfloat16)
    prep["b1"] = params["conv1_b"].reshape(1, oc1).astype(jnp.float32)
    prep["w2"] = khkwc(params["conv2_w"]).astype(jnp.bfloat16)
    prep["b2"] = params["conv2_b"].reshape(1, oc2).astype(jnp.float32)
    # conv3 (1x1 output): one (IC, OC) weight block per conv2 position (kh, kw).
    prep["w3"] = khkwc(params["conv3_w"]).reshape(k3 * k3, oc2, oc3
                                                  ).astype(jnp.bfloat16)
    prep["b3"] = params["conv3_b"].reshape(1, oc3).astype(jnp.float32)
    # torch's NCHW flatten order is (c, oh3, ow3) == plain channel order here.
    prep["fc1w"] = params["fc1_w"].astype(jnp.bfloat16)
    prep["fc1b"] = params["fc1_b"].reshape(1, -1).astype(jnp.float32)
    # Lane-pad fc2 to a multiple of 128 so the kernel's final store is unmasked.
    npad = ((output_dim + 127) // 128) * 128
    fc2_w, fc2_b = params["fc2_w"], params["fc2_b"].reshape(1, -1)
    prep["fc2w"] = (jnp.zeros((fc2_w.shape[0], npad), jnp.float32)
                    .at[:, :output_dim].set(fc2_w)).astype(jnp.bfloat16)
    prep["fc2b"] = jnp.zeros((1, npad), jnp.float32).at[:, :output_dim].set(fc2_b)
    return prep


# ----------------------------------------------------------------------------
# Forward pass (PyTorch QNetworkCNN semantics; x is NCHW in [0, 255]).
# Returns Q-values lane-padded to a multiple of 128; slice [:, :output_dim]
# at the consumer.
# ----------------------------------------------------------------------------
@jax.jit
def qnetwork_forward_padded(x, prep):
    N, C, H, W = x.shape
    x_nhwc = jnp.transpose(x.astype(jnp.float32), (0, 2, 3, 1))
    # conv1 im2col as one fused XLA op; feature order (c, kh, kw) matches
    # torch's Conv2d weight.reshape(OC, -1) column order.
    patches = lax.conv_general_dilated_patches(
        x_nhwc, filter_shape=(8, 8), window_strides=(4, 4), padding="VALID",
        dimension_numbers=("NHWC", "HWIO", "NHWC"))
    _, OH1, OW1, PK = patches.shape
    # Rows ordered (ow1, n, oh1): lets the kernel scatter the conv1 matmul
    # output into its lane-dense VMEM layout with aligned slices only.
    p1 = jnp.transpose(patches, (2, 0, 1, 3)).reshape(OW1 * N * OH1, PK)
    p1 = p1.astype(jnp.bfloat16)   # bf16 halves the largest HBM transfer
    fused = make_fused_forward(N, C, H, W, npad=prep["fc2w"].shape[1])
    return fused(p1, prep["w1"], prep["b1"], prep["w2"], prep["b2"],
                 prep["w3"], prep["b3"], prep["fc1w"], prep["fc1b"],
                 prep["fc2w"], prep["fc2b"])


# ----------------------------------------------------------------------------
# Torch-layout parameter init + pure-JAX reference for the correctness check.
# ----------------------------------------------------------------------------
def init_params(key, in_channels, output_dim, feature_size):
    ks = jax.random.split(key, 10)

    def u(k, shape, fan_in):
        bound = 1.0 / jnp.sqrt(fan_in)
        return jax.random.uniform(k, shape, jnp.float32, -bound, bound)

    p = {}
    p["conv1_w"] = u(ks[0], (32, in_channels, 8, 8), in_channels * 64)
    p["conv1_b"] = u(ks[1], (32,), in_channels * 64)
    p["conv2_w"] = u(ks[2], (64, 32, 4, 4), 32 * 16)
    p["conv2_b"] = u(ks[3], (64,), 32 * 16)
    p["conv3_w"] = u(ks[4], (64, 64, 3, 3), 64 * 9)
    p["conv3_b"] = u(ks[5], (64,), 64 * 9)
    p["fc1_w"] = u(ks[6], (feature_size, 512), feature_size)
    p["fc1_b"] = u(ks[7], (1, 512), feature_size)
    p["fc2_w"] = u(ks[8], (512, output_dim), 512)
    p["fc2_b"] = u(ks[9], (1, output_dim), 512)
    return p


def reference_forward(x, params):
    x = x.astype(jnp.float32) / 255.0

    def conv(x, w, b, s):
        y = lax.conv_general_dilated(x, w, (s, s), "VALID",
                                     dimension_numbers=("NCHW", "OIHW", "NCHW"))
        return jnp.maximum(y + b[None, :, None, None], 0.0)

    x = conv(x, params["conv1_w"], params["conv1_b"], 4)
    x = conv(x, params["conv2_w"], params["conv2_b"], 2)
    x = conv(x, params["conv3_w"], params["conv3_b"], 1)
    feat = x.reshape(x.shape[0], -1)
    h = jnp.maximum(feat @ params["fc1_w"] + params["fc1_b"], 0.0)
    return h @ params["fc2_w"] + params["fc2_b"]


if __name__ == "__main__":
    # input_dim = (H, W, C) = (36, 36, 4), output_dim = 6, batch = 2.
    # Conv spatial: 36 -> 8 (k8,s4) -> 3 (k4,s2) -> 1 (k3,s1) => feature_size = 64.
    H, W, C = 36, 36, 4
    output_dim = 6
    batch = 2
    feature_size = 64 * 1 * 1

    key = jax.random.PRNGKey(0)
    k_x, k_p = jax.random.split(key)
    x = jax.random.uniform(k_x, (batch, C, H, W), jnp.float32, 0.0, 255.0)
    params = init_params(k_p, C, output_dim, feature_size)
    prep = prepare_params(params, (H, W), output_dim)

    out_pad = jax.block_until_ready(qnetwork_forward_padded(x, prep))
    out = out_pad[:, :output_dim]          # consumer-side slice of padded block
    assert out.shape == (batch, output_dim), out.shape

    ref = jax.block_until_ready(reference_forward(x, params))
    # bf16 MXU operands (f32 accumulation) => slightly looser tolerance than f32.
    max_err = jnp.max(jnp.abs(out - ref))
    assert jnp.allclose(out, ref, rtol=3e-2, atol=3e-2), max_err

    print("KERNEL_OK")
</pallas_src>

<mosaic_0001>
module attributes {stable_mosaic.version = 11 : i64} {
  func.func @kernel(%arg0: i32, %arg1: memref<128x256xbf16, #tpu.memory_space<vmem>>, %arg2: memref<256x32xbf16, #tpu.memory_space<vmem>>, %arg3: memref<1x32xf32, #tpu.memory_space<vmem>>, %arg4: memref<512x64xbf16, #tpu.memory_space<vmem>>, %arg5: memref<1x64xf32, #tpu.memory_space<vmem>>, %arg6: memref<9x64x64xbf16, #tpu.memory_space<vmem>>, %arg7: memref<1x64xf32, #tpu.memory_space<vmem>>, %arg8: memref<64x512xbf16, #tpu.memory_space<vmem>>, %arg9: memref<1x512xf32, #tpu.memory_space<vmem>>, %arg10: memref<512x128xbf16, #tpu.memory_space<vmem>>, %arg11: memref<1x128xf32, #tpu.memory_space<vmem>>, %arg12: memref<2x128xf32, #tpu.memory_space<vmem>>, %arg13: memref<2x8x256xf32, #tpu.memory_space<vmem>>, %arg14: memref<9x2x512xf32, #tpu.memory_space<vmem>>, %arg15: memref<18x64xf32, #tpu.memory_space<vmem>>) attributes {dimension_semantics = [#tpu.dimension_semantics<arbitrary>], iteration_bounds = array<i64: 1>, scalar_prefetch = 0 : i64, scratch_operands = 3 : i64, tpu.core_type = #tpu.core_type<tc>, window_params = [{pipeline_mode = #tpu.pipeline_mode<synchronous>, transform_indices = @transform_0, window_bounds = array<i64: 128, 256>}, {pipeline_mode = #tpu.pipeline_mode<synchronous>, transform_indices = @transform_1, window_bounds = array<i64: 256, 32>}, {pipeline_mode = #tpu.pipeline_mode<synchronous>, transform_indices = @transform_2, window_bounds = array<i64: 1, 32>}, {pipeline_mode = #tpu.pipeline_mode<synchronous>, transform_indices = @transform_3, window_bounds = array<i64: 512, 64>}, {pipeline_mode = #tpu.pipeline_mode<synchronous>, transform_indices = @transform_4, window_bounds = array<i64: 1, 64>}, {pipeline_mode = #tpu.pipeline_mode<synchronous>, transform_indices = @transform_5, window_bounds = array<i64: 9, 64, 64>}, {pipeline_mode = #tpu.pipeline_mode<synchronous>, transform_indices = @transform_6, window_bounds = array<i64: 1, 64>}, {pipeline_mode = #tpu.pipeline_mode<synchronous>, transform_indices = @transform_7, window_bounds = array<i64: 64, 512>}, {pipeline_mode = #tpu.pipeline_mode<synchronous>, transform_indices = @transform_8, window_bounds = array<i64: 1, 512>}, {pipeline_mode = #tpu.pipeline_mode<synchronous>, transform_indices = @transform_9, window_bounds = array<i64: 512, 128>}, {pipeline_mode = #tpu.pipeline_mode<synchronous>, transform_indices = @transform_10, window_bounds = array<i64: 1, 128>}, {pipeline_mode = #tpu.pipeline_mode<synchronous>, transform_indices = @transform_11, window_bounds = array<i64: 2, 128>}]} {
    %c0 = arith.constant 0 : index
    %c0_0 = arith.constant 0 : index
    %0 = vector.load %arg1[%c0, %c0_0] : memref<128x256xbf16, #tpu.memory_space<vmem>>, vector<128x256xbf16>
    %c0_1 = arith.constant 0 : index
    %c0_2 = arith.constant 0 : index
    %1 = vector.load %arg2[%c0_1, %c0_2] : memref<256x32xbf16, #tpu.memory_space<vmem>>, vector<256x32xbf16>
    %cst = arith.constant dense<0.000000e+00> : vector<128x32xf32>
    %2 = tpu.matmul %0, %1, %cst {dimension_numbers = #tpu.dot_dimension_numbers<[1], [0], [0], [1], [0, 0, 1, 1], [], []>} : vector<128x256xbf16>, vector<256x32xbf16>, vector<128x32xf32> -> vector<128x32xf32>
    %c0_3 = arith.constant 0 : index
    %c0_4 = arith.constant 0 : index
    %3 = vector.load %arg3[%c0_3, %c0_4] : memref<1x32xf32, #tpu.memory_space<vmem>>, vector<1x32xf32>
    %4 = vector.broadcast %3 : vector<1x32xf32> to vector<128x32xf32>
    %5 = arith.addf %2, %4 : vector<128x32xf32>
    %cst_5 = arith.constant 0.000000e+00 : f32
    %6 = vector.broadcast %cst_5 : f32 to vector<128x32xf32>
    %7 = arith.maximumf %5, %6 : vector<128x32xf32>
    %8 = vector.extract_strided_slice %7 {offsets = [0, 0], sizes = [16, 32], strides = [1, 1]} : vector<128x32xf32> to vector<16x32xf32>
    %9 = vector.shape_cast %8 : vector<16x32xf32> to vector<2x8x32xf32>
    %c0_6 = arith.constant 0 : index
    %c0_7 = arith.constant 0 : index
    %c0_8 = arith.constant 0 : index
    %10 = vector.load %arg13[%c0_6, %c0_7, %c0_8] : memref<2x8x256xf32, #tpu.memory_space<vmem>>, vector<2x8x32xf32>
    tpu.vector_store %arg13[%c0_6, %c0_7, %c0_8], %9 {strides = array<i32>} : memref<2x8x256xf32, #tpu.memory_space<vmem>>, vector<2x8x32xf32>,
    %11 = vector.extract_strided_slice %7 {offsets = [16, 0], sizes = [16, 32], strides = [1, 1]} : vector<128x32xf32> to vector<16x32xf32>
    %12 = vector.shape_cast %11 : vector<16x32xf32> to vector<2x8x32xf32>
    %c0_9 = arith.constant 0 : index
    %c0_10 = arith.constant 0 : index
    %c32 = arith.constant 32 : index
    %13 = vector.load %arg13[%c0_9, %c0_10, %c32] : memref<2x8x256xf32, #tpu.memory_space<vmem>>, vector<2x8x32xf32>
    tpu.vector_store %arg13[%c0_9, %c0_10, %c32], %12 {strides = array<i32>} : memref<2x8x256xf32, #tpu.memory_space<vmem>>, vector<2x8x32xf32>,
    %14 = vector.extract_strided_slice %7 {offsets = [32, 0], sizes = [16, 32], strides = [1, 1]} : vector<128x32xf32> to vector<16x32xf32>
    %15 = vector.shape_cast %14 : vector<16x32xf32> to vector<2x8x32xf32>
    %c0_11 = arith.constant 0 : index
    %c0_12 = arith.constant 0 : index
    %c64 = arith.constant 64 : index
    %16 = vector.load %arg13[%c0_11, %c0_12, %c64] : memref<2x8x256xf32, #tpu.memory_space<vmem>>, vector<2x8x32xf32>
    tpu.vector_store %arg13[%c0_11, %c0_12, %c64], %15 {strides = array<i32>} : memref<2x8x256xf32, #tpu.memory_space<vmem>>, vector<2x8x32xf32>,
    %17 = vector.extract_strided_slice %7 {offsets = [48, 0], sizes = [16, 32], strides = [1, 1]} : vector<128x32xf32> to vector<16x32xf32>
    %18 = vector.shape_cast %17 : vector<16x32xf32> to vector<2x8x32xf32>
    %c0_13 = arith.constant 0 : index
    %c0_14 = arith.constant 0 : index
    %c96 = arith.constant 96 : index
    %19 = vector.load %arg13[%c0_13, %c0_14, %c96] : memref<2x8x256xf32, #tpu.memory_space<vmem>>, vector<2x8x32xf32>
    tpu.vector_store %arg13[%c0_13, %c0_14, %c96], %18 {strides = array<i32>} : memref<2x8x256xf32, #tpu.memory_space<vmem>>, vector<2x8x32xf32>,
    %20 = vector.extract_strided_slice %7 {offsets = [64, 0], sizes = [16, 32], strides = [1, 1]} : vector<128x32xf32> to vector<16x32xf32>
    %21 = vector.shape_cast %20 : vector<16x32xf32> to vector<2x8x32xf32>
    %c0_15 = arith.constant 0 : index
    %c0_16 = arith.constant 0 : index
    %c128 = arith.constant 128 : index
    %22 = vector.load %arg13[%c0_15, %c0_16, %c128] : memref<2x8x256xf32, #tpu.memory_space<vmem>>, vector<2x8x32xf32>
    tpu.vector_store %arg13[%c0_15, %c0_16, %c128], %21 {strides = array<i32>} : memref<2x8x256xf32, #tpu.memory_space<vmem>>, vector<2x8x32xf32>,
    %23 = vector.extract_strided_slice %7 {offsets = [80, 0], sizes = [16, 32], strides = [1, 1]} : vector<128x32xf32> to vector<16x32xf32>
    %24 = vector.shape_cast %23 : vector<16x32xf32> to vector<2x8x32xf32>
    %c0_17 = arith.constant 0 : index
    %c0_18 = arith.constant 0 : index
    %c160 = arith.constant 160 : index
    %25 = vector.load %arg13[%c0_17, %c0_18, %c160] : memref<2x8x256xf32, #tpu.memory_space<vmem>>, vector<2x8x32xf32>
    tpu.vector_store %arg13[%c0_17, %c0_18, %c160], %24 {strides = array<i32>} : memref<2x8x256xf32, #tpu.memory_space<vmem>>, vector<2x8x32xf32>,
    %26 = vector.extract_strided_slice %7 {offsets = [96, 0], sizes = [16, 32], strides = [1, 1]} : vector<128x32xf32> to vector<16x32xf32>
    %27 = vector.shape_cast %26 : vector<16x32xf32> to vector<2x8x32xf32>
    %c0_19 = arith.constant 0 : index
    %c0_20 = arith.constant 0 : index
    %c192 = arith.constant 192 : index
    %28 = vector.load %arg13[%c0_19, %c0_20, %c192] : memref<2x8x256xf32, #tpu.memory_space<vmem>>, vector<2x8x32xf32>
    tpu.vector_store %arg13[%c0_19, %c0_20, %c192], %27 {strides = array<i32>} : memref<2x8x256xf32, #tpu.memory_space<vmem>>, vector<2x8x32xf32>,
    %29 = vector.extract_strided_slice %7 {offsets = [112, 0], sizes = [16, 32], strides = [1, 1]} : vector<128x32xf32> to vector<16x32xf32>
    %30 = vector.shape_cast %29 : vector<16x32xf32> to vector<2x8x32xf32>
    %c0_21 = arith.constant 0 : index
    %c0_22 = arith.constant 0 : index
    %c224 = arith.constant 224 : index
    %31 = vector.load %arg13[%c0_21, %c0_22, %c224] : memref<2x8x256xf32, #tpu.memory_space<vmem>>, vector<2x8x32xf32>
    tpu.vector_store %arg13[%c0_21, %c0_22, %c224], %30 {strides = array<i32>} : memref<2x8x256xf32, #tpu.memory_space<vmem>>, vector<2x8x32xf32>,
    %c0_23 = arith.constant 0 : index
    %c0_24 = arith.constant 0 : index
    %c0_25 = arith.constant 0 : index
    %32 = vector.load %arg13[%c0_23, %c0_24, %c0_25] : memref<2x8x256xf32, #tpu.memory_space<vmem>>, vector<2x1x128xf32>
    %33 = vector.shape_cast %32 : vector<2x1x128xf32> to vector<2x128xf32>
    %c0_26 = arith.constant 0 : index
    %c0_27 = arith.constant 0 : index
    %c0_28 = arith.constant 0 : index
    %34 = vector.load %arg14[%c0_26, %c0_27, %c0_28] : memref<9x2x512xf32, #tpu.memory_space<vmem>>, vector<1x2x128xf32>
    %35 = vector.shape_cast %34 : vector<1x2x128xf32> to vector<2x128xf32>
    %36 = vector.shape_cast %33 : vector<2x128xf32> to vector<1x2x128xf32>
    tpu.vector_store %arg14[%c0_26, %c0_27, %c0_28], %36 {strides = array<i32>} : memref<9x2x512xf32, #tpu.memory_space<vmem>>, vector<1x2x128xf32>,
    %c0_29 = arith.constant 0 : index
    %c1 = arith.constant 1 : index
    %c0_30 = arith.constant 0 : index
    %37 = vector.load %arg13[%c0_29, %c1, %c0_30] : memref<2x8x256xf32, #tpu.memory_space<vmem>>, vector<2x1x128xf32>
    %38 = vector.shape_cast %37 : vector<2x1x128xf32> to vector<2x128xf32>
    %c0_31 = arith.constant 0 : index
    %c0_32 = arith.constant 0 : index
    %c128_33 = arith.constant 128 : index
    %39 = vector.load %arg14[%c0_31, %c0_32, %c128_33] : memref<9x2x512xf32, #tpu.memory_space<vmem>>, vector<1x2x128xf32>
    %40 = vector.shape_cast %39 : vector<1x2x128xf32> to vector<2x128xf32>
    %41 = vector.shape_cast %38 : vector<2x128xf32> to vector<1x2x128xf32>
    tpu.vector_store %arg14[%c0_31, %c0_32, %c128_33], %41 {strides = array<i32>} : memref<9x2x512xf32, #tpu.memory_space<vmem>>, vector<1x2x128xf32>,
    %c0_34 = arith.constant 0 : index
    %c2 = arith.constant 2 : index
    %c0_35 = arith.constant 0 : index
    %42 = vector.load %arg13[%c0_34, %c2, %c0_35] : memref<2x8x256xf32, #tpu.memory_space<vmem>>, vector<2x1x128xf32>
    %43 = vector.shape_cast %42 : vector<2x1x128xf32> to vector<2x128xf32>
    %c0_36 = arith.constant 0 : index
    %c0_37 = arith.constant 0 : index
    %c256 = arith.constant 256 : index
    %44 = vector.load %arg14[%c0_36, %c0_37, %c256] : memref<9x2x512xf32, #tpu.memory_space<vmem>>, vector<1x2x128xf32>
    %45 = vector.shape_cast %44 : vector<1x2x128xf32> to vector<2x128xf32>
    %46 = vector.shape_cast %43 : vector<2x128xf32> to vector<1x2x128xf32>
    tpu.vector_store %arg14[%c0_36, %c0_37, %c256], %46 {strides = array<i32>} : memref<9x2x512xf32, #tpu.memory_space<vmem>>, vector<1x2x128xf32>,
    %c0_38 = arith.constant 0 : index
    %c3 = arith.constant 3 : index
    %c0_39 = arith.constant 0 : index
    %47 = vector.load %arg13[%c0_38, %c3, %c0_39] : memref<2x8x256xf32, #tpu.memory_space<vmem>>, vector<2x1x128xf32>
    %48 = vector.shape_cast %47 : vector<2x1x128xf32> to vector<2x128xf32>
    %c0_40 = arith.constant 0 : index
    %c0_41 = arith.constant 0 : index
    %c384 = arith.constant 384 : index
    %49 = vector.load %arg14[%c0_40, %c0_41, %c384] : memref<9x2x512xf32, #tpu.memory_space<vmem>>, vector<1x2x128xf32>
    %50 = vector.shape_cast %49 : vector<1x2x128xf32> to vector<2x128xf32>
    %51 = vector.shape_cast %48 : vector<2x128xf32> to vector<1x2x128xf32>
    tpu.vector_store %arg14[%c0_40, %c0_41, %c384], %51 {strides = array<i32>} : memref<9x2x512xf32, #tpu.memory_space<vmem>>, vector<1x2x128xf32>,
    %c0_42 = arith.constant 0 : index
    %c0_43 = arith.constant 0 : index
    %c64_44 = arith.constant 64 : index
    %52 = vector.load %arg13[%c0_42, %c0_43, %c64_44] : memref<2x8x256xf32, #tpu.memory_space<vmem>>, vector<2x1x128xf32>
    %53 = vector.shape_cast %52 : vector<2x1x128xf32> to vector<2x128xf32>
    %c1_45 = arith.constant 1 : index
    %c0_46 = arith.constant 0 : index
    %c0_47 = arith.constant 0 : index
    %54 = vector.load %arg14[%c1_45, %c0_46, %c0_47] : memref<9x2x512xf32, #tpu.memory_space<vmem>>, vector<1x2x128xf32>
    %55 = vector.shape_cast %54 : vector<1x2x128xf32> to vector<2x128xf32>
    %56 = vector.shape_cast %53 : vector<2x128xf32> to vector<1x2x128xf32>
    tpu.vector_store %arg14[%c1_45, %c0_46, %c0_47], %56 {strides = array<i32>} : memref<9x2x512xf32, #tpu.memory_space<vmem>>, vector<1x2x128xf32>,
    %c0_48 = arith.constant 0 : index
    %c1_49 = arith.constant 1 : index
    %c64_50 = arith.constant 64 : index
    %57 = vector.load %arg13[%c0_48, %c1_49, %c64_50] : memref<2x8x256xf32, #tpu.memory_space<vmem>>, vector<2x1x128xf32>
    %58 = vector.shape_cast %57 : vector<2x1x128xf32> to vector<2x128xf32>
    %c1_51 = arith.constant 1 : index
    %c0_52 = arith.constant 0 : index
    %c128_53 = arith.constant 128 : index
    %59 = vector.load %arg14[%c1_51, %c0_52, %c128_53] : memref<9x2x512xf32, #tpu.memory_space<vmem>>, vector<1x2x128xf32>
    %60 = vector.shape_cast %59 : vector<1x2x128xf32> to vector<2x128xf32>
    %61 = vector.shape_cast %58 : vector<2x128xf32> to vector<1x2x128xf32>
    tpu.vector_store %arg14[%c1_51, %c0_52, %c128_53], %61 {strides = array<i32>} : memref<9x2x512xf32, #tpu.memory_space<vmem>>, vector<1x2x128xf32>,
    %c0_54 = arith.constant 0 : index
    %c2_55 = arith.constant 2 : index
    %c64_56 = arith.constant 64 : index
    %62 = vector.load %arg13[%c0_54, %c2_55, %c64_56] : memref<2x8x256xf32, #tpu.memory_space<vmem>>, vector<2x1x128xf32>
    %63 = vector.shape_cast %62 : vector<2x1x128xf32> to vector<2x128xf32>
    %c1_57 = arith.constant 1 : index
    %c0_58 = arith.constant 0 : index
    %c256_59 = arith.constant 256 : index
    %64 = vector.load %arg14[%c1_57, %c0_58, %c256_59] : memref<9x2x512xf32, #tpu.memory_space<vmem>>, vector<1x2x128xf32>
    %65 = vector.shape_cast %64 : vector<1x2x128xf32> to vector<2x128xf32>
    %66 = vector.shape_cast %63 : vector<2x128xf32> to vector<1x2x128xf32>
    tpu.vector_store %arg14[%c1_57, %c0_58, %c256_59], %66 {strides = array<i32>} : memref<9x2x512xf32, #tpu.memory_space<vmem>>, vector<1x2x128xf32>,
    %c0_60 = arith.constant 0 : index
    %c3_61 = arith.constant 3 : index
    %c64_62 = arith.constant 64 : index
    %67 = vector.load %arg13[%c0_60, %c3_61, %c64_62] : memref<2x8x256xf32, #tpu.memory_space<vmem>>, vector<2x1x128xf32>
    %68 = vector.shape_cast %67 : vector<2x1x128xf32> to vector<2x128xf32>
    %c1_63 = arith.constant 1 : index
    %c0_64 = arith.constant 0 : index
    %c384_65 = arith.constant 384 : index
    %69 = vector.load %arg14[%c1_63, %c0_64, %c384_65] : memref<9x2x512xf32, #tpu.memory_space<vmem>>, vector<1x2x128xf32>
    %70 = vector.shape_cast %69 : vector<1x2x128xf32> to vector<2x128xf32>
    %71 = vector.shape_cast %68 : vector<2x128xf32> to vector<1x2x128xf32>
    tpu.vector_store %arg14[%c1_63, %c0_64, %c384_65], %71 {strides = array<i32>} : memref<9x2x512xf32, #tpu.memory_space<vmem>>, vector<1x2x128xf32>,
    %c0_66 = arith.constant 0 : index
    %c0_67 = arith.constant 0 : index
    %c128_68 = arith.constant 128 : index
    %72 = vector.load %arg13[%c0_66, %c0_67, %c128_68] : memref<2x8x256xf32, #tpu.memory_space<vmem>>, vector<2x1x128xf32>
    %73 = vector.shape_cast %72 : vector<2x1x128xf32> to vector<2x128xf32>
    %c2_69 = arith.constant 2 : index
    %c0_70 = arith.constant 0 : index
    %c0_71 = arith.constant 0 : index
    %74 = vector.load %arg14[%c2_69, %c0_70, %c0_71] : memref<9x2x512xf32, #tpu.memory_space<vmem>>, vector<1x2x128xf32>
    %75 = vector.shape_cast %74 : vector<1x2x128xf32> to vector<2x128xf32>
    %76 = vector.shape_cast %73 : vector<2x128xf32> to vector<1x2x128xf32>
    tpu.vector_store %arg14[%c2_69, %c0_70, %c0_71], %76 {strides = array<i32>} : memref<9x2x512xf32, #tpu.memory_space<vmem>>, vector<1x2x128xf32>,
    %c0_72 = arith.constant 0 : index
    %c1_73 = arith.constant 1 : index
    %c128_74 = arith.constant 128 : index
    %77 = vector.load %arg13[%c0_72, %c1_73, %c128_74] : memref<2x8x256xf32, #tpu.memory_space<vmem>>, vector<2x1x128xf32>
    %78 = vector.shape_cast %77 : vector<2x1x128xf32> to vector<2x128xf32>
    %c2_75 = arith.constant 2 : index
    %c0_76 = arith.constant 0 : index
    %c128_77 = arith.constant 128 : index
    %79 = vector.load %arg14[%c2_75, %c0_76, %c128_77] : memref<9x2x512xf32, #tpu.memory_space<vmem>>, vector<1x2x128xf32>
    %80 = vector.shape_cast %79 : vector<1x2x128xf32> to vector<2x128xf32>
    %81 = vector.shape_cast %78 : vector<2x128xf32> to vector<1x2x128xf32>
    tpu.vector_store %arg14[%c2_75, %c0_76, %c128_77], %81 {strides = array<i32>} : memref<9x2x512xf32, #tpu.memory_space<vmem>>, vector<1x2x128xf32>,
    %c0_78 = arith.constant 0 : index
    %c2_79 = arith.constant 2 : index
    %c128_80 = arith.constant 128 : index
    %82 = vector.load %arg13[%c0_78, %c2_79, %c128_80] : memref<2x8x256xf32, #tpu.memory_space<vmem>>, vector<2x1x128xf32>
    %83 = vector.shape_cast %82 : vector<2x1x128xf32> to vector<2x128xf32>
    %c2_81 = arith.constant 2 : index
    %c0_82 = arith.constant 0 : index
    %c256_83 = arith.constant 256 : index
    %84 = vector.load %arg14[%c2_81, %c0_82, %c256_83] : memref<9x2x512xf32, #tpu.memory_space<vmem>>, vector<1x2x128xf32>
    %85 = vector.shape_cast %84 : vector<1x2x128xf32> to vector<2x128xf32>
    %86 = vector.shape_cast %83 : vector<2x128xf32> to vector<1x2x128xf32>
    tpu.vector_store %arg14[%c2_81, %c0_82, %c256_83], %86 {strides = array<i32>} : memref<9x2x512xf32, #tpu.memory_space<vmem>>, vector<1x2x128xf32>,
    %c0_84 = arith.constant 0 : index
    %c3_85 = arith.constant 3 : index
    %c128_86 = arith.constant 128 : index
    %87 = vector.load %arg13[%c0_84, %c3_85, %c128_86] : memref<2x8x256xf32, #tpu.memory_space<vmem>>, vector<2x1x128xf32>
    %88 = vector.shape_cast %87 : vector<2x1x128xf32> to vector<2x128xf32>
    %c2_87 = arith.constant 2 : index
    %c0_88 = arith.constant 0 : index
    %c384_89 = arith.constant 384 : index
    %89 = vector.load %arg14[%c2_87, %c0_88, %c384_89] : memref<9x2x512xf32, #tpu.memory_space<vmem>>, vector<1x2x128xf32>
    %90 = vector.shape_cast %89 : vector<1x2x128xf32> to vector<2x128xf32>
    %91 = vector.shape_cast %88 : vector<2x128xf32> to vector<1x2x128xf32>
    tpu.vector_store %arg14[%c2_87, %c0_88, %c384_89], %91 {strides = array<i32>} : memref<9x2x512xf32, #tpu.memory_space<vmem>>, vector<1x2x128xf32>,
    %c0_90 = arith.constant 0 : index
    %c2_91 = arith.constant 2 : index
    %c0_92 = arith.constant 0 : index
    %92 = vector.load %arg13[%c0_90, %c2_91, %c0_92] : memref<2x8x256xf32, #tpu.memory_space<vmem>>, vector<2x1x128xf32>
    %93 = vector.shape_cast %92 : vector<2x1x128xf32> to vector<2x128xf32>
    %c3_93 = arith.constant 3 : index
    %c0_94 = arith.constant 0 : index
    %c0_95 = arith.constant 0 : index
    %94 = vector.load %arg14[%c3_93, %c0_94, %c0_95] : memref<9x2x512xf32, #tpu.memory_space<vmem>>, vector<1x2x128xf32>
    %95 = vector.shape_cast %94 : vector<1x2x128xf32> to vector<2x128xf32>
    %96 = vector.shape_cast %93 : vector<2x128xf32> to vector<1x2x128xf32>
    tpu.vector_store %arg14[%c3_93, %c0_94, %c0_95], %96 {strides = array<i32>} : memref<9x2x512xf32, #tpu.memory_space<vmem>>, vector<1x2x128xf32>,
    %c0_96 = arith.constant 0 : index
    %c3_97 = arith.constant 3 : index
    %c0_98 = arith.constant 0 : index
    %97 = vector.load %arg13[%c0_96, %c3_97, %c0_98] : memref<2x8x256xf32, #tpu.memory_space<vmem>>, vector<2x1x128xf32>
    %98 = vector.shape_cast %97 : vector<2x1x128xf32> to vector<2x128xf32>
    %c3_99 = arith.constant 3 : index
    %c0_100 = arith.constant 0 : index
    %c128_101 = arith.constant 128 : index
    %99 = vector.load %arg14[%c3_99, %c0_100, %c128_101] : memref<9x2x512xf32, #tpu.memory_space<vmem>>, vector<1x2x128xf32>
    %100 = vector.shape_cast %99 : vector<1x2x128xf32> to vector<2x128xf32>
    %101 = vector.shape_cast %98 : vector<2x128xf32> to vector<1x2x128xf32>
    tpu.vector_store %arg14[%c3_99, %c0_100, %c128_101], %101 {strides = array<i32>} : memref<9x2x512xf32, #tpu.memory_space<vmem>>, vector<1x2x128xf32>,
    %c0_102 = arith.constant 0 : index
    %c4 = arith.constant 4 : index
    %c0_103 = arith.constant 0 : index
    %102 = vector.load %arg13[%c0_102, %c4, %c0_103] : memref<2x8x256xf32, #tpu.memory_space<vmem>>, vector<2x1x128xf32>
    %103 = vector.shape_cast %102 : vector<2x1x128xf32> to vector<2x128xf32>
    %c3_104 = arith.constant 3 : index
    %c0_105 = arith.constant 0 : index
    %c256_106 = arith.constant 256 : index
    %104 = vector.load %arg14[%c3_104, %c0_105, %c256_106] : memref<9x2x512xf32, #tpu.memory_space<vmem>>, vector<1x2x128xf32>
    %105 = vector.shape_cast %104 : vector<1x2x128xf32> to vector<2x128xf32>
    %106 = vector.shape_cast %103 : vector<2x128xf32> to vector<1x2x128xf32>
    tpu.vector_store %arg14[%c3_104, %c0_105, %c256_106], %106 {strides = array<i32>} : memref<9x2x512xf32, #tpu.memory_space<vmem>>, vector<1x2x128xf32>,
    %c0_107 = arith.constant 0 : index
    %c5 = arith.constant 5 : index
    %c0_108 = arith.constant 0 : index
    %107 = vector.load %arg13[%c0_107, %c5, %c0_108] : memref<2x8x256xf32, #tpu.memory_space<vmem>>, vector<2x1x128xf32>
    %108 = vector.shape_cast %107 : vector<2x1x128xf32> to vector<2x128xf32>
    %c3_109 = arith.constant 3 : index
    %c0_110 = arith.constant 0 : index
    %c384_111 = arith.constant 384 : index
    %109 = vector.load %arg14[%c3_109, %c0_110, %c384_111] : memref<9x2x512xf32, #tpu.memory_space<vmem>>, vector<1x2x128xf32>
    %110 = vector.shape_cast %109 : vector<1x2x128xf32> to vector<2x128xf32>
    %111 = vector.shape_cast %108 : vector<2x128xf32> to vector<1x2x128xf32>
    tpu.vector_store %arg14[%c3_109, %c0_110, %c384_111], %111 {strides = array<i32>} : memref<9x2x512xf32, #tpu.memory_space<vmem>>, vector<1x2x128xf32>,
    %c0_112 = arith.constant 0 : index
    %c2_113 = arith.constant 2 : index
    %c64_114 = arith.constant 64 : index
    %112 = vector.load %arg13[%c0_112, %c2_113, %c64_114] : memref<2x8x256xf32, #tpu.memory_space<vmem>>, vector<2x1x128xf32>
    %113 = vector.shape_cast %112 : vector<2x1x128xf32> to vector<2x128xf32>
    %c4_115 = arith.constant 4 : index
    %c0_116 = arith.constant 0 : index
    %c0_117 = arith.constant 0 : index
    %114 = vector.load %arg14[%c4_115, %c0_116, %c0_117] : memref<9x2x512xf32, #tpu.memory_space<vmem>>, vector<1x2x128xf32>
    %115 = vector.shape_cast %114 : vector<1x2x128xf32> to vector<2x128xf32>
    %116 = vector.shape_cast %113 : vector<2x128xf32> to vector<1x2x128xf32>
    tpu.vector_store %arg14[%c4_115, %c0_116, %c0_117], %116 {strides = array<i32>} : memref<9x2x512xf32, #tpu.memory_space<vmem>>, vector<1x2x128xf32>,
    %c0_118 = arith.constant 0 : index
    %c3_119 = arith.constant 3 : index
    %c64_120 = arith.constant 64 : index
    %117 = vector.load %arg13[%c0_118, %c3_119, %c64_120] : memref<2x8x256xf32, #tpu.memory_space<vmem>>, vector<2x1x128xf32>
    %118 = vector.shape_cast %117 : vector<2x1x128xf32> to vector<2x128xf32>
    %c4_121 = arith.constant 4 : index
    %c0_122 = arith.constant 0 : index
    %c128_123 = arith.constant 128 : index
    %119 = vector.load %arg14[%c4_121, %c0_122, %c128_123] : memref<9x2x512xf32, #tpu.memory_space<vmem>>, vector<1x2x128xf32>
    %120 = vector.shape_cast %119 : vector<1x2x128xf32> to vector<2x128xf32>
    %121 = vector.shape_cast %118 : vector<2x128xf32> to vector<1x2x128xf32>
    tpu.vector_store %arg14[%c4_121, %c0_122, %c128_123], %121 {strides = array<i32>} : memref<9x2x512xf32, #tpu.memory_space<vmem>>, vector<1x2x128xf32>,
    %c0_124 = arith.constant 0 : index
    %c4_125 = arith.constant 4 : index
    %c64_126 = arith.constant 64 : index
    %122 = vector.load %arg13[%c0_124, %c4_125, %c64_126] : memref<2x8x256xf32, #tpu.memory_space<vmem>>, vector<2x1x128xf32>
    %123 = vector.shape_cast %122 : vector<2x1x128xf32> to vector<2x128xf32>
    %c4_127 = arith.constant 4 : index
    %c0_128 = arith.constant 0 : index
    %c256_129 = arith.constant 256 : index
    %124 = vector.load %arg14[%c4_127, %c0_128, %c256_129] : memref<9x2x512xf32, #tpu.memory_space<vmem>>, vector<1x2x128xf32>
    %125 = vector.shape_cast %124 : vector<1x2x128xf32> to vector<2x128xf32>
    %126 = vector.shape_cast %123 : vector<2x128xf32> to vector<1x2x128xf32>
    tpu.vector_store %arg14[%c4_127, %c0_128, %c256_129], %126 {strides = array<i32>} : memref<9x2x512xf32, #tpu.memory_space<vmem>>, vector<1x2x128xf32>,
    %c0_130 = arith.constant 0 : index
    %c5_131 = arith.constant 5 : index
    %c64_132 = arith.constant 64 : index
    %127 = vector.load %arg13[%c0_130, %c5_131, %c64_132] : memref<2x8x256xf32, #tpu.memory_space<vmem>>, vector<2x1x128xf32>
    %128 = vector.shape_cast %127 : vector<2x1x128xf32> to vector<2x128xf32>
    %c4_133 = arith.constant 4 : index
    %c0_134 = arith.constant 0 : index
    %c384_135 = arith.constant 384 : index
    %129 = vector.load %arg14[%c4_133, %c0_134, %c384_135] : memref<9x2x512xf32, #tpu.memory_space<vmem>>, vector<1x2x128xf32>
    %130 = vector.shape_cast %129 : vector<1x2x128xf32> to vector<2x128xf32>
    %131 = vector.shape_cast %128 : vector<2x128xf32> to vector<1x2x128xf32>
    tpu.vector_store %arg14[%c4_133, %c0_134, %c384_135], %131 {strides = array<i32>} : memref<9x2x512xf32, #tpu.memory_space<vmem>>, vector<1x2x128xf32>,
    %c0_136 = arith.constant 0 : index
    %c2_137 = arith.constant 2 : index
    %c128_138 = arith.constant 128 : index
    %132 = vector.load %arg13[%c0_136, %c2_137, %c128_138] : memref<2x8x256xf32, #tpu.memory_space<vmem>>, vector<2x1x128xf32>
    %133 = vector.shape_cast %132 : vector<2x1x128xf32> to vector<2x128xf32>
    %c5_139 = arith.constant 5 : index
    %c0_140 = arith.constant 0 : index
    %c0_141 = arith.constant 0 : index
    %134 = vector.load %arg14[%c5_139, %c0_140, %c0_141] : memref<9x2x512xf32, #tpu.memory_space<vmem>>, vector<1x2x128xf32>
    %135 = vector.shape_cast %134 : vector<1x2x128xf32> to vector<2x128xf32>
    %136 = vector.shape_cast %133 : vector<2x128xf32> to vector<1x2x128xf32>
    tpu.vector_store %arg14[%c5_139, %c0_140, %c0_141], %136 {strides = array<i32>} : memref<9x2x512xf32, #tpu.memory_space<vmem>>, vector<1x2x128xf32>,
    %c0_142 = arith.constant 0 : index
    %c3_143 = arith.constant 3 : index
    %c128_144 = arith.constant 128 : index
    %137 = vector.load %arg13[%c0_142, %c3_143, %c128_144] : memref<2x8x256xf32, #tpu.memory_space<vmem>>, vector<2x1x128xf32>
    %138 = vector.shape_cast %137 : vector<2x1x128xf32> to vector<2x128xf32>
    %c5_145 = arith.constant 5 : index
    %c0_146 = arith.constant 0 : index
    %c128_147 = arith.constant 128 : index
    %139 = vector.load %arg14[%c5_145, %c0_146, %c128_147] : memref<9x2x512xf32, #tpu.memory_space<vmem>>, vector<1x2x128xf32>
    %140 = vector.shape_cast %139 : vector<1x2x128xf32> to vector<2x128xf32>
    %141 = vector.shape_cast %138 : vector<2x128xf32> to vector<1x2x128xf32>
    tpu.vector_store %arg14[%c5_145, %c0_146, %c128_147], %141 {strides = array<i32>} : memref<9x2x512xf32, #tpu.memory_space<vmem>>, vector<1x2x128xf32>,
    %c0_148 = arith.constant 0 : index
    %c4_149 = arith.constant 4 : index
    %c128_150 = arith.constant 128 : index
    %142 = vector.load %arg13[%c0_148, %c4_149, %c128_150] : memref<2x8x256xf32, #tpu.memory_space<vmem>>, vector<2x1x128xf32>
    %143 = vector.shape_cast %142 : vector<2x1x128xf32> to vector<2x128xf32>
    %c5_151 = arith.constant 5 : index
    %c0_152 = arith.constant 0 : index
    %c256_153 = arith.constant 256 : index
    %144 = vector.load %arg14[%c5_151, %c0_152, %c256_153] : memref<9x2x512xf32, #tpu.memory_space<vmem>>, vector<1x2x128xf32>
    %145 = vector.shape_cast %144 : vector<1x2x128xf32> to vector<2x128xf32>
    %146 = vector.shape_cast %143 : vector<2x128xf32> to vector<1x2x128xf32>
    tpu.vector_store %arg14[%c5_151, %c0_152, %c256_153], %146 {strides = array<i32>} : memref<9x2x512xf32, #tpu.memory_space<vmem>>, vector<1x2x128xf32>,
    %c0_154 = arith.constant 0 : index
    %c5_155 = arith.constant 5 : index
    %c128_156 = arith.constant 128 : index
    %147 = vector.load %arg13[%c0_154, %c5_155, %c128_156] : memref<2x8x256xf32, #tpu.memory_space<vmem>>, vector<2x1x128xf32>
    %148 = vector.shape_cast %147 : vector<2x1x128xf32> to vector<2x128xf32>
    %c5_157 = arith.constant 5 : index
    %c0_158 = arith.constant 0 : index
    %c384_159 = arith.constant 384 : index
    %149 = vector.load %arg14[%c5_157, %c0_158, %c384_159] : memref<9x2x512xf32, #tpu.memory_space<vmem>>, vector<1x2x128xf32>
    %150 = vector.shape_cast %149 : vector<1x2x128xf32> to vector<2x128xf32>
    %151 = vector.shape_cast %148 : vector<2x128xf32> to vector<1x2x128xf32>
    tpu.vector_store %arg14[%c5_157, %c0_158, %c384_159], %151 {strides = array<i32>} : memref<9x2x512xf32, #tpu.memory_space<vmem>>, vector<1x2x128xf32>,
    %c0_160 = arith.constant 0 : index
    %c4_161 = arith.constant 4 : index
    %c0_162 = arith.constant 0 : index
    %152 = vector.load %arg13[%c0_160, %c4_161, %c0_162] : memref<2x8x256xf32, #tpu.memory_space<vmem>>, vector<2x1x128xf32>
    %153 = vector.shape_cast %152 : vector<2x1x128xf32> to vector<2x128xf32>
    %c6 = arith.constant 6 : index
    %c0_163 = arith.constant 0 : index
    %c0_164 = arith.constant 0 : index
    %154 = vector.load %arg14[%c6, %c0_163, %c0_164] : memref<9x2x512xf32, #tpu.memory_space<vmem>>, vector<1x2x128xf32>
    %155 = vector.shape_cast %154 : vector<1x2x128xf32> to vector<2x128xf32>
    %156 = vector.shape_cast %153 : vector<2x128xf32> to vector<1x2x128xf32>
    tpu.vector_store %arg14[%c6, %c0_163, %c0_164], %156 {strides = array<i32>} : memref<9x2x512xf32, #tpu.memory_space<vmem>>, vector<1x2x128xf32>,
    %c0_165 = arith.constant 0 : index
    %c5_166 = arith.constant 5 : index
    %c0_167 = arith.constant 0 : index
    %157 = vector.load %arg13[%c0_165, %c5_166, %c0_167] : memref<2x8x256xf32, #tpu.memory_space<vmem>>, vector<2x1x128xf32>
    %158 = vector.shape_cast %157 : vector<2x1x128xf32> to vector<2x128xf32>
    %c6_168 = arith.constant 6 : index
    %c0_169 = arith.constant 0 : index
    %c128_170 = arith.constant 128 : index
    %159 = vector.load %arg14[%c6_168, %c0_169, %c128_170] : memref<9x2x512xf32, #tpu.memory_space<vmem>>, vector<1x2x128xf32>
    %160 = vector.shape_cast %159 : vector<1x2x128xf32> to vector<2x128xf32>
    %161 = vector.shape_cast %158 : vector<2x128xf32> to vector<1x2x128xf32>
    tpu.vector_store %arg14[%c6_168, %c0_169, %c128_170], %161 {strides = array<i32>} : memref<9x2x512xf32, #tpu.memory_space<vmem>>, vector<1x2x128xf32>,
    %c0_171 = arith.constant 0 : index
    %c6_172 = arith.constant 6 : index
    %c0_173 = arith.constant 0 : index
    %162 = vector.load %arg13[%c0_171, %c6_172, %c0_173] : memref<2x8x256xf32, #tpu.memory_space<vmem>>, vector<2x1x128xf32>
    %163 = vector.shape_cast %162 : vector<2x1x128xf32> to vector<2x128xf32>
    %c6_174 = arith.constant 6 : index
    %c0_175 = arith.constant 0 : index
    %c256_176 = arith.constant 256 : index
    %164 = vector.load %arg14[%c6_174, %c0_175, %c256_176] : memref<9x2x512xf32, #tpu.memory_space<vmem>>, vector<1x2x128xf32>
    %165 = vector.shape_cast %164 : vector<1x2x128xf32> to vector<2x128xf32>
    %166 = vector.shape_cast %163 : vector<2x128xf32> to vector<1x2x128xf32>
    tpu.vector_store %arg14[%c6_174, %c0_175, %c256_176], %166 {strides = array<i32>} : memref<9x2x512xf32, #tpu.memory_space<vmem>>, vector<1x2x128xf32>,
    %c0_177 = arith.constant 0 : index
    %c7 = arith.constant 7 : index
    %c0_178 = arith.constant 0 : index
    %167 = vector.load %arg13[%c0_177, %c7, %c0_178] : memref<2x8x256xf32, #tpu.memory_space<vmem>>, vector<2x1x128xf32>
    %168 = vector.shape_cast %167 : vector<2x1x128xf32> to vector<2x128xf32>
    %c6_179 = arith.constant 6 : index
    %c0_180 = arith.constant 0 : index
    %c384_181 = arith.constant 384 : index
    %169 = vector.load %arg14[%c6_179, %c0_180, %c384_181] : memref<9x2x512xf32, #tpu.memory_space<vmem>>, vector<1x2x128xf32>
    %170 = vector.shape_cast %169 : vector<1x2x128xf32> to vector<2x128xf32>
    %171 = vector.shape_cast %168 : vector<2x128xf32> to vector<1x2x128xf32>
    tpu.vector_store %arg14[%c6_179, %c0_180, %c384_181], %171 {strides = array<i32>} : memref<9x2x512xf32, #tpu.memory_space<vmem>>, vector<1x2x128xf32>,
    %c0_182 = arith.constant 0 : index
    %c4_183 = arith.constant 4 : index
    %c64_184 = arith.constant 64 : index
    %172 = vector.load %arg13[%c0_182, %c4_183, %c64_184] : memref<2x8x256xf32, #tpu.memory_space<vmem>>, vector<2x1x128xf32>
    %173 = vector.shape_cast %172 : vector<2x1x128xf32> to vector<2x128xf32>
    %c7_185 = arith.constant 7 : index
    %c0_186 = arith.constant 0 : index
    %c0_187 = arith.constant 0 : index
    %174 = vector.load %arg14[%c7_185, %c0_186, %c0_187] : memref<9x2x512xf32, #tpu.memory_space<vmem>>, vector<1x2x128xf32>
    %175 = vector.shape_cast %174 : vector<1x2x128xf32> to vector<2x128xf32>
    %176 = vector.shape_cast %173 : vector<2x128xf32> to vector<1x2x128xf32>
    tpu.vector_store %arg14[%c7_185, %c0_186, %c0_187], %176 {strides = array<i32>} : memref<9x2x512xf32, #tpu.memory_space<vmem>>, vector<1x2x128xf32>,
    %c0_188 = arith.constant 0 : index
    %c5_189 = arith.constant 5 : index
    %c64_190 = arith.constant 64 : index
    %177 = vector.load %arg13[%c0_188, %c5_189, %c64_190] : memref<2x8x256xf32, #tpu.memory_space<vmem>>, vector<2x1x128xf32>
    %178 = vector.shape_cast %177 : vector<2x1x128xf32> to vector<2x128xf32>
    %c7_191 = arith.constant 7 : index
    %c0_192 = arith.constant 0 : index
    %c128_193 = arith.constant 128 : index
    %179 = vector.load %arg14[%c7_191, %c0_192, %c128_193] : memref<9x2x512xf32, #tpu.memory_space<vmem>>, vector<1x2x128xf32>
    %180 = vector.shape_cast %179 : vector<1x2x128xf32> to vector<2x128xf32>
    %181 = vector.shape_cast %178 : vector<2x128xf32> to vector<1x2x128xf32>
    tpu.vector_store %arg14[%c7_191, %c0_192, %c128_193], %181 {strides = array<i32>} : memref<9x2x512xf32, #tpu.memory_space<vmem>>, vector<1x2x128xf32>,
    %c0_194 = arith.constant 0 : index
    %c6_195 = arith.constant 6 : index
    %c64_196 = arith.constant 64 : index
    %182 = vector.load %arg13[%c0_194, %c6_195, %c64_196] : memref<2x8x256xf32, #tpu.memory_space<vmem>>, vector<2x1x128xf32>
    %183 = vector.shape_cast %182 : vector<2x1x128xf32> to vector<2x128xf32>
    %c7_197 = arith.constant 7 : index
    %c0_198 = arith.constant 0 : index
    %c256_199 = arith.constant 256 : index
    %184 = vector.load %arg14[%c7_197, %c0_198, %c256_199] : memref<9x2x512xf32, #tpu.memory_space<vmem>>, vector<1x2x128xf32>
    %185 = vector.shape_cast %184 : vector<1x2x128xf32> to vector<2x128xf32>
    %186 = vector.shape_cast %183 : vector<2x128xf32> to vector<1x2x128xf32>
    tpu.vector_store %arg14[%c7_197, %c0_198, %c256_199], %186 {strides = array<i32>} : memref<9x2x512xf32, #tpu.memory_space<vmem>>, vector<1x2x128xf32>,
    %c0_200 = arith.constant 0 : index
    %c7_201 = arith.constant 7 : index
    %c64_202 = arith.constant 64 : index
    %187 = vector.load %arg13[%c0_200, %c7_201, %c64_202] : memref<2x8x256xf32, #tpu.memory_space<vmem>>, vector<2x1x128xf32>
    %188 = vector.shape_cast %187 : vector<2x1x128xf32> to vector<2x128xf32>
    %c7_203 = arith.constant 7 : index
    %c0_204 = arith.constant 0 : index
    %c384_205 = arith.constant 384 : index
    %189 = vector.load %arg14[%c7_203, %c0_204, %c384_205] : memref<9x2x512xf32, #tpu.memory_space<vmem>>, vector<1x2x128xf32>
    %190 = vector.shape_cast %189 : vector<1x2x128xf32> to vector<2x128xf32>
    %191 = vector.shape_cast %188 : vector<2x128xf32> to vector<1x2x128xf32>
    tpu.vector_store %arg14[%c7_203, %c0_204, %c384_205], %191 {strides = array<i32>} : memref<9x2x512xf32, #tpu.memory_space<vmem>>, vector<1x2x128xf32>,
    %c0_206 = arith.constant 0 : index
    %c4_207 = arith.constant 4 : index
    %c128_208 = arith.constant 128 : index
    %192 = vector.load %arg13[%c0_206, %c4_207, %c128_208] : memref<2x8x256xf32, #tpu.memory_space<vmem>>, vector<2x1x128xf32>
    %193 = vector.shape_cast %192 : vector<2x1x128xf32> to vector<2x128xf32>
    %c8 = arith.constant 8 : index
    %c0_209 = arith.constant 0 : index
    %c0_210 = arith.constant 0 : index
    %194 = vector.load %arg14[%c8, %c0_209, %c0_210] : memref<9x2x512xf32, #tpu.memory_space<vmem>>, vector<1x2x128xf32>
    %195 = vector.shape_cast %194 : vector<1x2x128xf32> to vector<2x128xf32>
    %196 = vector.shape_cast %193 : vector<2x128xf32> to vector<1x2x128xf32>
    tpu.vector_store %arg14[%c8, %c0_209, %c0_210], %196 {strides = array<i32>} : memref<9x2x512xf32, #tpu.memory_space<vmem>>, vector<1x2x128xf32>,
    %c0_211 = arith.constant 0 : index
    %c5_212 = arith.constant 5 : index
    %c128_213 = arith.constant 128 : index
    %197 = vector.load %arg13[%c0_211, %c5_212, %c128_213] : memref<2x8x256xf32, #tpu.memory_space<vmem>>, vector<2x1x128xf32>
    %198 = vector.shape_cast %197 : vector<2x1x128xf32> to vector<2x128xf32>
    %c8_214 = arith.constant 8 : index
    %c0_215 = arith.constant 0 : index
    %c128_216 = arith.constant 128 : index
    %199 = vector.load %arg14[%c8_214, %c0_215, %c128_216] : memref<9x2x512xf32, #tpu.memory_space<vmem>>, vector<1x2x128xf32>
    %200 = vector.shape_cast %199 : vector<1x2x128xf32> to vector<2x128xf32>
    %201 = vector.shape_cast %198 : vector<2x128xf32> to vector<1x2x128xf32>
    tpu.vector_store %arg14[%c8_214, %c0_215, %c128_216], %201 {strides = array<i32>} : memref<9x2x512xf32, #tpu.memory_space<vmem>>, vector<1x2x128xf32>,
    %c0_217 = arith.constant 0 : index
    %c6_218 = arith.constant 6 : index
    %c128_219 = arith.constant 128 : index
    %202 = vector.load %arg13[%c0_217, %c6_218, %c128_219] : memref<2x8x256xf32, #tpu.memory_space<vmem>>, vector<2x1x128xf32>
    %203 = vector.shape_cast %202 : vector<2x1x128xf32> to vector<2x128xf32>
    %c8_220 = arith.constant 8 : index
    %c0_221 = arith.constant 0 : index
    %c256_222 = arith.constant 256 : index
    %204 = vector.load %arg14[%c8_220, %c0_221, %c256_222] : memref<9x2x512xf32, #tpu.memory_space<vmem>>, vector<1x2x128xf32>
    %205 = vector.shape_cast %204 : vector<1x2x128xf32> to vector<2x128xf32>
    %206 = vector.shape_cast %203 : vector<2x128xf32> to vector<1x2x128xf32>
    tpu.vector_store %arg14[%c8_220, %c0_221, %c256_222], %206 {strides = array<i32>} : memref<9x2x512xf32, #tpu.memory_space<vmem>>, vector<1x2x128xf32>,
    %c0_223 = arith.constant 0 : index
    %c7_224 = arith.constant 7 : index
    %c128_225 = arith.constant 128 : index
    %207 = vector.load %arg13[%c0_223, %c7_224, %c128_225] : memref<2x8x256xf32, #tpu.memory_space<vmem>>, vector<2x1x128xf32>
    %208 = vector.shape_cast %207 : vector<2x1x128xf32> to vector<2x128xf32>
    %c8_226 = arith.constant 8 : index
    %c0_227 = arith.constant 0 : index
    %c384_228 = arith.constant 384 : index
    %209 = vector.load %arg14[%c8_226, %c0_227, %c384_228] : memref<9x2x512xf32, #tpu.memory_space<vmem>>, vector<1x2x128xf32>
    %210 = vector.shape_cast %209 : vector<1x2x128xf32> to vector<2x128xf32>
    %211 = vector.shape_cast %208 : vector<2x128xf32> to vector<1x2x128xf32>
    tpu.vector_store %arg14[%c8_226, %c0_227, %c384_228], %211 {strides = array<i32>} : memref<9x2x512xf32, #tpu.memory_space<vmem>>, vector<1x2x128xf32>,
    %c0_229 = arith.constant 0 : index
    %c0_230 = arith.constant 0 : index
    %c0_231 = arith.constant 0 : index
    %212 = vector.load %arg14[%c0_229, %c0_230, %c0_231] : memref<9x2x512xf32, #tpu.memory_space<vmem>>, vector<9x2x512xf32>
    %213 = vector.shape_cast %212 : vector<9x2x512xf32> to vector<18x512xf32>
    %214 = arith.truncf %213 : vector<18x512xf32> to vector<18x512xbf16>
    %c0_232 = arith.constant 0 : index
    %c0_233 = arith.constant 0 : index
    %215 = vector.load %arg4[%c0_232, %c0_233] : memref<512x64xbf16, #tpu.memory_space<vmem>>, vector<512x64xbf16>
    %cst_234 = arith.constant dense<0.000000e+00> : vector<18x64xf32>
    %216 = tpu.matmul %214, %215, %cst_234 {dimension_numbers = #tpu.dot_dimension_numbers<[1], [0], [0], [1], [0, 0, 1, 1], [], []>} : vector<18x512xbf16>, vector<512x64xbf16>, vector<18x64xf32> -> vector<18x64xf32>
    %c0_235 = arith.constant 0 : index
    %c0_236 = arith.constant 0 : index
    %217 = vector.load %arg5[%c0_235, %c0_236] : memref<1x64xf32, #tpu.memory_space<vmem>>, vector<1x64xf32>
    %218 = vector.broadcast %217 : vector<1x64xf32> to vector<18x64xf32>
    %219 = arith.addf %216, %218 : vector<18x64xf32>
    %cst_237 = arith.constant 0.000000e+00 : f32
    %220 = vector.broadcast %cst_237 : f32 to vector<18x64xf32>
    %221 = arith.maximumf %219, %220 : vector<18x64xf32>
    %c0_238 = arith.constant 0 : index
    %c0_239 = arith.constant 0 : index
    %222 = vector.load %arg15[%c0_238, %c0_239] : memref<18x64xf32, #tpu.memory_space<vmem>>, vector<18x64xf32>
    tpu.vector_store %arg15[%c0_238, %c0_239], %221 {strides = array<i32>} : memref<18x64xf32, #tpu.memory_space<vmem>>, vector<18x64xf32>,
    %c0_240 = arith.constant 0 : index
    %c0_241 = arith.constant 0 : index
    %223 = vector.load %arg15[%c0_240, %c0_241] : memref<18x64xf32, #tpu.memory_space<vmem>>, vector<2x64xf32>
    %224 = arith.truncf %223 : vector<2x64xf32> to vector<2x64xbf16>
    %c0_242 = arith.constant 0 : index
    %c0_243 = arith.constant 0 : index
    %c0_244 = arith.constant 0 : index
    %225 = vector.load %arg6[%c0_242, %c0_243, %c0_244] : memref<9x64x64xbf16, #tpu.memory_space<vmem>>, vector<1x64x64xbf16>
    %226 = vector.shape_cast %225 : vector<1x64x64xbf16> to vector<64x64xbf16>
    %cst_245 = arith.constant dense<0.000000e+00> : vector<2x64xf32>
    %227 = tpu.matmul %224, %226, %cst_245 {dimension_numbers = #tpu.dot_dimension_numbers<[1], [0], [0], [1], [0, 0, 1, 1], [], []>} : vector<2x64xbf16>, vector<64x64xbf16>, vector<2x64xf32> -> vector<2x64xf32>
    %c2_246 = arith.constant 2 : index
    %c0_247 = arith.constant 0 : index
    %228 = vector.load %arg15[%c2_246, %c0_247] : memref<18x64xf32, #tpu.memory_space<vmem>>, vector<2x64xf32>
    %229 = arith.truncf %228 : vector<2x64xf32> to vector<2x64xbf16>
    %c1_248 = arith.constant 1 : index
    %c0_249 = arith.constant 0 : index
    %c0_250 = arith.constant 0 : index
    %230 = vector.load %arg6[%c1_248, %c0_249, %c0_250] : memref<9x64x64xbf16, #tpu.memory_space<vmem>>, vector<1x64x64xbf16>
    %231 = vector.shape_cast %230 : vector<1x64x64xbf16> to vector<64x64xbf16>
    %cst_251 = arith.constant dense<0.000000e+00> : vector<2x64xf32>
    %232 = tpu.matmul %229, %231, %cst_251 {dimension_numbers = #tpu.dot_dimension_numbers<[1], [0], [0], [1], [0, 0, 1, 1], [], []>} : vector<2x64xbf16>, vector<64x64xbf16>, vector<2x64xf32> -> vector<2x64xf32>
    %233 = arith.addf %227, %232 : vector<2x64xf32>
    %c4_252 = arith.constant 4 : index
    %c0_253 = arith.constant 0 : index
    %234 = vector.load %arg15[%c4_252, %c0_253] : memref<18x64xf32, #tpu.memory_space<vmem>>, vector<2x64xf32>
    %235 = arith.truncf %234 : vector<2x64xf32> to vector<2x64xbf16>
    %c2_254 = arith.constant 2 : index
    %c0_255 = arith.constant 0 : index
    %c0_256 = arith.constant 0 : index
    %236 = vector.load %arg6[%c2_254, %c0_255, %c0_256] : memref<9x64x64xbf16, #tpu.memory_space<vmem>>, vector<1x64x64xbf16>
    %237 = vector.shape_cast %236 : vector<1x64x64xbf16> to vector<64x64xbf16>
    %cst_257 = arith.constant dense<0.000000e+00> : vector<2x64xf32>
    %238 = tpu.matmul %235, %237, %cst_257 {dimension_numbers = #tpu.dot_dimension_numbers<[1], [0], [0], [1], [0, 0, 1, 1], [], []>} : vector<2x64xbf16>, vector<64x64xbf16>, vector<2x64xf32> -> vector<2x64xf32>
    %239 = arith.addf %233, %238 : vector<2x64xf32>
    %c6_258 = arith.constant 6 : index
    %c0_259 = arith.constant 0 : index
    %240 = vector.load %arg15[%c6_258, %c0_259] : memref<18x64xf32, #tpu.memory_space<vmem>>, vector<2x64xf32>
    %241 = arith.truncf %240 : vector<2x64xf32> to vector<2x64xbf16>
    %c3_260 = arith.constant 3 : index
    %c0_261 = arith.constant 0 : index
    %c0_262 = arith.constant 0 : index
    %242 = vector.load %arg6[%c3_260, %c0_261, %c0_262] : memref<9x64x64xbf16, #tpu.memory_space<vmem>>, vector<1x64x64xbf16>
    %243 = vector.shape_cast %242 : vector<1x64x64xbf16> to vector<64x64xbf16>
    %cst_263 = arith.constant dense<0.000000e+00> : vector<2x64xf32>
    %244 = tpu.matmul %241, %243, %cst_263 {dimension_numbers = #tpu.dot_dimension_numbers<[1], [0], [0], [1], [0, 0, 1, 1], [], []>} : vector<2x64xbf16>, vector<64x64xbf16>, vector<2x64xf32> -> vector<2x64xf32>
    %245 = arith.addf %239, %244 : vector<2x64xf32>
    %c8_264 = arith.constant 8 : index
    %c0_265 = arith.constant 0 : index
    %246 = vector.load %arg15[%c8_264, %c0_265] : memref<18x64xf32, #tpu.memory_space<vmem>>, vector<2x64xf32>
    %247 = arith.truncf %246 : vector<2x64xf32> to vector<2x64xbf16>
    %c4_266 = arith.constant 4 : index
    %c0_267 = arith.constant 0 : index
    %c0_268 = arith.constant 0 : index
    %248 = vector.load %arg6[%c4_266, %c0_267, %c0_268] : memref<9x64x64xbf16, #tpu.memory_space<vmem>>, vector<1x64x64xbf16>
    %249 = vector.shape_cast %248 : vector<1x64x64xbf16> to vector<64x64xbf16>
    %cst_269 = arith.constant dense<0.000000e+00> : vector<2x64xf32>
    %250 = tpu.matmul %247, %249, %cst_269 {dimension_numbers = #tpu.dot_dimension_numbers<[1], [0], [0], [1], [0, 0, 1, 1], [], []>} : vector<2x64xbf16>, vector<64x64xbf16>, vector<2x64xf32> -> vector<2x64xf32>
    %251 = arith.addf %245, %250 : vector<2x64xf32>
    %c10 = arith.constant 10 : index
    %c0_270 = arith.constant 0 : index
    %252 = vector.load %arg15[%c10, %c0_270] : memref<18x64xf32, #tpu.memory_space<vmem>>, vector<2x64xf32>
    %253 = arith.truncf %252 : vector<2x64xf32> to vector<2x64xbf16>
    %c5_271 = arith.constant 5 : index
    %c0_272 = arith.constant 0 : index
    %c0_273 = arith.constant 0 : index
    %254 = vector.load %arg6[%c5_271, %c0_272, %c0_273] : memref<9x64x64xbf16, #tpu.memory_space<vmem>>, vector<1x64x64xbf16>
    %255 = vector.shape_cast %254 : vector<1x64x64xbf16> to vector<64x64xbf16>
    %cst_274 = arith.constant dense<0.000000e+00> : vector<2x64xf32>
    %256 = tpu.matmul %253, %255, %cst_274 {dimension_numbers = #tpu.dot_dimension_numbers<[1], [0], [0], [1], [0, 0, 1, 1], [], []>} : vector<2x64xbf16>, vector<64x64xbf16>, vector<2x64xf32> -> vector<2x64xf32>
    %257 = arith.addf %251, %256 : vector<2x64xf32>
    %c12 = arith.constant 12 : index
    %c0_275 = arith.constant 0 : index
    %258 = vector.load %arg15[%c12, %c0_275] : memref<18x64xf32, #tpu.memory_space<vmem>>, vector<2x64xf32>
    %259 = arith.truncf %258 : vector<2x64xf32> to vector<2x64xbf16>
    %c6_276 = arith.constant 6 : index
    %c0_277 = arith.constant 0 : index
    %c0_278 = arith.constant 0 : index
    %260 = vector.load %arg6[%c6_276, %c0_277, %c0_278] : memref<9x64x64xbf16, #tpu.memory_space<vmem>>, vector<1x64x64xbf16>
    %261 = vector.shape_cast %260 : vector<1x64x64xbf16> to vector<64x64xbf16>
    %cst_279 = arith.constant dense<0.000000e+00> : vector<2x64xf32>
    %262 = tpu.matmul %259, %261, %cst_279 {dimension_numbers = #tpu.dot_dimension_numbers<[1], [0], [0], [1], [0, 0, 1, 1], [], []>} : vector<2x64xbf16>, vector<64x64xbf16>, vector<2x64xf32> -> vector<2x64xf32>
    %263 = arith.addf %257, %262 : vector<2x64xf32>
    %c14 = arith.constant 14 : index
    %c0_280 = arith.constant 0 : index
    %264 = vector.load %arg15[%c14, %c0_280] : memref<18x64xf32, #tpu.memory_space<vmem>>, vector<2x64xf32>
    %265 = arith.truncf %264 : vector<2x64xf32> to vector<2x64xbf16>
    %c7_281 = arith.constant 7 : index
    %c0_282 = arith.constant 0 : index
    %c0_283 = arith.constant 0 : index
    %266 = vector.load %arg6[%c7_281, %c0_282, %c0_283] : memref<9x64x64xbf16, #tpu.memory_space<vmem>>, vector<1x64x64xbf16>
    %267 = vector.shape_cast %266 : vector<1x64x64xbf16> to vector<64x64xbf16>
    %cst_284 = arith.constant dense<0.000000e+00> : vector<2x64xf32>
    %268 = tpu.matmul %265, %267, %cst_284 {dimension_numbers = #tpu.dot_dimension_numbers<[1], [0], [0], [1], [0, 0, 1, 1], [], []>} : vector<2x64xbf16>, vector<64x64xbf16>, vector<2x64xf32> -> vector<2x64xf32>
    %269 = arith.addf %263, %268 : vector<2x64xf32>
    %c16 = arith.constant 16 : index
    %c0_285 = arith.constant 0 : index
    %270 = vector.load %arg15[%c16, %c0_285] : memref<18x64xf32, #tpu.memory_space<vmem>>, vector<2x64xf32>
    %271 = arith.truncf %270 : vector<2x64xf32> to vector<2x64xbf16>
    %c8_286 = arith.constant 8 : index
    %c0_287 = arith.constant 0 : index
    %c0_288 = arith.constant 0 : index
    %272 = vector.load %arg6[%c8_286, %c0_287, %c0_288] : memref<9x64x64xbf16, #tpu.memory_space<vmem>>, vector<1x64x64xbf16>
    %273 = vector.shape_cast %272 : vector<1x64x64xbf16> to vector<64x64xbf16>
    %cst_289 = arith.constant dense<0.000000e+00> : vector<2x64xf32>
    %274 = tpu.matmul %271, %273, %cst_289 {dimension_numbers = #tpu.dot_dimension_numbers<[1], [0], [0], [1], [0, 0, 1, 1], [], []>} : vector<2x64xbf16>, vector<64x64xbf16>, vector<2x64xf32> -> vector<2x64xf32>
    %275 = arith.addf %269, %274 : vector<2x64xf32>
    %c0_290 = arith.constant 0 : index
    %c0_291 = arith.constant 0 : index
    %276 = vector.load %arg7[%c0_290, %c0_291] : memref<1x64xf32, #tpu.memory_space<vmem>>, vector<1x64xf32>
    %277 = vector.broadcast %276 : vector<1x64xf32> to vector<2x64xf32>
    %278 = arith.addf %275, %277 : vector<2x64xf32>
    %cst_292 = arith.constant 0.000000e+00 : f32
    %279 = vector.broadcast %cst_292 : f32 to vector<2x64xf32>
    %280 = arith.maximumf %278, %279 : vector<2x64xf32>
    %281 = arith.truncf %280 : vector<2x64xf32> to vector<2x64xbf16>
    %c0_293 = arith.constant 0 : index
    %c0_294 = arith.constant 0 : index
    %282 = vector.load %arg8[%c0_293, %c0_294] : memref<64x512xbf16, #tpu.memory_space<vmem>>, vector<64x512xbf16>
    %cst_295 = arith.constant dense<0.000000e+00> : vector<2x512xf32>
    %283 = tpu.matmul %281, %282, %cst_295 {dimension_numbers = #tpu.dot_dimension_numbers<[1], [0], [0], [1], [0, 0, 1, 1], [], []>} : vector<2x64xbf16>, vector<64x512xbf16>, vector<2x512xf32> -> vector<2x512xf32>
    %c0_296 = arith.constant 0 : index
    %c0_297 = arith.constant 0 : index
    %284 = vector.load %arg9[%c0_296, %c0_297] : memref<1x512xf32, #tpu.memory_space<vmem>>, vector<1x512xf32>
    %285 = vector.broadcast %284 : vector<1x512xf32> to vector<2x512xf32>
    %286 = arith.addf %283, %285 : vector<2x512xf32>
    %cst_298 = arith.constant 0.000000e+00 : f32
    %287 = vector.broadcast %cst_298 : f32 to vector<2x512xf32>
    %288 = arith.maximumf %286, %287 : vector<2x512xf32>
    %289 = arith.truncf %288 : vector<2x512xf32> to vector<2x512xbf16>
    %c0_299 = arith.constant 0 : index
    %c0_300 = arith.constant 0 : index
    %290 = vector.load %arg10[%c0_299, %c0_300] : memref<512x128xbf16, #tpu.memory_space<vmem>>, vector<512x128xbf16>
    %cst_301 = arith.constant dense<0.000000e+00> : vector<2x128xf32>
    %291 = tpu.matmul %289, %290, %cst_301 {dimension_numbers = #tpu.dot_dimension_numbers<[1], [0], [0], [1], [0, 0, 1, 1], [], []>} : vector<2x512xbf16>, vector<512x128xbf16>, vector<2x128xf32> -> vector<2x128xf32>
    %c0_302 = arith.constant 0 : index
    %c0_303 = arith.constant 0 : index
    %292 = vector.load %arg11[%c0_302, %c0_303] : memref<1x128xf32, #tpu.memory_space<vmem>>, vector<1x128xf32>
    %293 = vector.broadcast %292 : vector<1x128xf32> to vector<2x128xf32>
    %294 = arith.addf %291, %293 : vector<2x128xf32>
    %c0_304 = arith.constant 0 : index
    %c0_305 = arith.constant 0 : index
    %295 = vector.load %arg12[%c0_304, %c0_305] : memref<2x128xf32, #tpu.memory_space<vmem>>, vector<2x128xf32>
    tpu.vector_store %arg12[%c0_304, %c0_305], %294 {strides = array<i32>} : memref<2x128xf32, #tpu.memory_space<vmem>>, vector<2x128xf32>,
    return
  }
  func.func @transform_0(%arg0: i32) -> (i32, i32) {
    %c0_i32 = arith.constant 0 : i32
    %c0_i32_0 = arith.constant 0 : i32
    %c0_i32_1 = arith.constant 0 : i32
    return %c0_i32, %c0_i32_0 : i32, i32
  }
  func.func @transform_1(%arg0: i32) -> (i32, i32) {
    %c0_i32 = arith.constant 0 : i32
    %c0_i32_0 = arith.constant 0 : i32
    %c0_i32_1 = arith.constant 0 : i32
    return %c0_i32, %c0_i32_0 : i32, i32
  }
  func.func @transform_2(%arg0: i32) -> (i32, i32) {
    %c0_i32 = arith.constant 0 : i32
    %c0_i32_0 = arith.constant 0 : i32
    %c0_i32_1 = arith.constant 0 : i32
    return %c0_i32, %c0_i32_0 : i32, i32
  }
  func.func @transform_3(%arg0: i32) -> (i32, i32) {
    %c0_i32 = arith.constant 0 : i32
    %c0_i32_0 = arith.constant 0 : i32
    %c0_i32_1 = arith.constant 0 : i32
    return %c0_i32, %c0_i32_0 : i32, i32
  }
  func.func @transform_4(%arg0: i32) -> (i32, i32) {
    %c0_i32 = arith.constant 0 : i32
    %c0_i32_0 = arith.constant 0 : i32
    %c0_i32_1 = arith.constant 0 : i32
    return %c0_i32, %c0_i32_0 : i32, i32
  }
  func.func @transform_5(%arg0: i32) -> (i32, i32, i32) {
    %c0_i32 = arith.constant 0 : i32
    %c0_i32_0 = arith.constant 0 : i32
    %c0_i32_1 = arith.constant 0 : i32
    %c0_i32_2 = arith.constant 0 : i32
    return %c0_i32, %c0_i32_0, %c0_i32_1 : i32, i32, i32
  }
  func.func @transform_6(%arg0: i32) -> (i32, i32) {
    %c0_i32 = arith.constant 0 : i32
    %c0_i32_0 = arith.constant 0 : i32
    %c0_i32_1 = arith.constant 0 : i32
    return %c0_i32, %c0_i32_0 : i32, i32
  }
  func.func @transform_7(%arg0: i32) -> (i32, i32) {
    %c0_i32 = arith.constant 0 : i32
    %c0_i32_0 = arith.constant 0 : i32
    %c0_i32_1 = arith.constant 0 : i32
    return %c0_i32, %c0_i32_0 : i32, i32
  }
  func.func @transform_8(%arg0: i32) -> (i32, i32) {
    %c0_i32 = arith.constant 0 : i32
    %c0_i32_0 = arith.constant 0 : i32
    %c0_i32_1 = arith.constant 0 : i32
    return %c0_i32, %c0_i32_0 : i32, i32
  }
  func.func @transform_9(%arg0: i32) -> (i32, i32) {
    %c0_i32 = arith.constant 0 : i32
    %c0_i32_0 = arith.constant 0 : i32
    %c0_i32_1 = arith.constant 0 : i32
    return %c0_i32, %c0_i32_0 : i32, i32
  }
  func.func @transform_10(%arg0: i32) -> (i32, i32) {
    %c0_i32 = arith.constant 0 : i32
    %c0_i32_0 = arith.constant 0 : i32
    %c0_i32_1 = arith.constant 0 : i32
    return %c0_i32, %c0_i32_0 : i32, i32
  }
  func.func @transform_11(%arg0: i32) -> (i32, i32) {
    %c0_i32 = arith.constant 0 : i32
    %c0_i32_0 = arith.constant 0 : i32
    %c0_i32_1 = arith.constant 0 : i32
    return %c0_i32, %c0_i32_0 : i32, i32
  }
}

</mosaic_0001>

<llo_original>
// kernel: qnetwork_forward_padded.1
$region0: #{qnetwork_forward_padded.1}
  #allocation0 [shape = 'u32[]', space=smem, size = 0x4, offset = 0x4, fixed_abs, tag = 'smem constant byte address 0x4 - core index']
  #allocation1 [shape = 'u32[72,128]{1,0:T(1,128)}', space=vmem, size = 0x9000, scoped, tag = 'internal scratch']
  #allocation2 [shape = 'f32[2,8,256]{2,1,0:T(8,128)}', space=vmem, size = 0x4000, scoped, tag = 'scratch operand']
  #allocation3 [shape = 'f32[9,2,512]{2,1,0:T(2,128)}', space=vmem, size = 0x9000, scoped, tag = 'scratch operand']
  #allocation4 [shape = 'f32[18,64]{1,0:T(8,128)}', space=vmem, size = 0x3000, scoped, tag = 'scratch operand']
  %s0 = inlined_call_operand.vmem [shape: bf16[128,256], index: 0, kind: input, shape index: {}]
  %s1 = inlined_call_operand.vmem [shape: bf16[256,32], index: 1, kind: input, shape index: {}]
  %s2 = inlined_call_operand.vmem [shape: f32[1,32], index: 2, kind: input, shape index: {}]
  %s3 = inlined_call_operand.vmem [shape: bf16[512,64], index: 3, kind: input, shape index: {}]
  %s4 = inlined_call_operand.vmem [shape: f32[1,64], index: 4, kind: input, shape index: {}]
  %s5 = inlined_call_operand.vmem [shape: bf16[9,64,64], index: 5, kind: input, shape index: {}]
  %s6 = inlined_call_operand.vmem [shape: f32[1,64], index: 6, kind: input, shape index: {}]
  %s7 = inlined_call_operand.vmem [shape: bf16[64,512], index: 7, kind: input, shape index: {}]
  %s8 = inlined_call_operand.vmem [shape: f32[1,512], index: 8, kind: input, shape index: {}]
  %s9 = inlined_call_operand.vmem [shape: bf16[512,128], index: 9, kind: input, shape index: {}]
  %s10 = inlined_call_operand.vmem [shape: f32[1,128], index: 10, kind: input, shape index: {}]
  %s11 = inlined_call_operand.hbm [shape: f32[2,128], index: 11, kind: output, shape index: {}]
  %s12 = sld [smem:[#allocation0]]
  $region54: #{qnetwork_forward_padded.1} parent=0
    _
  %s14 = ssub.s32 1, %s12
  %s15 = scalar_select 0, %s14, %s12
  $region1: #{qnetwork_forward_padded.1} parent=0
    #allocation5 [shape = 'u8[1024]{0}', space=vmem, size = 0x400, scoped, tag = 'output window, operand 0, single buffered']
    #allocation6 [shape = 's32[1]{0}', space=sflag, size = 0x4, scoped, tag = 'scoped memory for qnetwork_forward_padded.1']
    %16 = vsyncpa [#allocation6], 0
    // Predicated region
    $region2: #{qnetwork_forward_padded.1} parent=1 // pred_check
      _
    $region3: #{qnetwork_forward_padded.1} parent=1 // pred_check_branch
      %18 = sbr.rel (0) target = $region5
    $region4: #{qnetwork_forward_padded.1} parent=1 // pred_region
      _
    $region5: #{qnetwork_forward_padded.1} parent=1 // pred_fallthru
      _
    // Predicated region
    $region6: #{qnetwork_forward_padded.1} parent=1 // pred_check
      _
    $region7: #{qnetwork_forward_padded.1} parent=1 // pred_check_branch
      %20 = sbr.rel (0) target = $region9
    $region8: #{qnetwork_forward_padded.1} parent=1 // pred_region
      _
    $region9: #{qnetwork_forward_padded.1} parent=1 // pred_fallthru
      _
    // Predicated region
    $region10: #{qnetwork_forward_padded.1} parent=1 // pred_check
      _
    $region11: #{qnetwork_forward_padded.1} parent=1 // pred_check_branch
      %22 = sbr.rel (0) target = $region13
    $region12: #{qnetwork_forward_padded.1} parent=1 // pred_region
      _
    $region13: #{qnetwork_forward_padded.1} parent=1 // pred_fallthru
      _
    // Predicated region
    $region14: #{qnetwork_forward_padded.1} parent=1 // pred_check
      _
    $region15: #{qnetwork_forward_padded.1} parent=1 // pred_check_branch
      %24 = sbr.rel (0) target = $region17
    $region16: #{qnetwork_forward_padded.1} parent=1 // pred_region
      _
    $region17: #{qnetwork_forward_padded.1} parent=1 // pred_fallthru
      _
    // Predicated region
    $region18: #{qnetwork_forward_padded.1} parent=1 // pred_check
      _
    $region19: #{qnetwork_forward_padded.1} parent=1 // pred_check_branch
      %26 = sbr.rel (0) target = $region21
    $region20: #{qnetwork_forward_padded.1} parent=1 // pred_region
      _
    $region21: #{qnetwork_forward_padded.1} parent=1 // pred_fallthru
      _
    // Predicated region
    $region22: #{qnetwork_forward_padded.1} parent=1 // pred_check
      _
    $region23: #{qnetwork_forward_padded.1} parent=1 // pred_check_branch
      %28 = sbr.rel (0) target = $region25
    $region24: #{qnetwork_forward_padded.1} parent=1 // pred_region
      _
    $region25: #{qnetwork_forward_padded.1} parent=1 // pred_fallthru
      _
    // Predicated region
    $region26: #{qnetwork_forward_padded.1} parent=1 // pred_check
      _
    $region27: #{qnetwork_forward_padded.1} parent=1 // pred_check_branch
      %30 = sbr.rel (0) target = $region29
    $region28: #{qnetwork_forward_padded.1} parent=1 // pred_region
      _
    $region29: #{qnetwork_forward_padded.1} parent=1 // pred_fallthru
      _
    // Predicated region
    $region30: #{qnetwork_forward_padded.1} parent=1 // pred_check
      _
    $region31: #{qnetwork_forward_padded.1} parent=1 // pred_check_branch
      %32 = sbr.rel (0) target = $region33
    $region32: #{qnetwork_forward_padded.1} parent=1 // pred_region
      _
    $region33: #{qnetwork_forward_padded.1} parent=1 // pred_fallthru
      _
    // Predicated region
    $region34: #{qnetwork_forward_padded.1} parent=1 // pred_check
      _
    $region35: #{qnetwork_forward_padded.1} parent=1 // pred_check_branch
      %34 = sbr.rel (0) target = $region37
    $region36: #{qnetwork_forward_padded.1} parent=1 // pred_region
      _
    $region37: #{qnetwork_forward_padded.1} parent=1 // pred_fallthru
      _
    // Predicated region
    $region38: #{qnetwork_forward_padded.1} parent=1 // pred_check
      _
    $region39: #{qnetwork_forward_padded.1} parent=1 // pred_check_branch
      %36 = sbr.rel (0) target = $region41
    $region40: #{qnetwork_forward_padded.1} parent=1 // pred_region
      _
    $region41: #{qnetwork_forward_padded.1} parent=1 // pred_fallthru
      _
    // Predicated region
    $region42: #{qnetwork_forward_padded.1} parent=1 // pred_check
      _
    $region43: #{qnetwork_forward_padded.1} parent=1 // pred_check_branch
      %38 = sbr.rel (0) target = $region45
    $region44: #{qnetwork_forward_padded.1} parent=1 // pred_region
      _
    $region45: #{qnetwork_forward_padded.1} parent=1 // pred_fallthru
      _
    %v40 = vld [vmem:[%s0] sm:$0xff]
    %v41 = vld [vmem:[%s0 + $0x8] sm:$0xff]
    %v42 = vld [vmem:[%s0 + $0x10] sm:$0xff]
    %v43 = vld [vmem:[%s0 + $0x18] sm:$0xff]
    %v44 = vld [vmem:[%s0 + $0x20] sm:$0xff]
    %v45 = vld [vmem:[%s0 + $0x28] sm:$0xff]
    %v46 = vld [vmem:[%s0 + $0x30] sm:$0xff]
    %v47 = vld [vmem:[%s0 + $0x38] sm:$0xff]
    %v48 = vld [vmem:[%s0 + $0x40] sm:$0xff]
    %v49 = vld [vmem:[%s0 + $0x48] sm:$0xff]
    %v50 = vld [vmem:[%s0 + $0x50] sm:$0xff]
    %v51 = vld [vmem:[%s0 + $0x58] sm:$0xff]
    %v52 = vld [vmem:[%s0 + $0x60] sm:$0xff]
    %v53 = vld [vmem:[%s0 + $0x68] sm:$0xff]
    %v54 = vld [vmem:[%s0 + $0x70] sm:$0xff]
    %v55 = vld [vmem:[%s0 + $0x78] sm:$0xff]
    %v56 = vld [vmem:[%s1] sm:$0xf]
    %v57 = vld [vmem:[%s1 + $0x4] sm:$0xf]
    %v58 = vld [vmem:[%s1 + $0x8] sm:$0xf]
    %v59 = vld [vmem:[%s1 + $0xc] sm:$0xf]
    %v60 = vld [vmem:[%s1 + $0x10] sm:$0xf]
    %v61 = vld [vmem:[%s1 + $0x14] sm:$0xf]
    %v62 = vld [vmem:[%s1 + $0x18] sm:$0xf]
    %v63 = vld [vmem:[%s1 + $0x1c] sm:$0xf]
    %v64 = vld [vmem:[%s1 + $0x20] sm:$0xf]
    %v65 = vld [vmem:[%s1 + $0x24] sm:$0xf]
    %v66 = vld [vmem:[%s1 + $0x28] sm:$0xf]
    %v67 = vld [vmem:[%s1 + $0x2c] sm:$0xf]
    %v68 = vld [vmem:[%s1 + $0x30] sm:$0xf]
    %v69 = vld [vmem:[%s1 + $0x34] sm:$0xf]
    %v70 = vld [vmem:[%s1 + $0x38] sm:$0xf]
    %v71 = vld [vmem:[%s1 + $0x3c] sm:$0xf]
    %v72 = vld [vmem:[%s1 + $0x40] sm:$0xf]
    %v73 = vld [vmem:[%s1 + $0x44] sm:$0xf]
    %v74 = vld [vmem:[%s1 + $0x48] sm:$0xf]
    %v75 = vld [vmem:[%s1 + $0x4c] sm:$0xf]
    %v76 = vld [vmem:[%s1 + $0x50] sm:$0xf]
    %v77 = vld [vmem:[%s1 + $0x54] sm:$0xf]
    %v78 = vld [vmem:[%s1 + $0x58] sm:$0xf]
    %v79 = vld [vmem:[%s1 + $0x5c] sm:$0xf]
    %v80 = vld [vmem:[%s1 + $0x60] sm:$0xf]
    %v81 = vld [vmem:[%s1 + $0x64] sm:$0xf]
    %v82 = vld [vmem:[%s1 + $0x68] sm:$0xf]
    %v83 = vld [vmem:[%s1 + $0x6c] sm:$0xf]
    %v84 = vld [vmem:[%s1 + $0x70] sm:$0xf]
    %v85 = vld [vmem:[%s1 + $0x74] sm:$0xf]
    %v86 = vld [vmem:[%s1 + $0x78] sm:$0xf]
    %v87 = vld [vmem:[%s1 + $0x7c] sm:$0xf]
    %v88 = vld [vmem:[%s2] sm:$0x1]
    %v90 = vperm.slane %v88, 0
    %v108 = vunpack.c.l.b16 %v40
    %v109 = vunpack.c.h.b16 %v40
    %v110 = vunpack.c.l.b16 %v41
    %v111 = vunpack.c.h.b16 %v41
    %v112 = vunpack.c.l.b16 %v42
    %v113 = vunpack.c.h.b16 %v42
    %v114 = vunpack.c.l.b16 %v43
    %v115 = vunpack.c.h.b16 %v43
    %v116 = vunpack.c.l.b16 %v44
    %v117 = vunpack.c.h.b16 %v44
    %v118 = vunpack.c.l.b16 %v45
    %v119 = vunpack.c.h.b16 %v45
    %v120 = vunpack.c.l.b16 %v46
    %v121 = vunpack.c.h.b16 %v46
    %v122 = vunpack.c.l.b16 %v47
    %v123 = vunpack.c.h.b16 %v47
    %v124 = vunpack.c.l.b16 %v48
    %v125 = vunpack.c.h.b16 %v48
    %v126 = vunpack.c.l.b16 %v49
    %v127 = vunpack.c.h.b16 %v49
    %v128 = vunpack.c.l.b16 %v50
    %v129 = vunpack.c.h.b16 %v50
    %v130 = vunpack.c.l.b16 %v51
    %v131 = vunpack.c.h.b16 %v51
    %v132 = vunpack.c.l.b16 %v52
    %v133 = vunpack.c.h.b16 %v52
    %v134 = vunpack.c.l.b16 %v53
    %v135 = vunpack.c.h.b16 %v53
    %v136 = vunpack.c.l.b16 %v54
    %v137 = vunpack.c.h.b16 %v54
    %v138 = vunpack.c.l.b16 %v55
    %v139 = vunpack.c.h.b16 %v55
    %v140 = vpack.c.b16 %v110, %v108
    %v141 = vpack.c.b16 %v111, %v109
    %v142 = vpack.c.b16 %v114, %v112
    %v143 = vpack.c.b16 %v115, %v113
    %v144 = vpack.c.b16 %v118, %v116
    %v145 = vpack.c.b16 %v119, %v117
    %v146 = vpack.c.b16 %v122, %v120
    %v147 = vpack.c.b16 %v123, %v121
    %v148 = vpack.c.b16 %v126, %v124
    %v149 = vpack.c.b16 %v127, %v125
    %v150 = vpack.c.b16 %v130, %v128
    %v151 = vpack.c.b16 %v131, %v129
    %v152 = vpack.c.b16 %v134, %v132
    %v153 = vpack.c.b16 %v135, %v133
    %v154 = vpack.c.b16 %v138, %v136
    %v155 = vpack.c.b16 %v139, %v137
    %v204 = vunpack.c.l.b16 %v56
    %v205 = vunpack.c.l.b16 %v57
    %v206 = vunpack.c.l.b16 %v58
    %v207 = vunpack.c.l.b16 %v59
    %v208 = vunpack.c.l.b16 %v60
    %v209 = vunpack.c.l.b16 %v61
    %v210 = vunpack.c.l.b16 %v62
    %v211 = vunpack.c.l.b16 %v63
    %v212 = vunpack.c.l.b16 %v64
    %v213 = vunpack.c.l.b16 %v65
    %v214 = vunpack.c.l.b16 %v66
    %v215 = vunpack.c.l.b16 %v67
    %v216 = vunpack.c.l.b16 %v68
    %v217 = vunpack.c.l.b16 %v69
    %v218 = vunpack.c.l.b16 %v70
    %v219 = vunpack.c.l.b16 %v71
    %v220 = vunpack.c.l.b16 %v72
    %v221 = vunpack.c.l.b16 %v73
    %v222 = vunpack.c.l.b16 %v74
    %v223 = vunpack.c.l.b16 %v75
    %v224 = vunpack.c.l.b16 %v76
    %v225 = vunpack.c.l.b16 %v77
    %v226 = vunpack.c.l.b16 %v78
    %v227 = vunpack.c.l.b16 %v79
    %v228 = vunpack.c.l.b16 %v80
    %v229 = vunpack.c.l.b16 %v81
    %v230 = vunpack.c.l.b16 %v82
    %v231 = vunpack.c.l.b16 %v83
    %v232 = vunpack.c.l.b16 %v84
    %v233 = vunpack.c.l.b16 %v85
    %v234 = vunpack.c.l.b16 %v86
    %v235 = vunpack.c.l.b16 %v87
    %v236 = vpack.c.b16 %v205, %v204
    %v237 = vpack.c.b16 %v207, %v206
    %v238 = vpack.c.b16 %v209, %v208
    %v239 = vpack.c.b16 %v211, %v210
    %v240 = vpack.c.b16 %v213, %v212
    %v241 = vpack.c.b16 %v215, %v214
    %v242 = vpack.c.b16 %v217, %v216
    %v243 = vpack.c.b16 %v219, %v218
    %v244 = vpack.c.b16 %v221, %v220
    %v245 = vpack.c.b16 %v223, %v222
    %v246 = vpack.c.b16 %v225, %v224
    %v247 = vpack.c.b16 %v227, %v226
    %v248 = vpack.c.b16 %v229, %v228
    %v249 = vpack.c.b16 %v231, %v230
    %v250 = vpack.c.b16 %v233, %v232
    %v251 = vpack.c.b16 %v235, %v234
    %268 = vmatpush.bf16.msra.mxu0 %v243
    %269 = vmatpush.bf16.msra.mxu0 %v242
    %270 = vmatpush.bf16.msra.mxu0 %v241
    %271 = vmatpush.bf16.msra.mxu0 %v240
    %272 = vmatpush.bf16.msra.mxu0 %v239
    %273 = vmatpush.bf16.msra.mxu0 %v238
    %274 = vmatpush.bf16.msra.mxu0 %v237
    %275 = vmatpush.bf16.msra.mxu0 %v236
    %276 = vmatmul.bf16.gmra.mxu0 %v140
    %v277 = vpop.f32.mrf.mxu0
    %v278 = vadd.f32 %v90, %v277
    %v279 = vpop.f32.mrf.mxu0
    %v280 = vadd.f32 %v90, %v279
    %281 = vmatmul.bf16.gmra.mxu0 %v142
    %v282 = vpop.f32.mrf.mxu0
    %v283 = vadd.f32 %v90, %v282
    %v284 = vpop.f32.mrf.mxu0
    %v285 = vadd.f32 %v90, %v284
    %286 = vmatmul.bf16.gmra.mxu0 %v144
    %v287 = vpop.f32.mrf.mxu0
    %v288 = vadd.f32 %v90, %v287
    %v289 = vpop.f32.mrf.mxu0
    %v290 = vadd.f32 %v90, %v289
    %291 = vmatmul.bf16.gmra.mxu0 %v146
    %v292 = vpop.f32.mrf.mxu0
    %v293 = vadd.f32 %v90, %v292
    %v294 = vpop.f32.mrf.mxu0
    %v295 = vadd.f32 %v90, %v294
    %296 = vmatmul.bf16.gmra.mxu0 %v148
    %v297 = vpop.f32.mrf.mxu0
    %v298 = vadd.f32 %v90, %v297
    %v299 = vpop.f32.mrf.mxu0
    %v300 = vadd.f32 %v90, %v299
    %301 = vmatmul.bf16.gmra.mxu0 %v150
    %v302 = vpop.f32.mrf.mxu0
    %v303 = vadd.f32 %v90, %v302
    %v304 = vpop.f32.mrf.mxu0
    %v305 = vadd.f32 %v90, %v304
    %306 = vmatmul.bf16.gmra.mxu0 %v152
    %v307 = vpop.f32.mrf.mxu0
    %v308 = vadd.f32 %v90, %v307
    %v309 = vpop.f32.mrf.mxu0
    %v310 = vadd.f32 %v90, %v309
    %311 = vmatmul.bf16.gmra.mxu0 %v154
    %v312 = vpop.f32.mrf.mxu0
    %v313 = vadd.f32 %v90, %v312
    %v314 = vpop.f32.mrf.mxu0
    %v315 = vadd.f32 %v90, %v314
    %316 = vdwg.mxu0
    %317 = vmatpush.bf16.msra.mxu0 %v251
    %318 = vmatpush.bf16.msra.mxu0 %v250
    %319 = vmatpush.bf16.msra.mxu0 %v249
    %320 = vmatpush.bf16.msra.mxu0 %v248
    %321 = vmatpush.bf16.msra.mxu0 %v247
    %322 = vmatpush.bf16.msra.mxu0 %v246
    %323 = vmatpush.bf16.msra.mxu0 %v245
    %324 = vmatpush.bf16.msra.mxu0 %v244
    %325 = vmatmul.bf16.gmra.mxu0 %v141
    %v326 = vpop.f32.mrf.mxu0
    %v327 = vadd.f32 %v278, %v326
    %v328 = vpop.f32.mrf.mxu0
    %v329 = vadd.f32 %v280, %v328
    %330 = vmatmul.bf16.gmra.mxu0 %v143
    %v331 = vpop.f32.mrf.mxu0
    %v332 = vadd.f32 %v283, %v331
    %v333 = vpop.f32.mrf.mxu0
    %v334 = vadd.f32 %v285, %v333
    %335 = vmatmul.bf16.gmra.mxu0 %v145
    %v336 = vpop.f32.mrf.mxu0
    %v337 = vadd.f32 %v288, %v336
    %v338 = vpop.f32.mrf.mxu0
    %v339 = vadd.f32 %v290, %v338
    %340 = vmatmul.bf16.gmra.mxu0 %v147
    %v341 = vpop.f32.mrf.mxu0
    %v342 = vadd.f32 %v293, %v341
    %v343 = vpop.f32.mrf.mxu0
    %v344 = vadd.f32 %v295, %v343
    %345 = vmatmul.bf16.gmra.mxu0 %v149
    %v346 = vpop.f32.mrf.mxu0
    %v347 = vadd.f32 %v298, %v346
    %v348 = vpop.f32.mrf.mxu0
    %v349 = vadd.f32 %v300, %v348
    %350 = vmatmul.bf16.gmra.mxu0 %v151
    %v351 = vpop.f32.mrf.mxu0
    %v352 = vadd.f32 %v303, %v351
    %v353 = vpop.f32.mrf.mxu0
    %v354 = vadd.f32 %v305, %v353
    %355 = vmatmul.bf16.gmra.mxu0 %v153
    %v356 = vpop.f32.mrf.mxu0
    %v357 = vadd.f32 %v308, %v356
    %v358 = vpop.f32.mrf.mxu0
    %v359 = vadd.f32 %v310, %v358
    %360 = vmatmul.bf16.gmra.mxu0 %v155
    %v361 = vpop.f32.mrf.mxu0
    %v362 = vadd.f32 %v313, %v361
    %v363 = vpop.f32.mrf.mxu0
    %v364 = vadd.f32 %v315, %v363
    %365 = vdwg.mxu0
    %v366 = vmax.f32 %v327, 0.0
    %v367 = vmax.f32 %v329, 0.0
    %v368 = vmax.f32 %v332, 0.0
    %v369 = vmax.f32 %v334, 0.0
    %v370 = vmax.f32 %v337, 0.0
    %v371 = vmax.f32 %v339, 0.0
    %v372 = vmax.f32 %v342, 0.0
    %v373 = vmax.f32 %v344, 0.0
    %v374 = vmax.f32 %v347, 0.0
    %v375 = vmax.f32 %v349, 0.0
    %v376 = vmax.f32 %v352, 0.0
    %v377 = vmax.f32 %v354, 0.0
    %v378 = vmax.f32 %v357, 0.0
    %v379 = vmax.f32 %v359, 0.0
    %v380 = vmax.f32 %v362, 0.0
    %v381 = vmax.f32 %v364, 0.0
    %vm382 = vcmask 261120
    %383 = vst.msk [vmem:[#allocation2] sm:$0xff] %vm382, %v366
    %384 = vst.msk [vmem:[#allocation2 + $0x10] sm:$0xff] %vm382, %v367
    %387 = vrot.lane.b32.xlu0 %v368, 32
    %v388 = vpop.permute.xlu0 %387
    %389 = vrot.lane.b32.xlu0 %v369, 32
    %v390 = vpop.permute.xlu0 %389
    %vm393 = vcmask 523520
    %394 = vst.msk [vmem:[#allocation2] sm:$0xff] %vm393, %v388
    %395 = vst.msk [vmem:[#allocation2 + $0x10] sm:$0xff] %vm393, %v390
    %398 = vrot.lane.b32.xlu0 %v370, 64
    %v399 = vpop.permute.xlu0 %398
    %400 = vrot.lane.b32.xlu0 %v371, 64
    %v401 = vpop.permute.xlu0 %400
    %vm404 = vcmask 785920
    %405 = vst.msk [vmem:[#allocation2] sm:$0xff] %vm404, %v399
    %406 = vst.msk [vmem:[#allocation2 + $0x10] sm:$0xff] %vm404, %v401
    %409 = vrot.lane.b32.xlu0 %v372, 96
    %v410 = vpop.permute.xlu0 %409
    %411 = vrot.lane.b32.xlu0 %v373, 96
    %v412 = vpop.permute.xlu0 %411
    %vm415 = vcmask 1048320
    %416 = vst.msk [vmem:[#allocation2] sm:$0xff] %vm415, %v410
    %417 = vst.msk [vmem:[#allocation2 + $0x10] sm:$0xff] %vm415, %v412
    %418 = vst.msk [vmem:[#allocation2 + $0x8] sm:$0xff] %vm382, %v374
    %419 = vst.msk [vmem:[#allocation2 + $0x18] sm:$0xff] %vm382, %v375
    %422 = vrot.lane.b32.xlu0 %v376, 32
    %v423 = vpop.permute.xlu0 %422
    %424 = vrot.lane.b32.xlu0 %v377, 32
    %v425 = vpop.permute.xlu0 %424
    %428 = vst.msk [vmem:[#allocation2 + $0x8] sm:$0xff] %vm393, %v423
    %429 = vst.msk [vmem:[#allocation2 + $0x18] sm:$0xff] %vm393, %v425
    %432 = vrot.lane.b32.xlu0 %v378, 64
    %v433 = vpop.permute.xlu0 %432
    %434 = vrot.lane.b32.xlu0 %v379, 64
    %v435 = vpop.permute.xlu0 %434
    %438 = vst.msk [vmem:[#allocation2 + $0x8] sm:$0xff] %vm404, %v433
    %439 = vst.msk [vmem:[#allocation2 + $0x18] sm:$0xff] %vm404, %v435
    %442 = vrot.lane.b32.xlu0 %v380, 96
    %v443 = vpop.permute.xlu0 %442
    %444 = vrot.lane.b32.xlu0 %v381, 96
    %v445 = vpop.permute.xlu0 %444
    %448 = vst.msk [vmem:[#allocation2 + $0x8] sm:$0xff] %vm415, %v443
    %449 = vst.msk [vmem:[#allocation2 + $0x18] sm:$0xff] %vm415, %v445
    %v450 = vld [vmem:[#allocation2] ss:$0 sm:$0xff]
    %v451 = vld [vmem:[#allocation2 + $0x10] ss:$0 sm:$0xff]
    %vm454 = vcmask 1044484
    %v455 = vsel %vm454, %v450, %v450
    %vm456 = vcmask 1046534
    %v457 = vsel %vm456, %v450, %v455
    %v458 = vrot.slane %v451, 7
    %vm459 = vcmask 1041409
    %v460 = vsel %vm459, %v458, %v457
    %vm461 = vcmask 1043459
    %v462 = vsel %vm461, %v458, %v460
    %vm463 = vcmask 1045509
    %v464 = vsel %vm463, %v458, %v462
    %vm465 = vcmask 1047559
    %v466 = vsel %vm465, %v458, %v464
    %468 = vst [vmem:[#allocation3] sm:$0x3] %v466
    %v469 = vld [vmem:[#allocation2 + $0x1] ss:$0 sm:$0xff]
    %v470 = vld [vmem:[#allocation2 + $0x11] ss:$0 sm:$0xff]
    %v473 = vsel %vm454, %v469, %v469
    %v474 = vsel %vm456, %v469, %v473
    %v475 = vrot.slane %v470, 7
    %v476 = vsel %vm459, %v475, %v474
    %v477 = vsel %vm461, %v475, %v476
    %v478 = vsel %vm463, %v475, %v477
    %v479 = vsel %vm465, %v475, %v478
    %481 = vst [vmem:[#allocation3 + $0x2] sm:$0x3] %v479
    %v482 = vld [vmem:[#allocation2 + $0x2] ss:$0 sm:$0xff]
    %v483 = vld [vmem:[#allocation2 + $0x12] ss:$0 sm:$0xff]
    %v486 = vsel %vm454, %v482, %v482
    %v487 = vsel %vm456, %v482, %v486
    %v488 = vrot.slane %v483, 7
    %v489 = vsel %vm459, %v488, %v487
    %v490 = vsel %vm461, %v488, %v489
    %v491 = vsel %vm463, %v488, %v490
    %v492 = vsel %vm465, %v488, %v491
    %494 = vst [vmem:[#allocation3 + $0x4] sm:$0x3] %v492
    %v495 = vld [vmem:[#allocation2 + $0x3] ss:$0 sm:$0xff]
    %v496 = vld [vmem:[#allocation2 + $0x13] ss:$0 sm:$0xff]
    %v499 = vsel %vm454, %v495, %v495
    %v500 = vsel %vm456, %v495, %v499
    %v501 = vrot.slane %v496, 7
    %v502 = vsel %vm459, %v501, %v500
    %v503 = vsel %vm461, %v501, %v502
    %v504 = vsel %vm463, %v501, %v503
    %v505 = vsel %vm465, %v501, %v504
    %507 = vst [vmem:[#allocation3 + $0x6] sm:$0x3] %v505
    %v508 = vld [vmem:[#allocation2] ss:$0 sm:$0xff]
    %v509 = vld [vmem:[#allocation2 + $0x8] ss:$0 sm:$0xff]
    %v510 = vld [vmem:[#allocation2 + $0x10] ss:$0 sm:$0xff]
    %v511 = vld [vmem:[#allocation2 + $0x18] ss:$0 sm:$0xff]
    %v516 = vrot.slane %v509, 6
    %v517 = vrot.slane %v511, 6
    %vm518 = vcmask 1041408
    %v519 = vsel %vm518, %v508, %v516
    %v520 = vsel %vm518, %v510, %v517
    %v521 = vsel %vm454, %v519, %v519
    %v522 = vsel %vm456, %v519, %v521
    %v523 = vrot.slane %v520, 7
    %v524 = vsel %vm459, %v523, %v522
    %v525 = vsel %vm461, %v523, %v524
    %v526 = vsel %vm463, %v523, %v525
    %v527 = vsel %vm465, %v523, %v526
    %528 = vrot.lane.b32.xlu0 %v527, 64
    %v529 = vpop.permute.xlu0 %528
    %v530 = vrot.slane %v529, 2
    %vm531 = vcmask 523264
    %v532 = vsel %vm531, %v529, %v530
    %s534 = scalar_lea.vmem [#allocation3], 8
    %535 = vst [vmem:[%s534] sm:$0x3] %v532
    %v536 = vld [vmem:[#allocation2 + $0x1] ss:$0 sm:$0xff]
    %v537 = vld [vmem:[#allocation2 + $0x9] ss:$0 sm:$0xff]
    %v538 = vld [vmem:[#allocation2 + $0x11] ss:$0 sm:$0xff]
    %v539 = vld [vmem:[#allocation2 + $0x19] ss:$0 sm:$0xff]
    %v544 = vrot.slane %v537, 6
    %v545 = vrot.slane %v539, 6
    %v546 = vsel %vm518, %v536, %v544
    %v547 = vsel %vm518, %v538, %v545
    %v548 = vsel %vm454, %v546, %v546
    %v549 = vsel %vm456, %v546, %v548
    %v550 = vrot.slane %v547, 7
    %v551 = vsel %vm459, %v550, %v549
    %v552 = vsel %vm461, %v550, %v551
    %v553 = vsel %vm463, %v550, %v552
    %v554 = vsel %vm465, %v550, %v553
    %555 = vrot.lane.b32.xlu0 %v554, 64
    %v556 = vpop.permute.xlu0 %555
    %v557 = vrot.slane %v556, 2
    %v558 = vsel %vm531, %v556, %v557
    %560 = vst [vmem:[%s534 + $0x2] sm:$0x3] %v558
    %v561 = vld [vmem:[#allocation2 + $0x2] ss:$0 sm:$0xff]
    %v562 = vld [vmem:[#allocation2 + $0xa] ss:$0 sm:$0xff]
    %v563 = vld [vmem:[#allocation2 + $0x12] ss:$0 sm:$0xff]
    %v564 = vld [vmem:[#allocation2 + $0x1a] ss:$0 sm:$0xff]
    %v569 = vrot.slane %v562, 6
    %v570 = vrot.slane %v564, 6
    %v571 = vsel %vm518, %v561, %v569
    %v572 = vsel %vm518, %v563, %v570
    %v573 = vsel %vm454, %v571, %v571
    %v574 = vsel %vm456, %v571, %v573
    %v575 = vrot.slane %v572, 7
    %v576 = vsel %vm459, %v575, %v574
    %v577 = vsel %vm461, %v575, %v576
    %v578 = vsel %vm463, %v575, %v577
    %v579 = vsel %vm465, %v575, %v578
    %580 = vrot.lane.b32.xlu0 %v579, 64
    %v581 = vpop.permute.xlu0 %580
    %v582 = vrot.slane %v581, 2
    %v583 = vsel %vm531, %v581, %v582
    %585 = vst [vmem:[%s534 + $0x4] sm:$0x3] %v583
    %v586 = vld [vmem:[#allocation2 + $0x3] ss:$0 sm:$0xff]
    %v587 = vld [vmem:[#allocation2 + $0xb] ss:$0 sm:$0xff]
    %v588 = vld [vmem:[#allocation2 + $0x13] ss:$0 sm:$0xff]
    %v589 = vld [vmem:[#allocation2 + $0x1b] ss:$0 sm:$0xff]
    %v594 = vrot.slane %v587, 6
    %v595 = vrot.slane %v589, 6
    %v596 = vsel %vm518, %v586, %v594
    %v597 = vsel %vm518, %v588, %v595
    %v598 = vsel %vm454, %v596, %v596
    %v599 = vsel %vm456, %v596, %v598
    %v600 = vrot.slane %v597, 7
    %v601 = vsel %vm459, %v600, %v599
    %v602 = vsel %vm461, %v600, %v601
    %v603 = vsel %vm463, %v600, %v602
    %v604 = vsel %vm465, %v600, %v603
    %605 = vrot.lane.b32.xlu0 %v604, 64
    %v606 = vpop.permute.xlu0 %605
    %v607 = vrot.slane %v606, 2
    %v608 = vsel %vm531, %v606, %v607
    %610 = vst [vmem:[%s534 + $0x6] sm:$0x3] %v608
    %v611 = vld [vmem:[#allocation2 + $0x8] ss:$0 sm:$0xff]
    %v612 = vld [vmem:[#allocation2 + $0x18] ss:$0 sm:$0xff]
    %v615 = vsel %vm454, %v611, %v611
    %v616 = vsel %vm456, %v611, %v615
    %v617 = vrot.slane %v612, 7
    %v618 = vsel %vm459, %v617, %v616
    %v619 = vsel %vm461, %v617, %v618
    %v620 = vsel %vm463, %v617, %v619
    %v621 = vsel %vm465, %v617, %v620
    %s623 = scalar_lea.vmem [#allocation3], 16
    %624 = vst [vmem:[%s623] sm:$0x3] %v621
    %v625 = vld [vmem:[#allocation2 + $0x9] ss:$0 sm:$0xff]
    %v626 = vld [vmem:[#allocation2 + $0x19] ss:$0 sm:$0xff]
    %v629 = vsel %vm454, %v625, %v625
    %v630 = vsel %vm456, %v625, %v629
    %v631 = vrot.slane %v626, 7
    %v632 = vsel %vm459, %v631, %v630
    %v633 = vsel %vm461, %v631, %v632
    %v634 = vsel %vm463, %v631, %v633
    %v635 = vsel %vm465, %v631, %v634
    %637 = vst [vmem:[%s623 + $0x2] sm:$0x3] %v635
    %v638 = vld [vmem:[#allocation2 + $0xa] ss:$0 sm:$0xff]
    %v639 = vld [vmem:[#allocation2 + $0x1a] ss:$0 sm:$0xff]
    %v642 = vsel %vm454, %v638, %v638
    %v643 = vsel %vm456, %v638, %v642
    %v644 = vrot.slane %v639, 7
    %v645 = vsel %vm459, %v644, %v643
    %v646 = vsel %vm461, %v644, %v645
    %v647 = vsel %vm463, %v644, %v646
    %v648 = vsel %vm465, %v644, %v647
    %650 = vst [vmem:[%s623 + $0x4] sm:$0x3] %v648
    %v651 = vld [vmem:[#allocation2 + $0xb] ss:$0 sm:$0xff]
    %v652 = vld [vmem:[#allocation2 + $0x1b] ss:$0 sm:$0xff]
    %v655 = vsel %vm454, %v651, %v651
    %v656 = vsel %vm456, %v651, %v655
    %v657 = vrot.slane %v652, 7
    %v658 = vsel %vm459, %v657, %v656
    %v659 = vsel %vm461, %v657, %v658
    %v660 = vsel %vm463, %v657, %v659
    %v661 = vsel %vm465, %v657, %v660
    %663 = vst [vmem:[%s623 + $0x6] sm:$0x3] %v661
    %v664 = vld [vmem:[#allocation2 + $0x2] ss:$0 sm:$0xff]
    %v665 = vld [vmem:[#allocation2 + $0x12] ss:$0 sm:$0xff]
    %v668 = vsel %vm454, %v664, %v664
    %v669 = vsel %vm456, %v664, %v668
    %v670 = vrot.slane %v665, 7
    %v671 = vsel %vm459, %v670, %v669
    %v672 = vsel %vm461, %v670, %v671
    %v673 = vsel %vm463, %v670, %v672
    %v674 = vsel %vm465, %v670, %v673
    %s676 = scalar_lea.vmem [#allocation3], 24
    %677 = vst [vmem:[%s676] sm:$0x3] %v674
    %v678 = vld [vmem:[#allocation2 + $0x3] ss:$0 sm:$0xff]
    %v679 = vld [vmem:[#allocation2 + $0x13] ss:$0 sm:$0xff]
    %v682 = vsel %vm454, %v678, %v678
    %v683 = vsel %vm456, %v678, %v682
    %v684 = vrot.slane %v679, 7
    %v685 = vsel %vm459, %v684, %v683
    %v686 = vsel %vm461, %v684, %v685
    %v687 = vsel %vm463, %v684, %v686
    %v688 = vsel %vm465, %v684, %v687
    %690 = vst [vmem:[%s676 + $0x2] sm:$0x3] %v688
    %v691 = vld [vmem:[#allocation2 + $0x4] ss:$0 sm:$0xff]
    %v692 = vld [vmem:[#allocation2 + $0x14] ss:$0 sm:$0xff]
    %v695 = vsel %vm454, %v691, %v691
    %v696 = vsel %vm456, %v691, %v695
    %v697 = vrot.slane %v692, 7
    %v698 = vsel %vm459, %v697, %v696
    %v699 = vsel %vm461, %v697, %v698
    %v700 = vsel %vm463, %v697, %v699
    %v701 = vsel %vm465, %v697, %v700
    %703 = vst [vmem:[%s676 + $0x4] sm:$0x3] %v701
    %v704 = vld [vmem:[#allocation2 + $0x5] ss:$0 sm:$0xff]
    %v705 = vld [vmem:[#allocation2 + $0x15] ss:$0 sm:$0xff]
    %v708 = vsel %vm454, %v704, %v704
    %v709 = vsel %vm456, %v704, %v708
    %v710 = vrot.slane %v705, 7
    %v711 = vsel %vm459, %v710, %v709
    %v712 = vsel %vm461, %v710, %v711
    %v713 = vsel %vm463, %v710, %v712
    %v714 = vsel %vm465, %v710, %v713
    %716 = vst [vmem:[%s676 + $0x6] sm:$0x3] %v714
    %v717 = vld [vmem:[#allocation2 + $0x2] ss:$0 sm:$0xff]
    %v718 = vld [vmem:[#allocation2 + $0xa] ss:$0 sm:$0xff]
    %v719 = vld [vmem:[#allocation2 + $0x12] ss:$0 sm:$0xff]
    %v720 = vld [vmem:[#allocation2 + $0x1a] ss:$0 sm:$0xff]
    %v725 = vrot.slane %v718, 6
    %v726 = vrot.slane %v720, 6
    %v727 = vsel %vm518, %v717, %v725
    %v728 = vsel %vm518, %v719, %v726
    %v729 = vsel %vm454, %v727, %v727
    %v730 = vsel %vm456, %v727, %v729
    %v731 = vrot.slane %v728, 7
    %v732 = vsel %vm459, %v731, %v730
    %v733 = vsel %vm461, %v731, %v732
    %v734 = vsel %vm463, %v731, %v733
    %v735 = vsel %vm465, %v731, %v734
    %736 = vrot.lane.b32.xlu0 %v735, 64
    %v737 = vpop.permute.xlu0 %736
    %v738 = vrot.slane %v737, 2
    %v739 = vsel %vm531, %v737, %v738
    %s741 = scalar_lea.vmem [#allocation3], 32
    %742 = vst [vmem:[%s741] sm:$0x3] %v739
    %v743 = vld [vmem:[#allocation2 + $0x3] ss:$0 sm:$0xff]
    %v744 = vld [vmem:[#allocation2 + $0xb] ss:$0 sm:$0xff]
    %v745 = vld [vmem:[#allocation2 + $0x13] ss:$0 sm:$0xff]
    %v746 = vld [vmem:[#allocation2 + $0x1b] ss:$0 sm:$0xff]
    %v751 = vrot.slane %v744, 6
    %v752 = vrot.slane %v746, 6
    %v753 = vsel %vm518, %v743, %v751
    %v754 = vsel %vm518, %v745, %v752
    %v755 = vsel %vm454, %v753, %v753
    %v756 = vsel %vm456, %v753, %v755
    %v757 = vrot.slane %v754, 7
    %v758 = vsel %vm459, %v757, %v756
    %v759 = vsel %vm461, %v757, %v758
    %v760 = vsel %vm463, %v757, %v759
    %v761 = vsel %vm465, %v757, %v760
    %762 = vrot.lane.b32.xlu0 %v761, 64
    %v763 = vpop.permute.xlu0 %762
    %v764 = vrot.slane %v763, 2
    %v765 = vsel %vm531, %v763, %v764
    %767 = vst [vmem:[%s741 + $0x2] sm:$0x3] %v765
    %v768 = vld [vmem:[#allocation2 + $0x4] ss:$0 sm:$0xff]
    %v769 = vld [vmem:[#allocation2 + $0xc] ss:$0 sm:$0xff]
    %v770 = vld [vmem:[#allocation2 + $0x14] ss:$0 sm:$0xff]
    %v771 = vld [vmem:[#allocation2 + $0x1c] ss:$0 sm:$0xff]
    %v776 = vrot.slane %v769, 6
    %v777 = vrot.slane %v771, 6
    %v778 = vsel %vm518, %v768, %v776
    %v779 = vsel %vm518, %v770, %v777
    %v780 = vsel %vm454, %v778, %v778
    %v781 = vsel %vm456, %v778, %v780
    %v782 = vrot.slane %v779, 7
    %v783 = vsel %vm459, %v782, %v781
    %v784 = vsel %vm461, %v782, %v783
    %v785 = vsel %vm463, %v782, %v784
    %v786 = vsel %vm465, %v782, %v785
    %787 = vrot.lane.b32.xlu0 %v786, 64
    %v788 = vpop.permute.xlu0 %787
    %v789 = vrot.slane %v788, 2
    %v790 = vsel %vm531, %v788, %v789
    %792 = vst [vmem:[%s741 + $0x4] sm:$0x3] %v790
    %v793 = vld [vmem:[#allocation2 + $0x5] ss:$0 sm:$0xff]
    %v794 = vld [vmem:[#allocation2 + $0xd] ss:$0 sm:$0xff]
    %v795 = vld [vmem:[#allocation2 + $0x15] ss:$0 sm:$0xff]
    %v796 = vld [vmem:[#allocation2 + $0x1d] ss:$0 sm:$0xff]
    %v801 = vrot.slane %v794, 6
    %v802 = vrot.slane %v796, 6
    %v803 = vsel %vm518, %v793, %v801
    %v804 = vsel %vm518, %v795, %v802
    %v805 = vsel %vm454, %v803, %v803
    %v806 = vsel %vm456, %v803, %v805
    %v807 = vrot.slane %v804, 7
    %v808 = vsel %vm459, %v807, %v806
    %v809 = vsel %vm461, %v807, %v808
    %v810 = vsel %vm463, %v807, %v809
    %v811 = vsel %vm465, %v807, %v810
    %812 = vrot.lane.b32.xlu0 %v811, 64
    %v813 = vpop.permute.xlu0 %812
    %v814 = vrot.slane %v813, 2
    %v815 = vsel %vm531, %v813, %v814
    %817 = vst [vmem:[%s741 + $0x6] sm:$0x3] %v815
    %v818 = vld [vmem:[#allocation2 + $0xa] ss:$0 sm:$0xff]
    %v819 = vld [vmem:[#allocation2 + $0x1a] ss:$0 sm:$0xff]
    %v822 = vsel %vm454, %v818, %v818
    %v823 = vsel %vm456, %v818, %v822
    %v824 = vrot.slane %v819, 7
    %v825 = vsel %vm459, %v824, %v823
    %v826 = vsel %vm461, %v824, %v825
    %v827 = vsel %vm463, %v824, %v826
    %v828 = vsel %vm465, %v824, %v827
    %s830 = scalar_lea.vmem [#allocation3], 40
    %831 = vst [vmem:[%s830] sm:$0x3] %v828
    %v832 = vld [vmem:[#allocation2 + $0xb] ss:$0 sm:$0xff]
    %v833 = vld [vmem:[#allocation2 + $0x1b] ss:$0 sm:$0xff]
    %v836 = vsel %vm454, %v832, %v832
    %v837 = vsel %vm456, %v832, %v836
    %v838 = vrot.slane %v833, 7
    %v839 = vsel %vm459, %v838, %v837
    %v840 = vsel %vm461, %v838, %v839
    %v841 = vsel %vm463, %v838, %v840
    %v842 = vsel %vm465, %v838, %v841
    %844 = vst [vmem:[%s830 + $0x2] sm:$0x3] %v842
    %v845 = vld [vmem:[#allocation2 + $0xc] ss:$0 sm:$0xff]
    %v846 = vld [vmem:[#allocation2 + $0x1c] ss:$0 sm:$0xff]
    %v849 = vsel %vm454, %v845, %v845
    %v850 = vsel %vm456, %v845, %v849
    %v851 = vrot.slane %v846, 7
    %v852 = vsel %vm459, %v851, %v850
    %v853 = vsel %vm461, %v851, %v852
    %v854 = vsel %vm463, %v851, %v853
    %v855 = vsel %vm465, %v851, %v854
    %857 = vst [vmem:[%s830 + $0x4] sm:$0x3] %v855
    %v858 = vld [vmem:[#allocation2 + $0xd] ss:$0 sm:$0xff]
    %v859 = vld [vmem:[#allocation2 + $0x1d] ss:$0 sm:$0xff]
    %v862 = vsel %vm454, %v858, %v858
    %v863 = vsel %vm456, %v858, %v862
    %v864 = vrot.slane %v859, 7
    %v865 = vsel %vm459, %v864, %v863
    %v866 = vsel %vm461, %v864, %v865
    %v867 = vsel %vm463, %v864, %v866
    %v868 = vsel %vm465, %v864, %v867
    %870 = vst [vmem:[%s830 + $0x6] sm:$0x3] %v868
    %v871 = vld [vmem:[#allocation2 + $0x4] ss:$0 sm:$0xff]
    %v872 = vld [vmem:[#allocation2 + $0x14] ss:$0 sm:$0xff]
    %v875 = vsel %vm454, %v871, %v871
    %v876 = vsel %vm456, %v871, %v875
    %v877 = vrot.slane %v872, 7
    %v878 = vsel %vm459, %v877, %v876
    %v879 = vsel %vm461, %v877, %v878
    %v880 = vsel %vm463, %v877, %v879
    %v881 = vsel %vm465, %v877, %v880
    %s883 = scalar_lea.vmem [#allocation3], 48
    %884 = vst [vmem:[%s883] sm:$0x3] %v881
    %v885 = vld [vmem:[#allocation2 + $0x5] ss:$0 sm:$0xff]
    %v886 = vld [vmem:[#allocation2 + $0x15] ss:$0 sm:$0xff]
    %v889 = vsel %vm454, %v885, %v885
    %v890 = vsel %vm456, %v885, %v889
    %v891 = vrot.slane %v886, 7
    %v892 = vsel %vm459, %v891, %v890
    %v893 = vsel %vm461, %v891, %v892
    %v894 = vsel %vm463, %v891, %v893
    %v895 = vsel %vm465, %v891, %v894
    %897 = vst [vmem:[%s883 + $0x2] sm:$0x3] %v895
    %v898 = vld [vmem:[#allocation2 + $0x6] ss:$0 sm:$0xff]
    %v899 = vld [vmem:[#allocation2 + $0x16] ss:$0 sm:$0xff]
    %v902 = vsel %vm454, %v898, %v898
    %v903 = vsel %vm456, %v898, %v902
    %v904 = vrot.slane %v899, 7
    %v905 = vsel %vm459, %v904, %v903
    %v906 = vsel %vm461, %v904, %v905
    %v907 = vsel %vm463, %v904, %v906
    %v908 = vsel %vm465, %v904, %v907
    %910 = vst [vmem:[%s883 + $0x4] sm:$0x3] %v908
    %v911 = vld [vmem:[#allocation2 + $0x7] ss:$0 sm:$0xff]
    %v912 = vld [vmem:[#allocation2 + $0x17] ss:$0 sm:$0xff]
    %v915 = vsel %vm454, %v911, %v911
    %v916 = vsel %vm456, %v911, %v915
    %v917 = vrot.slane %v912, 7
    %v918 = vsel %vm459, %v917, %v916
    %v919 = vsel %vm461, %v917, %v918
    %v920 = vsel %vm463, %v917, %v919
    %v921 = vsel %vm465, %v917, %v920
    %923 = vst [vmem:[%s883 + $0x6] sm:$0x3] %v921
    %v924 = vld [vmem:[#allocation2 + $0x4] ss:$0 sm:$0xff]
    %v925 = vld [vmem:[#allocation2 + $0xc] ss:$0 sm:$0xff]
    %v926 = vld [vmem:[#allocation2 + $0x14] ss:$0 sm:$0xff]
    %v927 = vld [vmem:[#allocation2 + $0x1c] ss:$0 sm:$0xff]
    %v932 = vrot.slane %v925, 6
    %v933 = vrot.slane %v927, 6
    %v934 = vsel %vm518, %v924, %v932
    %v935 = vsel %vm518, %v926, %v933
    %v936 = vsel %vm454, %v934, %v934
    %v937 = vsel %vm456, %v934, %v936
    %v938 = vrot.slane %v935, 7
    %v939 = vsel %vm459, %v938, %v937
    %v940 = vsel %vm461, %v938, %v939
    %v941 = vsel %vm463, %v938, %v940
    %v942 = vsel %vm465, %v938, %v941
    %943 = vrot.lane.b32.xlu0 %v942, 64
    %v944 = vpop.permute.xlu0 %943
    %v945 = vrot.slane %v944, 2
    %v946 = vsel %vm531, %v944, %v945
    %s948 = scalar_lea.vmem [#allocation3], 56
    %949 = vst [vmem:[%s948] sm:$0x3] %v946
    %v950 = vld [vmem:[#allocation2 + $0x5] ss:$0 sm:$0xff]
    %v951 = vld [vmem:[#allocation2 + $0xd] ss:$0 sm:$0xff]
    %v952 = vld [vmem:[#allocation2 + $0x15] ss:$0 sm:$0xff]
    %v953 = vld [vmem:[#allocation2 + $0x1d] ss:$0 sm:$0xff]
    %v958 = vrot.slane %v951, 6
    %v959 = vrot.slane %v953, 6
    %v960 = vsel %vm518, %v950, %v958
    %v961 = vsel %vm518, %v952, %v959
    %v962 = vsel %vm454, %v960, %v960
    %v963 = vsel %vm456, %v960, %v962
    %v964 = vrot.slane %v961, 7
    %v965 = vsel %vm459, %v964, %v963
    %v966 = vsel %vm461, %v964, %v965
    %v967 = vsel %vm463, %v964, %v966
    %v968 = vsel %vm465, %v964, %v967
    %969 = vrot.lane.b32.xlu0 %v968, 64
    %v970 = vpop.permute.xlu0 %969
    %v971 = vrot.slane %v970, 2
    %v972 = vsel %vm531, %v970, %v971
    %974 = vst [vmem:[%s948 + $0x2] sm:$0x3] %v972
    %v975 = vld [vmem:[#allocation2 + $0x6] ss:$0 sm:$0xff]
    %v976 = vld [vmem:[#allocation2 + $0xe] ss:$0 sm:$0xff]
    %v977 = vld [vmem:[#allocation2 + $0x16] ss:$0 sm:$0xff]
    %v978 = vld [vmem:[#allocation2 + $0x1e] ss:$0 sm:$0xff]
    %v983 = vrot.slane %v976, 6
    %v984 = vrot.slane %v978, 6
    %v985 = vsel %vm518, %v975, %v983
    %v986 = vsel %vm518, %v977, %v984
    %v987 = vsel %vm454, %v985, %v985
    %v988 = vsel %vm456, %v985, %v987
    %v989 = vrot.slane %v986, 7
    %v990 = vsel %vm459, %v989, %v988
    %v991 = vsel %vm461, %v989, %v990
    %v992 = vsel %vm463, %v989, %v991
    %v993 = vsel %vm465, %v989, %v992
    %994 = vrot.lane.b32.xlu0 %v993, 64
    %v995 = vpop.permute.xlu0 %994
    %v996 = vrot.slane %v995, 2
    %v997 = vsel %vm531, %v995, %v996
    %999 = vst [vmem:[%s948 + $0x4] sm:$0x3] %v997
    %v1000 = vld [vmem:[#allocation2 + $0x7] ss:$0 sm:$0xff]
    %v1001 = vld [vmem:[#allocation2 + $0xf] ss:$0 sm:$0xff]
    %v1002 = vld [vmem:[#allocation2 + $0x17] ss:$0 sm:$0xff]
    %v1003 = vld [vmem:[#allocation2 + $0x1f] ss:$0 sm:$0xff]
    %v1008 = vrot.slane %v1001, 6
    %v1009 = vrot.slane %v1003, 6
    %v1010 = vsel %vm518, %v1000, %v1008
    %v1011 = vsel %vm518, %v1002, %v1009
    %v1012 = vsel %vm454, %v1010, %v1010
    %v1013 = vsel %vm456, %v1010, %v1012
    %v1014 = vrot.slane %v1011, 7
    %v1015 = vsel %vm459, %v1014, %v1013
    %v1016 = vsel %vm461, %v1014, %v1015
    %v1017 = vsel %vm463, %v1014, %v1016
    %v1018 = vsel %vm465, %v1014, %v1017
    %1019 = vrot.lane.b32.xlu0 %v1018, 64
    %v1020 = vpop.permute.xlu0 %1019
    %v1021 = vrot.slane %v1020, 2
    %v1022 = vsel %vm531, %v1020, %v1021
    %1024 = vst [vmem:[%s948 + $0x6] sm:$0x3] %v1022
    %v1025 = vld [vmem:[#allocation2 + $0xc] ss:$0 sm:$0xff]
    %v1026 = vld [vmem:[#allocation2 + $0x1c] ss:$0 sm:$0xff]
    %v1029 = vsel %vm454, %v1025, %v1025
    %v1030 = vsel %vm456, %v1025, %v1029
    %v1031 = vrot.slane %v1026, 7
    %v1032 = vsel %vm459, %v1031, %v1030
    %v1033 = vsel %vm461, %v1031, %v1032
    %v1034 = vsel %vm463, %v1031, %v1033
    %v1035 = vsel %vm465, %v1031, %v1034
    %s1037 = scalar_lea.vmem [#allocation3], 64
    %1038 = vst [vmem:[%s1037] sm:$0x3] %v1035
    %v1039 = vld [vmem:[#allocation2 + $0xd] ss:$0 sm:$0xff]
    %v1040 = vld [vmem:[#allocation2 + $0x1d] ss:$0 sm:$0xff]
    %v1043 = vsel %vm454, %v1039, %v1039
    %v1044 = vsel %vm456, %v1039, %v1043
    %v1045 = vrot.slane %v1040, 7
    %v1046 = vsel %vm459, %v1045, %v1044
    %v1047 = vsel %vm461, %v1045, %v1046
    %v1048 = vsel %vm463, %v1045, %v1047
    %v1049 = vsel %vm465, %v1045, %v1048
    %1051 = vst [vmem:[%s1037 + $0x2] sm:$0x3] %v1049
    %v1052 = vld [vmem:[#allocation2 + $0xe] ss:$0 sm:$0xff]
    %v1053 = vld [vmem:[#allocation2 + $0x1e] ss:$0 sm:$0xff]
    %v1056 = vsel %vm454, %v1052, %v1052
    %v1057 = vsel %vm456, %v1052, %v1056
    %v1058 = vrot.slane %v1053, 7
    %v1059 = vsel %vm459, %v1058, %v1057
    %v1060 = vsel %vm461, %v1058, %v1059
    %v1061 = vsel %vm463, %v1058, %v1060
    %v1062 = vsel %vm465, %v1058, %v1061
    %1064 = vst [vmem:[%s1037 + $0x4] sm:$0x3] %v1062
    %v1065 = vld [vmem:[#allocation2 + $0xf] ss:$0 sm:$0xff]
    %v1066 = vld [vmem:[#allocation2 + $0x1f] ss:$0 sm:$0xff]
    %v1069 = vsel %vm454, %v1065, %v1065
    %v1070 = vsel %vm456, %v1065, %v1069
    %v1071 = vrot.slane %v1066, 7
    %v1072 = vsel %vm459, %v1071, %v1070
    %v1073 = vsel %vm461, %v1071, %v1072
    %v1074 = vsel %vm463, %v1071, %v1073
    %v1075 = vsel %vm465, %v1071, %v1074
    %1077 = vst [vmem:[%s1037 + $0x6] sm:$0x3] %v1075
    %v1078 = vld [vmem:[#allocation3] sm:$0xff]
    %v1079 = vld [vmem:[#allocation3 + $0x8] sm:$0xff]
    %v1080 = vld [vmem:[#allocation3 + $0x10] sm:$0xff]
    %v1081 = vld [vmem:[#allocation3 + $0x18] sm:$0xff]
    %v1082 = vld [vmem:[#allocation3 + $0x20] sm:$0xff]
    %v1083 = vld [vmem:[#allocation3 + $0x28] sm:$0xff]
    %v1084 = vld [vmem:[#allocation3 + $0x30] sm:$0xff]
    %v1085 = vld [vmem:[#allocation3 + $0x38] sm:$0xff]
    %v1086 = vld [vmem:[#allocation3 + $0x40] sm:$0xff]
    %1096 = vst [vmem:[#allocation1] ss:$4 sm:$0xff] %v1078
    %s1097 = scalar_lea.vmem [#allocation1], 1
    %1098 = vst [vmem:[%s1097] ss:$4 sm:$0xff] %v1079
    %s1099 = scalar_lea.vmem [#allocation1], 2
    %1100 = vst [vmem:[%s1099] ss:$4 sm:$0xff] %v1080
    %s1101 = scalar_lea.vmem [#allocation1], 3
    %1102 = vst [vmem:[%s1101] ss:$4 sm:$0xff] %v1081
    %s1103 = scalar_lea.vmem [#allocation1], 32
    %1104 = vst [vmem:[%s1103] ss:$4 sm:$0xff] %v1082
    %s1105 = scalar_lea.vmem [#allocation1], 33
    %1106 = vst [vmem:[%s1105] ss:$4 sm:$0xff] %v1083
    %s1107 = scalar_lea.vmem [#allocation1], 34
    %1108 = vst [vmem:[%s1107] ss:$4 sm:$0xff] %v1084
    %s1109 = scalar_lea.vmem [#allocation1], 35
    %1110 = vst [vmem:[%s1109] ss:$4 sm:$0xff] %v1085
    %v1111 = vld.sshfl [vmem:[#allocation1] sm:$0xff pattern:$0x73625140]
    %v1112 = vld.sshfl [vmem:[#allocation1 + $0x8] sm:$0xff pattern:$0x73625140]
    %v1113 = vld.sshfl [vmem:[#allocation1 + $0x10] sm:$0xff pattern:$0x73625140]
    %v1114 = vld.sshfl [vmem:[#allocation1 + $0x18] sm:$0xff pattern:$0x73625140]
    %v1115 = vld.sshfl [vmem:[#allocation1 + $0x20] sm:$0xff pattern:$0x73625140]
    %v1116 = vld.sshfl [vmem:[#allocation1 + $0x28] sm:$0xff pattern:$0x73625140]
    %v1117 = vld.sshfl [vmem:[#allocation1 + $0x30] sm:$0xff pattern:$0x73625140]
    %v1118 = vld.sshfl [vmem:[#allocation1 + $0x38] sm:$0xff pattern:$0x73625140]
    %1119 = vst [vmem:[#allocation1] ss:$4 sm:$0xff] %v1086
    %v1120 = vld.sshfl [vmem:[#allocation1] sm:$0xff pattern:$0x73625140]
    %v1121 = vld.sshfl [vmem:[#allocation1 + $0x8] sm:$0xff pattern:$0x73625140]
    %v1122 = vld.sshfl [vmem:[#allocation1 + $0x10] sm:$0xff pattern:$0x73625140]
    %v1123 = vld.sshfl [vmem:[#allocation1 + $0x18] sm:$0xff pattern:$0x73625140]
    %v1136 = vpack.c.bf16 %v1115, %v1111
    %v1137 = vpack.c.bf16 %v1116, %v1112
    %v1138 = vpack.c.bf16 %v1117, %v1113
    %v1139 = vpack.c.bf16 %v1118, %v1114
    %v1140 = vpack.c.bf16 %v1120, %v1120
    %v1141 = vpack.c.bf16 %v1121, %v1121
    %v1142 = vpack.c.bf16 %v1122, %v1122
    %v1143 = vpack.c.bf16 %v1123, %v1123
    %v1144 = vld [vmem:[%s3] sm:$0xf]
    %v1145 = vld [vmem:[%s3 + $0x4] sm:$0xf]
    %v1146 = vld [vmem:[%s3 + $0x8] sm:$0xf]
    %v1147 = vld [vmem:[%s3 + $0xc] sm:$0xf]
    %v1148 = vld [vmem:[%s3 + $0x10] sm:$0xf]
    %v1149 = vld [vmem:[%s3 + $0x14] sm:$0xf]
    %v1150 = vld [vmem:[%s3 + $0x18] sm:$0xf]
    %v1151 = vld [vmem:[%s3 + $0x1c] sm:$0xf]
    %v1152 = vld [vmem:[%s3 + $0x20] sm:$0xf]
    %v1153 = vld [vmem:[%s3 + $0x24] sm:$0xf]
    %v1154 = vld [vmem:[%s3 + $0x28] sm:$0xf]
    %v1155 = vld [vmem:[%s3 + $0x2c] sm:$0xf]
    %v1156 = vld [vmem:[%s3 + $0x30] sm:$0xf]
    %v1157 = vld [vmem:[%s3 + $0x34] sm:$0xf]
    %v1158 = vld [vmem:[%s3 + $0x38] sm:$0xf]
    %v1159 = vld [vmem:[%s3 + $0x3c] sm:$0xf]
    %v1160 = vld [vmem:[%s3 + $0x40] sm:$0xf]
    %v1161 = vld [vmem:[%s3 + $0x44] sm:$0xf]
    %v1162 = vld [vmem:[%s3 + $0x48] sm:$0xf]
    %v1163 = vld [vmem:[%s3 + $0x4c] sm:$0xf]
    %v1164 = vld [vmem:[%s3 + $0x50] sm:$0xf]
    %v1165 = vld [vmem:[%s3 + $0x54] sm:$0xf]
    %v1166 = vld [vmem:[%s3 + $0x58] sm:$0xf]
    %v1167 = vld [vmem:[%s3 + $0x5c] sm:$0xf]
    %v1168 = vld [vmem:[%s3 + $0x60] sm:$0xf]
    %v1169 = vld [vmem:[%s3 + $0x64] sm:$0xf]
    %v1170 = vld [vmem:[%s3 + $0x68] sm:$0xf]
    %v1171 = vld [vmem:[%s3 + $0x6c] sm:$0xf]
    %v1172 = vld [vmem:[%s3 + $0x70] sm:$0xf]
    %v1173 = vld [vmem:[%s3 + $0x74] sm:$0xf]
    %v1174 = vld [vmem:[%s3 + $0x78] sm:$0xf]
    %v1175 = vld [vmem:[%s3 + $0x7c] sm:$0xf]
    %v1176 = vld [vmem:[%s3 + $0x80] sm:$0xf]
    %v1177 = vld [vmem:[%s3 + $0x84] sm:$0xf]
    %v1178 = vld [vmem:[%s3 + $0x88] sm:$0xf]
    %v1179 = vld [vmem:[%s3 + $0x8c] sm:$0xf]
    %v1180 = vld [vmem:[%s3 + $0x90] sm:$0xf]
    %v1181 = vld [vmem:[%s3 + $0x94] sm:$0xf]
    %v1182 = vld [vmem:[%s3 + $0x98] sm:$0xf]
    %v1183 = vld [vmem:[%s3 + $0x9c] sm:$0xf]
    %v1184 = vld [vmem:[%s3 + $0xa0] sm:$0xf]
    %v1185 = vld [vmem:[%s3 + $0xa4] sm:$0xf]
    %v1186 = vld [vmem:[%s3 + $0xa8] sm:$0xf]
    %v1187 = vld [vmem:[%s3 + $0xac] sm:$0xf]
    %v1188 = vld [vmem:[%s3 + $0xb0] sm:$0xf]
    %v1189 = vld [vmem:[%s3 + $0xb4] sm:$0xf]
    %v1190 = vld [vmem:[%s3 + $0xb8] sm:$0xf]
    %v1191 = vld [vmem:[%s3 + $0xbc] sm:$0xf]
    %v1192 = vld [vmem:[%s3 + $0xc0] sm:$0xf]
    %v1193 = vld [vmem:[%s3 + $0xc4] sm:$0xf]
    %v1194 = vld [vmem:[%s3 + $0xc8] sm:$0xf]
    %v1195 = vld [vmem:[%s3 + $0xcc] sm:$0xf]
    %v1196 = vld [vmem:[%s3 + $0xd0] sm:$0xf]
    %v1197 = vld [vmem:[%s3 + $0xd4] sm:$0xf]
    %v1198 = vld [vmem:[%s3 + $0xd8] sm:$0xf]
    %v1199 = vld [vmem:[%s3 + $0xdc] sm:$0xf]
    %v1200 = vld [vmem:[%s3 + $0xe0] sm:$0xf]
    %v1201 = vld [vmem:[%s3 + $0xe4] sm:$0xf]
    %v1202 = vld [vmem:[%s3 + $0xe8] sm:$0xf]
    %v1203 = vld [vmem:[%s3 + $0xec] sm:$0xf]
    %v1204 = vld [vmem:[%s3 + $0xf0] sm:$0xf]
    %v1205 = vld [vmem:[%s3 + $0xf4] sm:$0xf]
    %v1206 = vld [vmem:[%s3 + $0xf8] sm:$0xf]
    %v1207 = vld [vmem:[%s3 + $0xfc] sm:$0xf]
    %v1208 = vld [vmem:[%s4] sm:$0x1]
    %v1210 = vperm.slane %v1208, 0
    %v1276 = vunpack.c.l.b16 %v1144
    %v1277 = vunpack.c.l.b16 %v1145
    %v1278 = vunpack.c.l.b16 %v1146
    %v1279 = vunpack.c.l.b16 %v1147
    %v1280 = vunpack.c.l.b16 %v1148
    %v1281 = vunpack.c.l.b16 %v1149
    %v1282 = vunpack.c.l.b16 %v1150
    %v1283 = vunpack.c.l.b16 %v1151
    %v1284 = vunpack.c.l.b16 %v1152
    %v1285 = vunpack.c.l.b16 %v1153
    %v1286 = vunpack.c.l.b16 %v1154
    %v1287 = vunpack.c.l.b16 %v1155
    %v1288 = vunpack.c.l.b16 %v1156
    %v1289 = vunpack.c.l.b16 %v1157
    %v1290 = vunpack.c.l.b16 %v1158
    %v1291 = vunpack.c.l.b16 %v1159
    %v1292 = vunpack.c.l.b16 %v1160
    %v1293 = vunpack.c.l.b16 %v1161
    %v1294 = vunpack.c.l.b16 %v1162
    %v1295 = vunpack.c.l.b16 %v1163
    %v1296 = vunpack.c.l.b16 %v1164
    %v1297 = vunpack.c.l.b16 %v1165
    %v1298 = vunpack.c.l.b16 %v1166
    %v1299 = vunpack.c.l.b16 %v1167
    %v1300 = vunpack.c.l.b16 %v1168
    %v1301 = vunpack.c.l.b16 %v1169
    %v1302 = vunpack.c.l.b16 %v1170
    %v1303 = vunpack.c.l.b16 %v1171
    %v1304 = vunpack.c.l.b16 %v1172
    %v1305 = vunpack.c.l.b16 %v1173
    %v1306 = vunpack.c.l.b16 %v1174
    %v1307 = vunpack.c.l.b16 %v1175
    %v1308 = vunpack.c.l.b16 %v1176
    %v1309 = vunpack.c.l.b16 %v1177
    %v1310 = vunpack.c.l.b16 %v1178
    %v1311 = vunpack.c.l.b16 %v1179
    %v1312 = vunpack.c.l.b16 %v1180
    %v1313 = vunpack.c.l.b16 %v1181
    %v1314 = vunpack.c.l.b16 %v1182
    %v1315 = vunpack.c.l.b16 %v1183
    %v1316 = vunpack.c.l.b16 %v1184
    %v1317 = vunpack.c.l.b16 %v1185
    %v1318 = vunpack.c.l.b16 %v1186
    %v1319 = vunpack.c.l.b16 %v1187
    %v1320 = vunpack.c.l.b16 %v1188
    %v1321 = vunpack.c.l.b16 %v1189
    %v1322 = vunpack.c.l.b16 %v1190
    %v1323 = vunpack.c.l.b16 %v1191
    %v1324 = vunpack.c.l.b16 %v1192
    %v1325 = vunpack.c.l.b16 %v1193
    %v1326 = vunpack.c.l.b16 %v1194
    %v1327 = vunpack.c.l.b16 %v1195
    %v1328 = vunpack.c.l.b16 %v1196
    %v1329 = vunpack.c.l.b16 %v1197
    %v1330 = vunpack.c.l.b16 %v1198
    %v1331 = vunpack.c.l.b16 %v1199
    %v1332 = vunpack.c.l.b16 %v1200
    %v1333 = vunpack.c.l.b16 %v1201
    %v1334 = vunpack.c.l.b16 %v1202
    %v1335 = vunpack.c.l.b16 %v1203
    %v1336 = vunpack.c.l.b16 %v1204
    %v1337 = vunpack.c.l.b16 %v1205
    %v1338 = vunpack.c.l.b16 %v1206
    %v1339 = vunpack.c.l.b16 %v1207
    %v1340 = vpack.c.b16 %v1277, %v1276
    %v1341 = vpack.c.b16 %v1279, %v1278
    %v1342 = vpack.c.b16 %v1281, %v1280
    %v1343 = vpack.c.b16 %v1283, %v1282
    %v1344 = vpack.c.b16 %v1285, %v1284
    %v1345 = vpack.c.b16 %v1287, %v1286
    %v1346 = vpack.c.b16 %v1289, %v1288
    %v1347 = vpack.c.b16 %v1291, %v1290
    %v1348 = vpack.c.b16 %v1293, %v1292
    %v1349 = vpack.c.b16 %v1295, %v1294
    %v1350 = vpack.c.b16 %v1297, %v1296
    %v1351 = vpack.c.b16 %v1299, %v1298
    %v1352 = vpack.c.b16 %v1301, %v1300
    %v1353 = vpack.c.b16 %v1303, %v1302
    %v1354 = vpack.c.b16 %v1305, %v1304
    %v1355 = vpack.c.b16 %v1307, %v1306
    %v1356 = vpack.c.b16 %v1309, %v1308
    %v1357 = vpack.c.b16 %v1311, %v1310
    %v1358 = vpack.c.b16 %v1313, %v1312
    %v1359 = vpack.c.b16 %v1315, %v1314
    %v1360 = vpack.c.b16 %v1317, %v1316
    %v1361 = vpack.c.b16 %v1319, %v1318
    %v1362 = vpack.c.b16 %v1321, %v1320
    %v1363 = vpack.c.b16 %v1323, %v1322
    %v1364 = vpack.c.b16 %v1325, %v1324
    %v1365 = vpack.c.b16 %v1327, %v1326
    %v1366 = vpack.c.b16 %v1329, %v1328
    %v1367 = vpack.c.b16 %v1331, %v1330
    %v1368 = vpack.c.b16 %v1333, %v1332
    %v1369 = vpack.c.b16 %v1335, %v1334
    %v1370 = vpack.c.b16 %v1337, %v1336
    %v1371 = vpack.c.b16 %v1339, %v1338
    %1404 = vmatpush.bf16.msra.mxu0 %v1347
    %1405 = vmatpush.bf16.msra.mxu0 %v1346
    %1406 = vmatpush.bf16.msra.mxu0 %v1345
    %1407 = vmatpush.bf16.msra.mxu0 %v1344
    %1408 = vmatpush.bf16.msra.mxu0 %v1343
    %1409 = vmatpush.bf16.msra.mxu0 %v1342
    %1410 = vmatpush.bf16.msra.mxu0 %v1341
    %1411 = vmatpush.bf16.msra.mxu0 %v1340
    %1412 = vmatmul.bf16.gmra.mxu0 %v1136
    %v1413 = vpop.f32.mrf.mxu0
    %v1414 = vadd.f32 %v1210, %v1413
    %v1415 = vpop.f32.mrf.mxu0
    %v1416 = vadd.f32 %v1210, %v1415
    %1417 = vmatmul.bf16.gmra.mxu0 %v1140
    %v1418 = vpop.f32.mrf.mxu0
    %v1419 = vadd.f32 %v1210, %v1418
    %v1420 = vpop.f32.mrf.mxu0
    %1421 = vdwg.mxu0
    %1422 = vmatpush.bf16.msra.mxu0 %v1355
    %1423 = vmatpush.bf16.msra.mxu0 %v1354
    %1424 = vmatpush.bf16.msra.mxu0 %v1353
    %1425 = vmatpush.bf16.msra.mxu0 %v1352
    %1426 = vmatpush.bf16.msra.mxu0 %v1351
    %1427 = vmatpush.bf16.msra.mxu0 %v1350
    %1428 = vmatpush.bf16.msra.mxu0 %v1349
    %1429 = vmatpush.bf16.msra.mxu0 %v1348
    %1430 = vmatmul.bf16.gmra.mxu0 %v1137
    %v1431 = vpop.f32.mrf.mxu0
    %v1432 = vadd.f32 %v1414, %v1431
    %v1433 = vpop.f32.mrf.mxu0
    %v1434 = vadd.f32 %v1416, %v1433
    %1435 = vmatmul.bf16.gmra.mxu0 %v1141
    %v1436 = vpop.f32.mrf.mxu0
    %v1437 = vadd.f32 %v1419, %v1436
    %v1438 = vpop.f32.mrf.mxu0
    %1439 = vdwg.mxu0
    %1440 = vmatpush.bf16.msra.mxu0 %v1363
    %1441 = vmatpush.bf16.msra.mxu0 %v1362
    %1442 = vmatpush.bf16.msra.mxu0 %v1361
    %1443 = vmatpush.bf16.msra.mxu0 %v1360
    %1444 = vmatpush.bf16.msra.mxu0 %v1359
    %1445 = vmatpush.bf16.msra.mxu0 %v1358
    %1446 = vmatpush.bf16.msra.mxu0 %v1357
    %1447 = vmatpush.bf16.msra.mxu0 %v1356
    %1448 = vmatmul.bf16.gmra.mxu0 %v1138
    %v1449 = vpop.f32.mrf.mxu0
    %v1450 = vadd.f32 %v1432, %v1449
    %v1451 = vpop.f32.mrf.mxu0
    %v1452 = vadd.f32 %v1434, %v1451
    %1453 = vmatmul.bf16.gmra.mxu0 %v1142
    %v1454 = vpop.f32.mrf.mxu0
    %v1455 = vadd.f32 %v1437, %v1454
    %v1456 = vpop.f32.mrf.mxu0
    %1457 = vdwg.mxu0
    %1458 = vmatpush.bf16.msra.mxu0 %v1371
    %1459 = vmatpush.bf16.msra.mxu0 %v1370
    %1460 = vmatpush.bf16.msra.mxu0 %v1369
    %1461 = vmatpush.bf16.msra.mxu0 %v1368
    %1462 = vmatpush.bf16.msra.mxu0 %v1367
    %1463 = vmatpush.bf16.msra.mxu0 %v1366
    %1464 = vmatpush.bf16.msra.mxu0 %v1365
    %1465 = vmatpush.bf16.msra.mxu0 %v1364
    %1466 = vmatmul.bf16.gmra.mxu0 %v1139
    %v1467 = vpop.f32.mrf.mxu0
    %v1468 = vadd.f32 %v1450, %v1467
    %v1469 = vpop.f32.mrf.mxu0
    %v1470 = vadd.f32 %v1452, %v1469
    %1471 = vmatmul.bf16.gmra.mxu0 %v1143
    %v1472 = vpop.f32.mrf.mxu0
    %v1473 = vadd.f32 %v1455, %v1472
    %v1474 = vpop.f32.mrf.mxu0
    %1475 = vdwg.mxu0
    %v1476 = vmax.f32 %v1468, 0.0
    %v1477 = vmax.f32 %v1470, 0.0
    %v1478 = vmax.f32 %v1473, 0.0
    %1479 = vst.msk [vmem:[#allocation4] sm:$0xff] %vm531, %v1476
    %1480 = vst.msk [vmem:[#allocation4 + $0x8] sm:$0xff] %vm531, %v1477
    %vm1481 = vcmask 517120
    %1482 = vst.msk [vmem:[#allocation4 + $0x10] sm:$0x3] %vm1481, %v1478
    %v1483 = vld [vmem:[#allocation4] sm:$0x3]
    %v1484 = vpack.c.bf16 %v1483, %v1483
    %v1485 = vld [vmem:[%s5] sm:$0xf]
    %v1486 = vld [vmem:[%s5 + $0x4] sm:$0xf]
    %v1487 = vld [vmem:[%s5 + $0x8] sm:$0xf]
    %v1488 = vld [vmem:[%s5 + $0xc] sm:$0xf]
    %v1489 = vld [vmem:[%s5 + $0x10] sm:$0xf]
    %v1490 = vld [vmem:[%s5 + $0x14] sm:$0xf]
    %v1491 = vld [vmem:[%s5 + $0x18] sm:$0xf]
    %v1492 = vld [vmem:[%s5 + $0x1c] sm:$0xf]
    %v1493 = vld [vmem:[#allocation4 + $0x2] sm:$0x3]
    %v1494 = vpack.c.bf16 %v1493, %v1493
    %s1495 = scalar_lea.vmem %s5, 32
    %v1496 = vld [vmem:[%s1495] sm:$0xf]
    %v1497 = vld [vmem:[%s1495 + $0x4] sm:$0xf]
    %v1498 = vld [vmem:[%s1495 + $0x8] sm:$0xf]
    %v1499 = vld [vmem:[%s1495 + $0xc] sm:$0xf]
    %v1500 = vld [vmem:[%s1495 + $0x10] sm:$0xf]
    %v1501 = vld [vmem:[%s1495 + $0x14] sm:$0xf]
    %v1502 = vld [vmem:[%s1495 + $0x18] sm:$0xf]
    %v1503 = vld [vmem:[%s1495 + $0x1c] sm:$0xf]
    %v1512 = vunpack.c.l.b16 %v1496
    %v1513 = vunpack.c.l.b16 %v1497
    %v1514 = vunpack.c.l.b16 %v1498
    %v1515 = vunpack.c.l.b16 %v1499
    %v1516 = vunpack.c.l.b16 %v1500
    %v1517 = vunpack.c.l.b16 %v1501
    %v1518 = vunpack.c.l.b16 %v1502
    %v1519 = vunpack.c.l.b16 %v1503
    %v1520 = vpack.c.b16 %v1513, %v1512
    %v1521 = vpack.c.b16 %v1515, %v1514
    %v1522 = vpack.c.b16 %v1517, %v1516
    %v1523 = vpack.c.b16 %v1519, %v1518
    %v1529 = vsel %vm531, %v1494, 0
    %1531 = vmatpush.bf16.msra.mxu0 0
    %1532 = vmatpush.bf16.msra.mxu0 0
    %1533 = vmatpush.bf16.msra.mxu0 0
    %1534 = vmatpush.bf16.msra.mxu0 0
    %1535 = vmatpush.bf16.msra.mxu0 %v1523
    %1536 = vmatpush.bf16.msra.mxu0 %v1522
    %1537 = vmatpush.bf16.msra.mxu0 %v1521
    %1538 = vmatpush.bf16.msra.mxu0 %v1520
    %1539 = vmatmul.bf16.gmra.mxu0 %v1529
    %v1540 = vpop.f32.mrf.mxu0
    %v1541 = vadd.f32 0.0, %v1540
    %v1542 = vpop.f32.mrf.mxu0
    %1543 = vdwg.mxu0
    %v1552 = vunpack.c.l.b16 %v1485
    %v1553 = vunpack.c.l.b16 %v1486
    %v1554 = vunpack.c.l.b16 %v1487
    %v1555 = vunpack.c.l.b16 %v1488
    %v1556 = vunpack.c.l.b16 %v1489
    %v1557 = vunpack.c.l.b16 %v1490
    %v1558 = vunpack.c.l.b16 %v1491
    %v1559 = vunpack.c.l.b16 %v1492
    %v1560 = vpack.c.b16 %v1553, %v1552
    %v1561 = vpack.c.b16 %v1555, %v1554
    %v1562 = vpack.c.b16 %v1557, %v1556
    %v1563 = vpack.c.b16 %v1559, %v1558
    %v1569 = vsel %vm531, %v1484, 0
    %1571 = vmatpush.bf16.msra.mxu0 0
    %1572 = vmatpush.bf16.msra.mxu0 0
    %1573 = vmatpush.bf16.msra.mxu0 0
    %1574 = vmatpush.bf16.msra.mxu0 0
    %1575 = vmatpush.bf16.msra.mxu0 %v1563
    %1576 = vmatpush.bf16.msra.mxu0 %v1562
    %1577 = vmatpush.bf16.msra.mxu0 %v1561
    %1578 = vmatpush.bf16.msra.mxu0 %v1560
    %1579 = vmatmul.bf16.gmra.mxu0 %v1569
    %v1580 = vpop.f32.mrf.mxu0
    %v1581 = vadd.f32 %v1541, %v1580
    %v1582 = vpop.f32.mrf.mxu0
    %1583 = vdwg.mxu0
    %v1584 = vld [vmem:[#allocation4 + $0x4] sm:$0x3]
    %v1585 = vpack.c.bf16 %v1584, %v1584
    %s1586 = scalar_lea.vmem %s5, 64
    %v1587 = vld [vmem:[%s1586] sm:$0xf]
    %v1588 = vld [vmem:[%s1586 + $0x4] sm:$0xf]
    %v1589 = vld [vmem:[%s1586 + $0x8] sm:$0xf]
    %v1590 = vld [vmem:[%s1586 + $0xc] sm:$0xf]
    %v1591 = vld [vmem:[%s1586 + $0x10] sm:$0xf]
    %v1592 = vld [vmem:[%s1586 + $0x14] sm:$0xf]
    %v1593 = vld [vmem:[%s1586 + $0x18] sm:$0xf]
    %v1594 = vld [vmem:[%s1586 + $0x1c] sm:$0xf]
    %v1603 = vunpack.c.l.b16 %v1587
    %v1604 = vunpack.c.l.b16 %v1588
    %v1605 = vunpack.c.l.b16 %v1589
    %v1606 = vunpack.c.l.b16 %v1590
    %v1607 = vunpack.c.l.b16 %v1591
    %v1608 = vunpack.c.l.b16 %v1592
    %v1609 = vunpack.c.l.b16 %v1593
    %v1610 = vunpack.c.l.b16 %v1594
    %v1611 = vpack.c.b16 %v1604, %v1603
    %v1612 = vpack.c.b16 %v1606, %v1605
    %v1613 = vpack.c.b16 %v1608, %v1607
    %v1614 = vpack.c.b16 %v1610, %v1609
    %v1620 = vsel %vm531, %v1585, 0
    %1622 = vmatpush.bf16.msra.mxu0 0
    %1623 = vmatpush.bf16.msra.mxu0 0
    %1624 = vmatpush.bf16.msra.mxu0 0
    %1625 = vmatpush.bf16.msra.mxu0 0
    %1626 = vmatpush.bf16.msra.mxu0 %v1614
    %1627 = vmatpush.bf16.msra.mxu0 %v1613
    %1628 = vmatpush.bf16.msra.mxu0 %v1612
    %1629 = vmatpush.bf16.msra.mxu0 %v1611
    %1630 = vmatmul.bf16.gmra.mxu0 %v1620
    %v1631 = vpop.f32.mrf.mxu0
    %v1632 = vadd.f32 0.0, %v1631
    %v1633 = vpop.f32.mrf.mxu0
    %1634 = vdwg.mxu0
    %v1635 = vadd.f32 %v1581, %v1632
    %v1636 = vld [vmem:[#allocation4 + $0x6] sm:$0x3]
    %v1637 = vpack.c.bf16 %v1636, %v1636
    %s1638 = scalar_lea.vmem %s5, 96
    %v1639 = vld [vmem:[%s1638] sm:$0xf]
    %v1640 = vld [vmem:[%s1638 + $0x4] sm:$0xf]
    %v1641 = vld [vmem:[%s1638 + $0x8] sm:$0xf]
    %v1642 = vld [vmem:[%s1638 + $0xc] sm:$0xf]
    %v1643 = vld [vmem:[%s1638 + $0x10] sm:$0xf]
    %v1644 = vld [vmem:[%s1638 + $0x14] sm:$0xf]
    %v1645 = vld [vmem:[%s1638 + $0x18] sm:$0xf]
    %v1646 = vld [vmem:[%s1638 + $0x1c] sm:$0xf]
    %v1655 = vunpack.c.l.b16 %v1639
    %v1656 = vunpack.c.l.b16 %v1640
    %v1657 = vunpack.c.l.b16 %v1641
    %v1658 = vunpack.c.l.b16 %v1642
    %v1659 = vunpack.c.l.b16 %v1643
    %v1660 = vunpack.c.l.b16 %v1644
    %v1661 = vunpack.c.l.b16 %v1645
    %v1662 = vunpack.c.l.b16 %v1646
    %v1663 = vpack.c.b16 %v1656, %v1655
    %v1664 = vpack.c.b16 %v1658, %v1657
    %v1665 = vpack.c.b16 %v1660, %v1659
    %v1666 = vpack.c.b16 %v1662, %v1661
    %v1672 = vsel %vm531, %v1637, 0
    %1674 = vmatpush.bf16.msra.mxu0 0
    %1675 = vmatpush.bf16.msra.mxu0 0
    %1676 = vmatpush.bf16.msra.mxu0 0
    %1677 = vmatpush.bf16.msra.mxu0 0
    %1678 = vmatpush.bf16.msra.mxu0 %v1666
    %1679 = vmatpush.bf16.msra.mxu0 %v1665
    %1680 = vmatpush.bf16.msra.mxu0 %v1664
    %1681 = vmatpush.bf16.msra.mxu0 %v1663
    %1682 = vmatmul.bf16.gmra.mxu0 %v1672
    %v1683 = vpop.f32.mrf.mxu0
    %v1684 = vadd.f32 0.0, %v1683
    %v1685 = vpop.f32.mrf.mxu0
    %1686 = vdwg.mxu0
    %v1687 = vadd.f32 %v1635, %v1684
    %v1688 = vld [vmem:[#allocation4 + $0x8] sm:$0x3]
    %v1689 = vpack.c.bf16 %v1688, %v1688
    %s1690 = scalar_lea.vmem %s5, 128
    %v1691 = vld [vmem:[%s1690] sm:$0xf]
    %v1692 = vld [vmem:[%s1690 + $0x4] sm:$0xf]
    %v1693 = vld [vmem:[%s1690 + $0x8] sm:$0xf]
    %v1694 = vld [vmem:[%s1690 + $0xc] sm:$0xf]
    %v1695 = vld [vmem:[%s1690 + $0x10] sm:$0xf]
    %v1696 = vld [vmem:[%s1690 + $0x14] sm:$0xf]
    %v1697 = vld [vmem:[%s1690 + $0x18] sm:$0xf]
    %v1698 = vld [vmem:[%s1690 + $0x1c] sm:$0xf]
    %v1707 = vunpack.c.l.b16 %v1691
    %v1708 = vunpack.c.l.b16 %v1692
    %v1709 = vunpack.c.l.b16 %v1693
    %v1710 = vunpack.c.l.b16 %v1694
    %v1711 = vunpack.c.l.b16 %v1695
    %v1712 = vunpack.c.l.b16 %v1696
    %v1713 = vunpack.c.l.b16 %v1697
    %v1714 = vunpack.c.l.b16 %v1698
    %v1715 = vpack.c.b16 %v1708, %v1707
    %v1716 = vpack.c.b16 %v1710, %v1709
    %v1717 = vpack.c.b16 %v1712, %v1711
    %v1718 = vpack.c.b16 %v1714, %v1713
    %v1724 = vsel %vm531, %v1689, 0
    %1726 = vmatpush.bf16.msra.mxu0 0
    %1727 = vmatpush.bf16.msra.mxu0 0
    %1728 = vmatpush.bf16.msra.mxu0 0
    %1729 = vmatpush.bf16.msra.mxu0 0
    %1730 = vmatpush.bf16.msra.mxu0 %v1718
    %1731 = vmatpush.bf16.msra.mxu0 %v1717
    %1732 = vmatpush.bf16.msra.mxu0 %v1716
    %1733 = vmatpush.bf16.msra.mxu0 %v1715
    %1734 = vmatmul.bf16.gmra.mxu0 %v1724
    %v1735 = vpop.f32.mrf.mxu0
    %v1736 = vadd.f32 0.0, %v1735
    %v1737 = vpop.f32.mrf.mxu0
    %1738 = vdwg.mxu0
    %v1739 = vadd.f32 %v1687, %v1736
    %v1740 = vld [vmem:[#allocation4 + $0xa] sm:$0x3]
    %v1741 = vpack.c.bf16 %v1740, %v1740
    %s1742 = scalar_lea.vmem %s5, 160
    %v1743 = vld [vmem:[%s1742] sm:$0xf]
    %v1744 = vld [vmem:[%s1742 + $0x4] sm:$0xf]
    %v1745 = vld [vmem:[%s1742 + $0x8] sm:$0xf]
    %v1746 = vld [vmem:[%s1742 + $0xc] sm:$0xf]
    %v1747 = vld [vmem:[%s1742 + $0x10] sm:$0xf]
    %v1748 = vld [vmem:[%s1742 + $0x14] sm:$0xf]
    %v1749 = vld [vmem:[%s1742 + $0x18] sm:$0xf]
    %v1750 = vld [vmem:[%s1742 + $0x1c] sm:$0xf]
    %v1759 = vunpack.c.l.b16 %v1743
    %v1760 = vunpack.c.l.b16 %v1744
    %v1761 = vunpack.c.l.b16 %v1745
    %v1762 = vunpack.c.l.b16 %v1746
    %v1763 = vunpack.c.l.b16 %v1747
    %v1764 = vunpack.c.l.b16 %v1748
    %v1765 = vunpack.c.l.b16 %v1749
    %v1766 = vunpack.c.l.b16 %v1750
    %v1767 = vpack.c.b16 %v1760, %v1759
    %v1768 = vpack.c.b16 %v1762, %v1761
    %v1769 = vpack.c.b16 %v1764, %v1763
    %v1770 = vpack.c.b16 %v1766, %v1765
    %v1776 = vsel %vm531, %v1741, 0
    %1778 = vmatpush.bf16.msra.mxu0 0
    %1779 = vmatpush.bf16.msra.mxu0 0
    %1780 = vmatpush.bf16.msra.mxu0 0
    %1781 = vmatpush.bf16.msra.mxu0 0
    %1782 = vmatpush.bf16.msra.mxu0 %v1770
    %1783 = vmatpush.bf16.msra.mxu0 %v1769
    %1784 = vmatpush.bf16.msra.mxu0 %v1768
    %1785 = vmatpush.bf16.msra.mxu0 %v1767
    %1786 = vmatmul.bf16.gmra.mxu0 %v1776
    %v1787 = vpop.f32.mrf.mxu0
    %v1788 = vadd.f32 0.0, %v1787
    %v1789 = vpop.f32.mrf.mxu0
    %1790 = vdwg.mxu0
    %v1791 = vadd.f32 %v1739, %v1788
    %v1792 = vld [vmem:[#allocation4 + $0xc] sm:$0x3]
    %v1793 = vpack.c.bf16 %v1792, %v1792
    %s1794 = scalar_lea.vmem %s5, 192
    %v1795 = vld [vmem:[%s1794] sm:$0xf]
    %v1796 = vld [vmem:[%s1794 + $0x4] sm:$0xf]
    %v1797 = vld [vmem:[%s1794 + $0x8] sm:$0xf]
    %v1798 = vld [vmem:[%s1794 + $0xc] sm:$0xf]
    %v1799 = vld [vmem:[%s1794 + $0x10] sm:$0xf]
    %v1800 = vld [vmem:[%s1794 + $0x14] sm:$0xf]
    %v1801 = vld [vmem:[%s1794 + $0x18] sm:$0xf]
    %v1802 = vld [vmem:[%s1794 + $0x1c] sm:$0xf]
    %v1811 = vunpack.c.l.b16 %v1795
    %v1812 = vunpack.c.l.b16 %v1796
    %v1813 = vunpack.c.l.b16 %v1797
    %v1814 = vunpack.c.l.b16 %v1798
    %v1815 = vunpack.c.l.b16 %v1799
    %v1816 = vunpack.c.l.b16 %v1800
    %v1817 = vunpack.c.l.b16 %v1801
    %v1818 = vunpack.c.l.b16 %v1802
    %v1819 = vpack.c.b16 %v1812, %v1811
    %v1820 = vpack.c.b16 %v1814, %v1813
    %v1821 = vpack.c.b16 %v1816, %v1815
    %v1822 = vpack.c.b16 %v1818, %v1817
    %v1828 = vsel %vm531, %v1793, 0
    %1830 = vmatpush.bf16.msra.mxu0 0
    %1831 = vmatpush.bf16.msra.mxu0 0
    %1832 = vmatpush.bf16.msra.mxu0 0
    %1833 = vmatpush.bf16.msra.mxu0 0
    %1834 = vmatpush.bf16.msra.mxu0 %v1822
    %1835 = vmatpush.bf16.msra.mxu0 %v1821
    %1836 = vmatpush.bf16.msra.mxu0 %v1820
    %1837 = vmatpush.bf16.msra.mxu0 %v1819
    %1838 = vmatmul.bf16.gmra.mxu0 %v1828
    %v1839 = vpop.f32.mrf.mxu0
    %v1840 = vadd.f32 0.0, %v1839
    %v1841 = vpop.f32.mrf.mxu0
    %1842 = vdwg.mxu0
    %v1843 = vadd.f32 %v1791, %v1840
    %v1844 = vld [vmem:[#allocation4 + $0xe] sm:$0x3]
    %v1845 = vpack.c.bf16 %v1844, %v1844
    %s1846 = scalar_lea.vmem %s5, 224
    %v1847 = vld [vmem:[%s1846] sm:$0xf]
    %v1848 = vld [vmem:[%s1846 + $0x4] sm:$0xf]
    %v1849 = vld [vmem:[%s1846 + $0x8] sm:$0xf]
    %v1850 = vld [vmem:[%s1846 + $0xc] sm:$0xf]
    %v1851 = vld [vmem:[%s1846 + $0x10] sm:$0xf]
    %v1852 = vld [vmem:[%s1846 + $0x14] sm:$0xf]
    %v1853 = vld [vmem:[%s1846 + $0x18] sm:$0xf]
    %v1854 = vld [vmem:[%s1846 + $0x1c] sm:$0xf]
    %v1863 = vunpack.c.l.b16 %v1847
    %v1864 = vunpack.c.l.b16 %v1848
    %v1865 = vunpack.c.l.b16 %v1849
    %v1866 = vunpack.c.l.b16 %v1850
    %v1867 = vunpack.c.l.b16 %v1851
    %v1868 = vunpack.c.l.b16 %v1852
    %v1869 = vunpack.c.l.b16 %v1853
    %v1870 = vunpack.c.l.b16 %v1854
    %v1871 = vpack.c.b16 %v1864, %v1863
    %v1872 = vpack.c.b16 %v1866, %v1865
    %v1873 = vpack.c.b16 %v1868, %v1867
    %v1874 = vpack.c.b16 %v1870, %v1869
    %v1880 = vsel %vm531, %v1845, 0
    %1882 = vmatpush.bf16.msra.mxu0 0
    %1883 = vmatpush.bf16.msra.mxu0 0
    %1884 = vmatpush.bf16.msra.mxu0 0
    %1885 = vmatpush.bf16.msra.mxu0 0
    %1886 = vmatpush.bf16.msra.mxu0 %v1874
    %1887 = vmatpush.bf16.msra.mxu0 %v1873
    %1888 = vmatpush.bf16.msra.mxu0 %v1872
    %1889 = vmatpush.bf16.msra.mxu0 %v1871
    %1890 = vmatmul.bf16.gmra.mxu0 %v1880
    %v1891 = vpop.f32.mrf.mxu0
    %v1892 = vadd.f32 0.0, %v1891
    %v1893 = vpop.f32.mrf.mxu0
    %1894 = vdwg.mxu0
    %v1895 = vadd.f32 %v1843, %v1892
    %v1896 = vld [vmem:[#allocation4 + $0x10] sm:$0x3]
    %v1897 = vpack.c.bf16 %v1896, %v1896
    %s1898 = scalar_lea.vmem %s5, 256
    %v1899 = vld [vmem:[%s1898] sm:$0xf]
    %v1900 = vld [vmem:[%s1898 + $0x4] sm:$0xf]
    %v1901 = vld [vmem:[%s1898 + $0x8] sm:$0xf]
    %v1902 = vld [vmem:[%s1898 + $0xc] sm:$0xf]
    %v1903 = vld [vmem:[%s1898 + $0x10] sm:$0xf]
    %v1904 = vld [vmem:[%s1898 + $0x14] sm:$0xf]
    %v1905 = vld [vmem:[%s1898 + $0x18] sm:$0xf]
    %v1906 = vld [vmem:[%s1898 + $0x1c] sm:$0xf]
    %v1915 = vunpack.c.l.b16 %v1899
    %v1916 = vunpack.c.l.b16 %v1900
    %v1917 = vunpack.c.l.b16 %v1901
    %v1918 = vunpack.c.l.b16 %v1902
    %v1919 = vunpack.c.l.b16 %v1903
    %v1920 = vunpack.c.l.b16 %v1904
    %v1921 = vunpack.c.l.b16 %v1905
    %v1922 = vunpack.c.l.b16 %v1906
    %v1923 = vpack.c.b16 %v1916, %v1915
    %v1924 = vpack.c.b16 %v1918, %v1917
    %v1925 = vpack.c.b16 %v1920, %v1919
    %v1926 = vpack.c.b16 %v1922, %v1921
    %v1932 = vsel %vm531, %v1897, 0
    %1934 = vmatpush.bf16.msra.mxu0 0
    %1935 = vmatpush.bf16.msra.mxu0 0
    %1936 = vmatpush.bf16.msra.mxu0 0
    %1937 = vmatpush.bf16.msra.mxu0 0
    %1938 = vmatpush.bf16.msra.mxu0 %v1926
    %1939 = vmatpush.bf16.msra.mxu0 %v1925
    %1940 = vmatpush.bf16.msra.mxu0 %v1924
    %1941 = vmatpush.bf16.msra.mxu0 %v1923
    %1942 = vmatmul.bf16.gmra.mxu0 %v1932
    %v1943 = vpop.f32.mrf.mxu0
    %v1944 = vadd.f32 0.0, %v1943
    %v1945 = vpop.f32.mrf.mxu0
    %1946 = vdwg.mxu0
    %v1947 = vadd.f32 %v1895, %v1944
    %v1948 = vld [vmem:[%s6] sm:$0x1]
    %v1950 = vperm.slane %v1948, 0
    %v1952 = vadd.f32 %v1947, %v1950
    %v1953 = vmax.f32 %v1952, 0.0
    %v1954 = vpack.c.bf16 %v1953, %v1953
    %v1955 = vld [vmem:[%s7] sm:$0xff]
    %v1956 = vld [vmem:[%s7 + $0x8] sm:$0xff]
    %v1957 = vld [vmem:[%s7 + $0x10] sm:$0xff]
    %v1958 = vld [vmem:[%s7 + $0x18] sm:$0xff]
    %v1959 = vld [vmem:[%s7 + $0x20] sm:$0xff]
    %v1960 = vld [vmem:[%s7 + $0x28] sm:$0xff]
    %v1961 = vld [vmem:[%s7 + $0x30] sm:$0xff]
    %v1962 = vld [vmem:[%s7 + $0x38] sm:$0xff]
    %v1963 = vld [vmem:[%s7 + $0x40] sm:$0xff]
    %v1964 = vld [vmem:[%s7 + $0x48] sm:$0xff]
    %v1965 = vld [vmem:[%s7 + $0x50] sm:$0xff]
    %v1966 = vld [vmem:[%s7 + $0x58] sm:$0xff]
    %v1967 = vld [vmem:[%s7 + $0x60] sm:$0xff]
    %v1968 = vld [vmem:[%s7 + $0x68] sm:$0xff]
    %v1969 = vld [vmem:[%s7 + $0x70] sm:$0xff]
    %v1970 = vld [vmem:[%s7 + $0x78] sm:$0xff]
    %v1971 = vld [vmem:[%s8] sm:$0xf]
    %v1973 = vperm.slane %v1971, 0
    %v1974 = vperm.slane %v1971, 1
    %v1975 = vperm.slane %v1971, 2
    %v1976 = vperm.slane %v1971, 3
    %v1997 = vunpack.c.l.b16 %v1955
    %v1998 = vunpack.c.h.b16 %v1955
    %v1999 = vunpack.c.l.b16 %v1956
    %v2000 = vunpack.c.h.b16 %v1956
    %v2001 = vunpack.c.l.b16 %v1957
    %v2002 = vunpack.c.h.b16 %v1957
    %v2003 = vunpack.c.l.b16 %v1958
    %v2004 = vunpack.c.h.b16 %v1958
    %v2005 = vunpack.c.l.b16 %v1959
    %v2006 = vunpack.c.h.b16 %v1959
    %v2007 = vunpack.c.l.b16 %v1960
    %v2008 = vunpack.c.h.b16 %v1960
    %v2009 = vunpack.c.l.b16 %v1961
    %v2010 = vunpack.c.h.b16 %v1961
    %v2011 = vunpack.c.l.b16 %v1962
    %v2012 = vunpack.c.h.b16 %v1962
    %v2013 = vunpack.c.l.b16 %v1963
    %v2014 = vunpack.c.h.b16 %v1963
    %v2015 = vunpack.c.l.b16 %v1964
    %v2016 = vunpack.c.h.b16 %v1964
    %v2017 = vunpack.c.l.b16 %v1965
    %v2018 = vunpack.c.h.b16 %v1965
    %v2019 = vunpack.c.l.b16 %v1966
    %v2020 = vunpack.c.h.b16 %v1966
    %v2021 = vunpack.c.l.b16 %v1967
    %v2022 = vunpack.c.h.b16 %v1967
    %v2023 = vunpack.c.l.b16 %v1968
    %v2024 = vunpack.c.h.b16 %v1968
    %v2025 = vunpack.c.l.b16 %v1969
    %v2026 = vunpack.c.h.b16 %v1969
    %v2027 = vunpack.c.l.b16 %v1970
    %v2028 = vunpack.c.h.b16 %v1970
    %v2029 = vpack.c.b16 %v2001, %v1997
    %v2030 = vpack.c.b16 %v2002, %v1998
    %v2031 = vpack.c.b16 %v2003, %v1999
    %v2032 = vpack.c.b16 %v2004, %v2000
    %v2033 = vpack.c.b16 %v2009, %v2005
    %v2034 = vpack.c.b16 %v2010, %v2006
    %v2035 = vpack.c.b16 %v2011, %v2007
    %v2036 = vpack.c.b16 %v2012, %v2008
    %v2037 = vpack.c.b16 %v2017, %v2013
    %v2038 = vpack.c.b16 %v2018, %v2014
    %v2039 = vpack.c.b16 %v2019, %v2015
    %v2040 = vpack.c.b16 %v2020, %v2016
    %v2041 = vpack.c.b16 %v2025, %v2021
    %v2042 = vpack.c.b16 %v2026, %v2022
    %v2043 = vpack.c.b16 %v2027, %v2023
    %v2044 = vpack.c.b16 %v2028, %v2024
    %v2062 = vsel %vm531, %v1954, 0
    %2064 = vmatpush.bf16.msra.mxu0 0
    %2065 = vmatpush.bf16.msra.mxu0 0
    %2066 = vmatpush.bf16.msra.mxu0 0
    %2067 = vmatpush.bf16.msra.mxu0 0
    %2068 = vmatpush.bf16.msra.mxu0 %v2041
    %2069 = vmatpush.bf16.msra.mxu0 %v2037
    %2070 = vmatpush.bf16.msra.mxu0 %v2033
    %2071 = vmatpush.bf16.msra.mxu0 %v2029
    %2072 = vmatmul.bf16.gmra.mxu0 %v2062
    %v2073 = vpop.f32.mrf.mxu0
    %v2074 = vadd.f32 %v1973, %v2073
    %v2075 = vpop.f32.mrf.mxu0
    %2076 = vdwg.mxu0
    %2077 = vmatpush.bf16.msra.mxu0 0
    %2078 = vmatpush.bf16.msra.mxu0 0
    %2079 = vmatpush.bf16.msra.mxu0 0
    %2080 = vmatpush.bf16.msra.mxu0 0
    %2081 = vmatpush.bf16.msra.mxu0 %v2042
    %2082 = vmatpush.bf16.msra.mxu0 %v2038
    %2083 = vmatpush.bf16.msra.mxu0 %v2034
    %2084 = vmatpush.bf16.msra.mxu0 %v2030
    %2085 = vmatmul.bf16.gmra.mxu0 %v2062
    %v2086 = vpop.f32.mrf.mxu0
    %v2087 = vadd.f32 %v1974, %v2086
    %v2088 = vpop.f32.mrf.mxu0
    %2089 = vdwg.mxu0
    %2090 = vmatpush.bf16.msra.mxu0 0
    %2091 = vmatpush.bf16.msra.mxu0 0
    %2092 = vmatpush.bf16.msra.mxu0 0
    %2093 = vmatpush.bf16.msra.mxu0 0
    %2094 = vmatpush.bf16.msra.mxu0 %v2043
    %2095 = vmatpush.bf16.msra.mxu0 %v2039
    %2096 = vmatpush.bf16.msra.mxu0 %v2035
    %2097 = vmatpush.bf16.msra.mxu0 %v2031
    %2098 = vmatmul.bf16.gmra.mxu0 %v2062
    %v2099 = vpop.f32.mrf.mxu0
    %v2100 = vadd.f32 %v1975, %v2099
    %v2101 = vpop.f32.mrf.mxu0
    %2102 = vdwg.mxu0
    %2103 = vmatpush.bf16.msra.mxu0 0
    %2104 = vmatpush.bf16.msra.mxu0 0
    %2105 = vmatpush.bf16.msra.mxu0 0
    %2106 = vmatpush.bf16.msra.mxu0 0
    %2107 = vmatpush.bf16.msra.mxu0 %v2044
    %2108 = vmatpush.bf16.msra.mxu0 %v2040
    %2109 = vmatpush.bf16.msra.mxu0 %v2036
    %2110 = vmatpush.bf16.msra.mxu0 %v2032
    %2111 = vmatmul.bf16.gmra.mxu0 %v2062
    %v2112 = vpop.f32.mrf.mxu0
    %v2113 = vadd.f32 %v1976, %v2112
    %v2114 = vpop.f32.mrf.mxu0
    %2115 = vdwg.mxu0
    %v2116 = vmax.f32 %v2074, 0.0
    %v2117 = vmax.f32 %v2087, 0.0
    %v2118 = vmax.f32 %v2100, 0.0
    %v2119 = vmax.f32 %v2113, 0.0
    %v2120 = vpack.c.bf16 %v2116, %v2116
    %v2121 = vpack.c.bf16 %v2117, %v2117
    %v2122 = vpack.c.bf16 %v2118, %v2118
    %v2123 = vpack.c.bf16 %v2119, %v2119
    %v2124 = vld [vmem:[%s9] sm:$0xf]
    %v2125 = vld [vmem:[%s9 + $0x4] sm:$0xf]
    %v2126 = vld [vmem:[%s9 + $0x8] sm:$0xf]
    %v2127 = vld [vmem:[%s9 + $0xc] sm:$0xf]
    %v2128 = vld [vmem:[%s9 + $0x10] sm:$0xf]
    %v2129 = vld [vmem:[%s9 + $0x14] sm:$0xf]
    %v2130 = vld [vmem:[%s9 + $0x18] sm:$0xf]
    %v2131 = vld [vmem:[%s9 + $0x1c] sm:$0xf]
    %v2132 = vld [vmem:[%s9 + $0x20] sm:$0xf]
    %v2133 = vld [vmem:[%s9 + $0x24] sm:$0xf]
    %v2134 = vld [vmem:[%s9 + $0x28] sm:$0xf]
    %v2135 = vld [vmem:[%s9 + $0x2c] sm:$0xf]
    %v2136 = vld [vmem:[%s9 + $0x30] sm:$0xf]
    %v2137 = vld [vmem:[%s9 + $0x34] sm:$0xf]
    %v2138 = vld [vmem:[%s9 + $0x38] sm:$0xf]
    %v2139 = vld [vmem:[%s9 + $0x3c] sm:$0xf]
    %v2140 = vld [vmem:[%s9 + $0x40] sm:$0xf]
    %v2141 = vld [vmem:[%s9 + $0x44] sm:$0xf]
    %v2142 = vld [vmem:[%s9 + $0x48] sm:$0xf]
    %v2143 = vld [vmem:[%s9 + $0x4c] sm:$0xf]
    %v2144 = vld [vmem:[%s9 + $0x50] sm:$0xf]
    %v2145 = vld [vmem:[%s9 + $0x54] sm:$0xf]
    %v2146 = vld [vmem:[%s9 + $0x58] sm:$0xf]
    %v2147 = vld [vmem:[%s9 + $0x5c] sm:$0xf]
    %v2148 = vld [vmem:[%s9 + $0x60] sm:$0xf]
    %v2149 = vld [vmem:[%s9 + $0x64] sm:$0xf]
    %v2150 = vld [vmem:[%s9 + $0x68] sm:$0xf]
    %v2151 = vld [vmem:[%s9 + $0x6c] sm:$0xf]
    %v2152 = vld [vmem:[%s9 + $0x70] sm:$0xf]
    %v2153 = vld [vmem:[%s9 + $0x74] sm:$0xf]
    %v2154 = vld [vmem:[%s9 + $0x78] sm:$0xf]
    %v2155 = vld [vmem:[%s9 + $0x7c] sm:$0xf]
    %v2156 = vld [vmem:[%s9 + $0x80] sm:$0xf]
    %v2157 = vld [vmem:[%s9 + $0x84] sm:$0xf]
    %v2158 = vld [vmem:[%s9 + $0x88] sm:$0xf]
    %v2159 = vld [vmem:[%s9 + $0x8c] sm:$0xf]
    %v2160 = vld [vmem:[%s9 + $0x90] sm:$0xf]
    %v2161 = vld [vmem:[%s9 + $0x94] sm:$0xf]
    %v2162 = vld [vmem:[%s9 + $0x98] sm:$0xf]
    %v2163 = vld [vmem:[%s9 + $0x9c] sm:$0xf]
    %v2164 = vld [vmem:[%s9 + $0xa0] sm:$0xf]
    %v2165 = vld [vmem:[%s9 + $0xa4] sm:$0xf]
    %v2166 = vld [vmem:[%s9 + $0xa8] sm:$0xf]
    %v2167 = vld [vmem:[%s9 + $0xac] sm:$0xf]
    %v2168 = vld [vmem:[%s9 + $0xb0] sm:$0xf]
    %v2169 = vld [vmem:[%s9 + $0xb4] sm:$0xf]
    %v2170 = vld [vmem:[%s9 + $0xb8] sm:$0xf]
    %v2171 = vld [vmem:[%s9 + $0xbc] sm:$0xf]
    %v2172 = vld [vmem:[%s9 + $0xc0] sm:$0xf]
    %v2173 = vld [vmem:[%s9 + $0xc4] sm:$0xf]
    %v2174 = vld [vmem:[%s9 + $0xc8] sm:$0xf]
    %v2175 = vld [vmem:[%s9 + $0xcc] sm:$0xf]
    %v2176 = vld [vmem:[%s9 + $0xd0] sm:$0xf]
    %v2177 = vld [vmem:[%s9 + $0xd4] sm:$0xf]
    %v2178 = vld [vmem:[%s9 + $0xd8] sm:$0xf]
    %v2179 = vld [vmem:[%s9 + $0xdc] sm:$0xf]
    %v2180 = vld [vmem:[%s9 + $0xe0] sm:$0xf]
    %v2181 = vld [vmem:[%s9 + $0xe4] sm:$0xf]
    %v2182 = vld [vmem:[%s9 + $0xe8] sm:$0xf]
    %v2183 = vld [vmem:[%s9 + $0xec] sm:$0xf]
    %v2184 = vld [vmem:[%s9 + $0xf0] sm:$0xf]
    %v2185 = vld [vmem:[%s9 + $0xf4] sm:$0xf]
    %v2186 = vld [vmem:[%s9 + $0xf8] sm:$0xf]
    %v2187 = vld [vmem:[%s9 + $0xfc] sm:$0xf]
    %v2188 = vld [vmem:[%s10] sm:$0x1]
    %v2190 = vperm.slane %v2188, 0
    %v2256 = vunpack.c.l.b16 %v2124
    %v2257 = vunpack.c.l.b16 %v2125
    %v2258 = vunpack.c.l.b16 %v2126
    %v2259 = vunpack.c.l.b16 %v2127
    %v2260 = vunpack.c.l.b16 %v2128
    %v2261 = vunpack.c.l.b16 %v2129
    %v2262 = vunpack.c.l.b16 %v2130
    %v2263 = vunpack.c.l.b16 %v2131
    %v2264 = vunpack.c.l.b16 %v2132
    %v2265 = vunpack.c.l.b16 %v2133
    %v2266 = vunpack.c.l.b16 %v2134
    %v2267 = vunpack.c.l.b16 %v2135
    %v2268 = vunpack.c.l.b16 %v2136
    %v2269 = vunpack.c.l.b16 %v2137
    %v2270 = vunpack.c.l.b16 %v2138
    %v2271 = vunpack.c.l.b16 %v2139
    %v2272 = vunpack.c.l.b16 %v2140
    %v2273 = vunpack.c.l.b16 %v2141
    %v2274 = vunpack.c.l.b16 %v2142
    %v2275 = vunpack.c.l.b16 %v2143
    %v2276 = vunpack.c.l.b16 %v2144
    %v2277 = vunpack.c.l.b16 %v2145
    %v2278 = vunpack.c.l.b16 %v2146
    %v2279 = vunpack.c.l.b16 %v2147
    %v2280 = vunpack.c.l.b16 %v2148
    %v2281 = vunpack.c.l.b16 %v2149
    %v2282 = vunpack.c.l.b16 %v2150
    %v2283 = vunpack.c.l.b16 %v2151
    %v2284 = vunpack.c.l.b16 %v2152
    %v2285 = vunpack.c.l.b16 %v2153
    %v2286 = vunpack.c.l.b16 %v2154
    %v2287 = vunpack.c.l.b16 %v2155
    %v2288 = vunpack.c.l.b16 %v2156
    %v2289 = vunpack.c.l.b16 %v2157
    %v2290 = vunpack.c.l.b16 %v2158
    %v2291 = vunpack.c.l.b16 %v2159
    %v2292 = vunpack.c.l.b16 %v2160
    %v2293 = vunpack.c.l.b16 %v2161
    %v2294 = vunpack.c.l.b16 %v2162
    %v2295 = vunpack.c.l.b16 %v2163
    %v2296 = vunpack.c.l.b16 %v2164
    %v2297 = vunpack.c.l.b16 %v2165
    %v2298 = vunpack.c.l.b16 %v2166
    %v2299 = vunpack.c.l.b16 %v2167
    %v2300 = vunpack.c.l.b16 %v2168
    %v2301 = vunpack.c.l.b16 %v2169
    %v2302 = vunpack.c.l.b16 %v2170
    %v2303 = vunpack.c.l.b16 %v2171
    %v2304 = vunpack.c.l.b16 %v2172
    %v2305 = vunpack.c.l.b16 %v2173
    %v2306 = vunpack.c.l.b16 %v2174
    %v2307 = vunpack.c.l.b16 %v2175
    %v2308 = vunpack.c.l.b16 %v2176
    %v2309 = vunpack.c.l.b16 %v2177
    %v2310 = vunpack.c.l.b16 %v2178
    %v2311 = vunpack.c.l.b16 %v2179
    %v2312 = vunpack.c.l.b16 %v2180
    %v2313 = vunpack.c.l.b16 %v2181
    %v2314 = vunpack.c.l.b16 %v2182
    %v2315 = vunpack.c.l.b16 %v2183
    %v2316 = vunpack.c.l.b16 %v2184
    %v2317 = vunpack.c.l.b16 %v2185
    %v2318 = vunpack.c.l.b16 %v2186
    %v2319 = vunpack.c.l.b16 %v2187
    %v2320 = vpack.c.b16 %v2257, %v2256
    %v2321 = vpack.c.b16 %v2259, %v2258
    %v2322 = vpack.c.b16 %v2261, %v2260
    %v2323 = vpack.c.b16 %v2263, %v2262
    %v2324 = vpack.c.b16 %v2265, %v2264
    %v2325 = vpack.c.b16 %v2267, %v2266
    %v2326 = vpack.c.b16 %v2269, %v2268
    %v2327 = vpack.c.b16 %v2271, %v2270
    %v2328 = vpack.c.b16 %v2273, %v2272
    %v2329 = vpack.c.b16 %v2275, %v2274
    %v2330 = vpack.c.b16 %v2277, %v2276
    %v2331 = vpack.c.b16 %v2279, %v2278
    %v2332 = vpack.c.b16 %v2281, %v2280
    %v2333 = vpack.c.b16 %v2283, %v2282
    %v2334 = vpack.c.b16 %v2285, %v2284
    %v2335 = vpack.c.b16 %v2287, %v2286
    %v2336 = vpack.c.b16 %v2289, %v2288
    %v2337 = vpack.c.b16 %v2291, %v2290
    %v2338 = vpack.c.b16 %v2293, %v2292
    %v2339 = vpack.c.b16 %v2295, %v2294
    %v2340 = vpack.c.b16 %v2297, %v2296
    %v2341 = vpack.c.b16 %v2299, %v2298
    %v2342 = vpack.c.b16 %v2301, %v2300
    %v2343 = vpack.c.b16 %v2303, %v2302
    %v2344 = vpack.c.b16 %v2305, %v2304
    %v2345 = vpack.c.b16 %v2307, %v2306
    %v2346 = vpack.c.b16 %v2309, %v2308
    %v2347 = vpack.c.b16 %v2311, %v2310
    %v2348 = vpack.c.b16 %v2313, %v2312
    %v2349 = vpack.c.b16 %v2315, %v2314
    %v2350 = vpack.c.b16 %v2317, %v2316
    %v2351 = vpack.c.b16 %v2319, %v2318
    %2384 = vmatpush.bf16.msra.mxu0 %v2327
    %2385 = vmatpush.bf16.msra.mxu0 %v2326
    %2386 = vmatpush.bf16.msra.mxu0 %v2325
    %2387 = vmatpush.bf16.msra.mxu0 %v2324
    %2388 = vmatpush.bf16.msra.mxu0 %v2323
    %2389 = vmatpush.bf16.msra.mxu0 %v2322
    %2390 = vmatpush.bf16.msra.mxu0 %v2321
    %2391 = vmatpush.bf16.msra.mxu0 %v2320
    %2392 = vmatmul.bf16.gmra.mxu0 %v2120
    %v2393 = vpop.f32.mrf.mxu0
    %v2394 = vadd.f32 %v2190, %v2393
    %v2395 = vpop.f32.mrf.mxu0
    %2396 = vdwg.mxu0
    %2397 = vmatpush.bf16.msra.mxu0 %v2335
    %2398 = vmatpush.bf16.msra.mxu0 %v2334
    %2399 = vmatpush.bf16.msra.mxu0 %v2333
    %2400 = vmatpush.bf16.msra.mxu0 %v2332
    %2401 = vmatpush.bf16.msra.mxu0 %v2331
    %2402 = vmatpush.bf16.msra.mxu0 %v2330
    %2403 = vmatpush.bf16.msra.mxu0 %v2329
    %2404 = vmatpush.bf16.msra.mxu0 %v2328
    %2405 = vmatmul.bf16.gmra.mxu0 %v2121
    %v2406 = vpop.f32.mrf.mxu0
    %v2407 = vadd.f32 %v2394, %v2406
    %v2408 = vpop.f32.mrf.mxu0
    %2409 = vdwg.mxu0
    %2410 = vmatpush.bf16.msra.mxu0 %v2343
    %2411 = vmatpush.bf16.msra.mxu0 %v2342
    %2412 = vmatpush.bf16.msra.mxu0 %v2341
    %2413 = vmatpush.bf16.msra.mxu0 %v2340
    %2414 = vmatpush.bf16.msra.mxu0 %v2339
    %2415 = vmatpush.bf16.msra.mxu0 %v2338
    %2416 = vmatpush.bf16.msra.mxu0 %v2337
    %2417 = vmatpush.bf16.msra.mxu0 %v2336
    %2418 = vmatmul.bf16.gmra.mxu0 %v2122
    %v2419 = vpop.f32.mrf.mxu0
    %v2420 = vadd.f32 %v2407, %v2419
    %v2421 = vpop.f32.mrf.mxu0
    %2422 = vdwg.mxu0
    %2423 = vmatpush.bf16.msra.mxu0 %v2351
    %2424 = vmatpush.bf16.msra.mxu0 %v2350
    %2425 = vmatpush.bf16.msra.mxu0 %v2349
    %2426 = vmatpush.bf16.msra.mxu0 %v2348
    %2427 = vmatpush.bf16.msra.mxu0 %v2347
    %2428 = vmatpush.bf16.msra.mxu0 %v2346
    %2429 = vmatpush.bf16.msra.mxu0 %v2345
    %2430 = vmatpush.bf16.msra.mxu0 %v2344
    %2431 = vmatmul.bf16.gmra.mxu0 %v2123
    %v2432 = vpop.f32.mrf.mxu0
    %v2433 = vadd.f32 %v2420, %v2432
    %v2434 = vpop.f32.mrf.mxu0
    %2435 = vdwg.mxu0
    %2436 = vst [vmem:[#allocation5] sm:$0x3] %v2433
    // Predicated region
    $region46: #{qnetwork_forward_padded.1} parent=1 // pred_check
      _
    $region47: #{qnetwork_forward_padded.1} parent=1 // pred_check_branch
      %2438 = sbr.rel (0) target = $region49
    $region48: #{qnetwork_forward_padded.1} parent=1 // pred_region
      %2440 = vsyncadd [#allocation6], 0
      %s2442 = sshll.u32 [#allocation5], 4
      %s2443 = int_to_ptr.vmem [resolvable:$true] %s2442
      %s2444 = sshll.u32 %s11, 4
      %s2445 = int_to_ptr.hbm [resolvable:$true] %s2444
      %2447 = dma.vmem_to_hbm [thread:$0]  %s2443, 32, %s2445, [#allocation6]
    $region49: #{qnetwork_forward_padded.1} parent=1 // pred_fallthru
      _
    // Predicated region
    $region50: #{qnetwork_forward_padded.1} parent=1 // pred_check
      _
    $region51: #{qnetwork_forward_padded.1} parent=1 // pred_check_branch
      %2449 = sbr.rel (0) target = $region53
    $region52: #{qnetwork_forward_padded.1} parent=1 // pred_region
      %2451 = dma.done [#allocation6], 32
    $region53: #{qnetwork_forward_padded.1} parent=1 // pred_fallthru
      _
    %2452 = vsyncpa [#allocation6], 1

</llo_original>
